<compile_context>
chip_gen: v6e
topology: v6e:2x2x1
jax: 0.10.0
libtpu: 0.0.40
codegen_flags: <defaults>
</compile_context>

<pallas_src>
import math
import numpy as np
import jax
import jax.numpy as jnp
from jax import lax
from jax.experimental import pallas as pl
from jax.experimental.pallas import tpu as pltpu

LN_EPS = 1e-5
BN_EPS = 1e-5


def _cdiv(a, b):
    return -(-a // b)


def _make_kernel(C_in, W, kh, kw, Nb, PAD, HoWo):
    """Kernel body for one batch block (Bb samples folded into Nb = Bb*Ho*W lanes)."""
    ph, pw = kh // 2, kw // 2

    def kernel(x_ref, ln_ref, lnm_ref, tapm_ref, w1_ref, b1_ref, w2_ref, b2_ref,
               w3_ref, b3_ref, pool_ref, out_ref, xw_ref, work_ref, patch_ref):
        f32 = jnp.float32
        bf16 = jnp.bfloat16

        # -- zero the pad strips of the shift scratches.  They are one lane-tile
        #    wide and aligned; redone every step so "parallel" (megacore) grid
        #    sharding never sees uninitialised pads.
        xw_ref[:, 0:PAD] = jnp.zeros((C_in, PAD), f32)
        xw_ref[:, PAD + Nb:PAD + 2 * PAD + Nb - PAD + PAD] = jnp.zeros((C_in, PAD), f32) \
            if False else xw_ref[:, PAD + Nb:PAD + Nb + PAD]
        xw_ref[:, PAD + Nb:PAD + Nb + PAD] = jnp.zeros((C_in, PAD), f32)
        work_ref[:, 0:PAD] = jnp.zeros((2 * C_in, PAD), f32)
        work_ref[:, PAD + Nb:PAD + Nb + PAD] = jnp.zeros((2 * C_in, PAD), f32)

        # ---------------- LayerNorm over the hidden axis (W-lane groups) -------
        # Group sums of x and x^2 are computed together with a masked log2(W)
        # doubling: phase A = within-group suffix sums, phase B = broadcast of the
        # group-start value to every group member.  All shifts are static
        # lane-offset slices of the padded `work` scratch (no relayouts).
        xv = x_ref[...].astype(f32)                                # (C_in, Nb)
        work_ref[0:C_in, PAD:PAD + Nb] = xv
        work_ref[C_in:2 * C_in, PAD:PAD + Nb] = xv * xv

        step = 0
        s = 1
        while s < W:                                               # phase A
            cur = work_ref[:, PAD:PAD + Nb]
            nxt = work_ref[:, PAD + s:PAD + s + Nb]
            work_ref[:, PAD:PAD + Nb] = cur + lnm_ref[step:step + 1, :] * nxt
            s *= 2
            step += 1
        s = 1
        while s < W:                                               # phase B
            cur = work_ref[:, PAD:PAD + Nb]
            prv = work_ref[:, PAD - s:PAD - s + Nb]
            m = lnm_ref[step:step + 1, :]
            work_ref[:, PAD:PAD + Nb] = cur + m * (prv - cur)
            s *= 2
            step += 1

        inv_w = 1.0 / float(W)
        mu = work_ref[0:C_in, PAD:PAD + Nb] * inv_w
        ex2 = work_ref[C_in:2 * C_in, PAD:PAD + Nb] * inv_w
        rstd = lax.rsqrt(ex2 - mu * mu + LN_EPS)
        x_ln = (xv - mu) * rstd * ln_ref[0:1, :] + ln_ref[1:2, :]  # (C_in, Nb)
        xw_ref[:, PAD:PAD + Nb] = x_ln

        # ---------------- im2col: static shifted slices * 0/1 tap masks --------
        # patch row order = (di*kw + dj)*C_in + c, matching the packed w1.
        for di in range(kh):
            for dj in range(kw):
                t = di * kw + dj
                off = PAD + (di - ph) * W + (dj - pw)
                sl = xw_ref[:, off:off + Nb]                        # (C_in, Nb)
                patch_ref[t * C_in:(t + 1) * C_in, :] = sl * tapm_ref[t:t + 1, :]

        # -------- conv1(+BN1)+ReLU, 1x1 conv2(+BN2)+ReLU, 1x1 conv3+ReLU -------
        # bf16 MXU operands, f32 accumulation.
        h = jnp.dot(w1_ref[...], patch_ref[...].astype(bf16),
                    preferred_element_type=f32)
        h = jnp.maximum(h + b1_ref[...], 0.0).astype(bf16)         # (c1, Nb)
        h = jnp.dot(w2_ref[...], h, preferred_element_type=f32)
        h = jnp.maximum(h + b2_ref[...], 0.0).astype(bf16)         # (c2, Nb)
        h = jnp.dot(w3_ref[...], h, preferred_element_type=f32)
        h = jnp.maximum(h + b3_ref[...], 0.0).astype(bf16)         # (proj, Nb)

        # ---- AdaptiveAvgPool2d(1): block-diagonal ones matmul (exact 1.0 in
        #      bf16), 1/HoWo scale applied to the f32 result.  Dropout = eval id.
        pooled = jnp.dot(h, pool_ref[...], preferred_element_type=f32)
        out_ref[...] = (pooled * (1.0 / float(HoWo))).astype(out_ref.dtype)

    return kernel


def plug_cnn_encoder_forward(x, params, *, batch_block=128):
    """Pallas forward pass (2-D branch).  x: (B, n_layers, n_parts, hidden) f32."""
    B, C_in, H, W = x.shape
    w1 = params["conv1_w"]                              # (c1, C_in, kh, kw)
    c1, _, kh, kw = w1.shape
    c2 = params["conv2_w"].shape[0]
    proj = params["conv3_w"].shape[0]
    ph, pw = kh // 2, kw // 2
    Ho = H + 2 * ph - kh + 1                            # conv output height
    Wo = W + 2 * pw - kw + 1
    if Wo != W:
        raise NotImplementedError("kernel assumes the module's same-width conv (kw=5, pad=2)")
    HoWo = Ho * Wo
    K = kh * kw * C_in

    # ---------------- batch blocking (Nb kept a multiple of 128 lanes) ---------
    bmult = 128 // math.gcd(128, Ho * W)
    if B <= batch_block:
        Bb = _cdiv(B, bmult) * bmult
        B_pad = Bb
        # NOTE(v7x): a single grid step leaves one TensorCore idle; for B~128
        # workloads on v7x pass batch_block=64 to get >=2 "parallel" steps.
    else:
        Bb = max(128, (batch_block // 128) * 128)       # lane-dense & divisible
        B_pad = _cdiv(B, Bb) * Bb
    Nb = Bb * Ho * W
    PAD = _cdiv(kh * W + kw, 128) * 128                 # covers all static shifts

    # Fail fast on the pool matrix's O(Bb^2 * HoWo) growth (review concern).
    pool_bytes = Nb * Bb * 2
    if pool_bytes > 16 * 1024 * 1024:
        raise ValueError("pooling matrix would exceed 16 MiB; lower batch_block")

    # ---------------- host data prep -------------------------------------------
    xf = x.astype(jnp.float32)
    if B_pad != B:
        xf = jnp.concatenate(
            [xf, jnp.zeros((B_pad - B, C_in, H, W), jnp.float32)], axis=0)
    if Ho > H:
        # even kernel height: one structural filler row per sample (masked; its
        # value is never read by any valid tap).
        xf = jnp.concatenate(
            [xf, jnp.zeros((B_pad, C_in, Ho - H, W), jnp.float32)], axis=2)
    # (B, C, Ho, W) -> (C, B*Ho*W): channel on sublanes, everything else lane-dense.
    x_flat = jnp.transpose(xf, (1, 0, 2, 3)).reshape(C_in, B_pad * Ho * W)

    # ---------------- host-built constants (loaded once, single-buffered) ------
    idx = np.arange(Nb)
    w_idx = idx % W
    hfold = (idx // W) % Ho

    steps = []
    s = 1
    while s < W:
        steps.append(s)
        s *= 2
    rows = [(w_idx + s < W) for s in steps] + [(w_idx >= s) for s in steps]
    lnmask = (np.stack(rows, 0).astype(np.float32)
              if rows else np.zeros((1, Nb), np.float32))

    tap_rows = []
    for di in range(kh):
        r_ok = (hfold >= (ph - di)) & (hfold < (H + ph - di))
        for dj in range(kw):
            c_ok = (w_idx >= (pw - dj)) & (w_idx < (W + pw - dj))
            tap_rows.append(r_ok & c_ok)
    tapmask = np.stack(tap_rows, 0).astype(np.float32)          # (kh*kw, Nb)

    ln_flat = jnp.stack(
        [jnp.tile(params["ln_gamma"].astype(jnp.float32), Bb * Ho),
         jnp.tile(params["ln_beta"].astype(jnp.float32), Bb * Ho)], 0)

    # BN folded into conv weights/biases; weights cast to bf16 AFTER folding.
    s1 = params["bn1_gamma"] / jnp.sqrt(params["bn1_var"] + BN_EPS)
    w1p = jnp.transpose(w1 * s1[:, None, None, None],
                        (0, 2, 3, 1)).reshape(c1, K).astype(jnp.bfloat16)
    b1f = (s1 * (params["conv1_b"] - params["bn1_mean"])
           + params["bn1_beta"]).reshape(c1, 1).astype(jnp.float32)
    s2 = params["bn2_gamma"] / jnp.sqrt(params["bn2_var"] + BN_EPS)
    w2p = (params["conv2_w"][:, :, 0, 0] * s2[:, None]).astype(jnp.bfloat16)
    b2f = (s2 * (params["conv2_b"] - params["bn2_mean"])
           + params["bn2_beta"]).reshape(c2, 1).astype(jnp.float32)
    w3p = params["conv3_w"][:, :, 0, 0].astype(jnp.bfloat16)
    b3f = params["conv3_b"].reshape(proj, 1).astype(jnp.float32)

    # block-diagonal pooling matrix with EXACT 1.0 entries (bf16-safe); 1/HoWo is
    # applied to the f32 result inside the kernel.
    pool = jnp.repeat(jnp.eye(Bb, dtype=jnp.float32), HoWo, axis=0).astype(jnp.bfloat16)

    kernel = _make_kernel(C_in, W, kh, kw, Nb, PAD, HoWo)

    args = (x_flat, ln_flat, jnp.asarray(lnmask), jnp.asarray(tapmask),
            w1p, b1f, w2p, b2f, w3p, b3f, pool)

    def run(single_buffer_consts):
        def cspec(arr):
            if single_buffer_consts:
                return pl.BlockSpec(arr.shape, lambda g: (0, 0),
                                    pipeline_mode=pl.Buffered(1))
            return pl.BlockSpec(arr.shape, lambda g: (0, 0))

        in_specs = [pl.BlockSpec((C_in, Nb), lambda g: (0, g))]     # x: blocked batch
        in_specs += [cspec(a) for a in args[1:]]

        grid_spec = pltpu.PrefetchScalarGridSpec(
            num_scalar_prefetch=0,
            grid=(B_pad // Bb,),
            in_specs=in_specs,
            out_specs=pl.BlockSpec((proj, Bb), lambda g: (0, g)),
            scratch_shapes=[
                pltpu.VMEM((C_in, Nb + 2 * PAD), jnp.float32),       # padded x_ln slab
                pltpu.VMEM((2 * C_in, Nb + 2 * PAD), jnp.float32),   # LN doubling buffer
                pltpu.VMEM((K, Nb), jnp.float32),                    # im2col patch
            ],
        )
        return pl.pallas_call(
            kernel,
            out_shape=jax.ShapeDtypeStruct((proj, B_pad), jnp.float32),
            grid_spec=grid_spec,
            compiler_params=pltpu.CompilerParams(
                dimension_semantics=("parallel",),       # batch blocks independent
                vmem_limit_bytes=64 * 1024 * 1024,       # safe on v5e/v6e/v7x
            ),
        )(*args)

    try:
        out = run(True)                  # single-buffered constants (pl.Buffered(1))
    except Exception:
        out = run(False)                 # fallback: default double-buffering

    return out.T[:B]                     # (B, proj)


def init_params(key, n_layers, n_parts, hidden, *, base=16, proj_mult=2):
    """Deterministic synthetic init mirroring the PyTorch __init__ shapes (2-D branch)."""
    k_h = 3 if n_parts > 2 else n_parts
    k_w = 5
    c1, c2 = base, base * 2
    proj = max(32, base * proj_mult)
    ks = jax.random.split(key, 8)

    def u(k, shape, fan_in):
        bound = 1.0 / np.sqrt(fan_in)
        return jax.random.uniform(k, shape, jnp.float32, -bound, bound)

    return {
        "ln_gamma": jnp.ones((hidden,), jnp.float32),
        "ln_beta": jnp.zeros((hidden,), jnp.float32),
        "conv1_w": u(ks[0], (c1, n_layers, k_h, k_w), n_layers * k_h * k_w),
        "conv1_b": u(ks[1], (c1,), n_layers * k_h * k_w),
        "bn1_gamma": jnp.ones((c1,), jnp.float32) * 1.1,
        "bn1_beta": jnp.ones((c1,), jnp.float32) * 0.05,
        "bn1_mean": jnp.ones((c1,), jnp.float32) * 0.02,
        "bn1_var": jnp.ones((c1,), jnp.float32) * 0.9,
        "conv2_w": u(ks[2], (c2, c1, 1, 1), c1),
        "conv2_b": u(ks[3], (c2,), c1),
        "bn2_gamma": jnp.ones((c2,), jnp.float32) * 0.95,
        "bn2_beta": jnp.ones((c2,), jnp.float32) * -0.03,
        "bn2_mean": jnp.ones((c2,), jnp.float32) * -0.01,
        "bn2_var": jnp.ones((c2,), jnp.float32) * 1.2,
        "conv3_w": u(ks[4], (proj, c2, 1, 1), c2),
        "conv3_b": u(ks[5], (proj,), c2),
    }


def reference_forward(x, params):
    """Pure-JAX f32 reference (eval mode) for correctness checking."""
    kh, kw = params["conv1_w"].shape[2:]
    ph, pw = kh // 2, kw // 2
    mu = x.mean(-1, keepdims=True)
    var = ((x - mu) ** 2).mean(-1, keepdims=True)
    h = (x - mu) / jnp.sqrt(var + LN_EPS) * params["ln_gamma"] + params["ln_beta"]
    h = lax.conv_general_dilated(h, params["conv1_w"], window_strides=(1, 1),
                                 padding=((ph, ph), (pw, pw)),
                                 dimension_numbers=("NCHW", "OIHW", "NCHW"))
    h = h + params["conv1_b"][None, :, None, None]

    def bn(h, pre):
        return ((h - params[pre + "_mean"][None, :, None, None])
                / jnp.sqrt(params[pre + "_var"][None, :, None, None] + BN_EPS)
                * params[pre + "_gamma"][None, :, None, None]
                + params[pre + "_beta"][None, :, None, None])

    h = jnp.maximum(bn(h, "bn1"), 0.0)
    h = jnp.einsum("oc,bchw->bohw", params["conv2_w"][:, :, 0, 0], h) \
        + params["conv2_b"][None, :, None, None]
    h = jnp.maximum(bn(h, "bn2"), 0.0)
    h = jnp.einsum("oc,bchw->bohw", params["conv3_w"][:, :, 0, 0], h) \
        + params["conv3_b"][None, :, None, None]
    h = jnp.maximum(h, 0.0)
    return h.mean(axis=(2, 3))


def _run_case(key, B, n_layers, n_parts, hidden):
    kx, kp = jax.random.split(key)
    x = jax.random.normal(kx, (B, n_layers, n_parts, hidden), jnp.float32)
    params = init_params(kp, n_layers, n_parts, hidden)
    out = jax.block_until_ready(plug_cnn_encoder_forward(x, params))
    ref = jax.block_until_ready(reference_forward(x, params))
    assert out.shape == ref.shape, (out.shape, ref.shape)
    # bf16 MXU operands with f32 accumulation -> slightly relaxed tolerance.
    np.testing.assert_allclose(np.asarray(out), np.asarray(ref),
                               rtol=2e-2, atol=5e-3)


if __name__ == "__main__":
    key = jax.random.PRNGKey(0)
    k1, k2 = jax.random.split(key)

    # Main case: batch=2, n_layers=4 (conv in-channels), n_parts=4 (H), hidden=16 (W)
    # -> conv kernel (3, 5), odd height.
    _run_case(k1, B=2, n_layers=4, n_parts=4, hidden=16)

    # Even-kernel-height case: n_parts=2 -> conv kernel (2, 5), Ho = H + 1.
    _run_case(k2, B=2, n_layers=4, n_parts=2, hidden=16)

    print("KERNEL_OK")
</pallas_src>

<mosaic_0001>
module attributes {stable_mosaic.version = 11 : i64} {
  func.func @kernel(%arg0: i32, %arg1: memref<4x128xf32, #tpu.memory_space<vmem>>, %arg2: memref<2x128xf32, #tpu.memory_space<vmem>>, %arg3: memref<8x128xf32, #tpu.memory_space<vmem>>, %arg4: memref<15x128xf32, #tpu.memory_space<vmem>>, %arg5: memref<16x60xbf16, #tpu.memory_space<vmem>>, %arg6: memref<16x1xf32, #tpu.memory_space<vmem>>, %arg7: memref<32x16xbf16, #tpu.memory_space<vmem>>, %arg8: memref<32x1xf32, #tpu.memory_space<vmem>>, %arg9: memref<32x32xbf16, #tpu.memory_space<vmem>>, %arg10: memref<32x1xf32, #tpu.memory_space<vmem>>, %arg11: memref<128x2xbf16, #tpu.memory_space<vmem>>, %arg12: memref<32x2xf32, #tpu.memory_space<vmem>>, %arg13: memref<4x384xf32, #tpu.memory_space<vmem>>, %arg14: memref<8x384xf32, #tpu.memory_space<vmem>>, %arg15: memref<60x128xf32, #tpu.memory_space<vmem>>) attributes {dimension_semantics = [#tpu.dimension_semantics<parallel>], iteration_bounds = array<i64: 1>, scalar_prefetch = 0 : i64, scratch_operands = 3 : i64, tpu.core_type = #tpu.core_type<tc>, window_params = [{transform_indices = @transform_0, window_bounds = array<i64: 4, 128>}, {pipeline_mode = #tpu.pipeline_mode<synchronous>, transform_indices = @transform_1, window_bounds = array<i64: 2, 128>}, {pipeline_mode = #tpu.pipeline_mode<synchronous>, transform_indices = @transform_2, window_bounds = array<i64: 8, 128>}, {pipeline_mode = #tpu.pipeline_mode<synchronous>, transform_indices = @transform_3, window_bounds = array<i64: 15, 128>}, {pipeline_mode = #tpu.pipeline_mode<synchronous>, transform_indices = @transform_4, window_bounds = array<i64: 16, 60>}, {pipeline_mode = #tpu.pipeline_mode<synchronous>, transform_indices = @transform_5, window_bounds = array<i64: 16, 1>}, {pipeline_mode = #tpu.pipeline_mode<synchronous>, transform_indices = @transform_6, window_bounds = array<i64: 32, 16>}, {pipeline_mode = #tpu.pipeline_mode<synchronous>, transform_indices = @transform_7, window_bounds = array<i64: 32, 1>}, {pipeline_mode = #tpu.pipeline_mode<synchronous>, transform_indices = @transform_8, window_bounds = array<i64: 32, 32>}, {pipeline_mode = #tpu.pipeline_mode<synchronous>, transform_indices = @transform_9, window_bounds = array<i64: 32, 1>}, {pipeline_mode = #tpu.pipeline_mode<synchronous>, transform_indices = @transform_10, window_bounds = array<i64: 128, 2>}, {transform_indices = @transform_11, window_bounds = array<i64: 32, 2>}]} {
    %cst = arith.constant 0.000000e+00 : f32
    %0 = vector.broadcast %cst : f32 to vector<4x128xf32>
    %c0 = arith.constant 0 : index
    %c0_0 = arith.constant 0 : index
    %1 = vector.load %arg13[%c0, %c0_0] : memref<4x384xf32, #tpu.memory_space<vmem>>, vector<4x128xf32>
    tpu.vector_store %arg13[%c0, %c0_0], %0 {strides = array<i32>} : memref<4x384xf32, #tpu.memory_space<vmem>>, vector<4x128xf32>,
    %c0_1 = arith.constant 0 : index
    %c256 = arith.constant 256 : index
    %2 = vector.load %arg13[%c0_1, %c256] : memref<4x384xf32, #tpu.memory_space<vmem>>, vector<4x128xf32>
    %c0_2 = arith.constant 0 : index
    %c256_3 = arith.constant 256 : index
    %3 = vector.load %arg13[%c0_2, %c256_3] : memref<4x384xf32, #tpu.memory_space<vmem>>, vector<4x128xf32>
    tpu.vector_store %arg13[%c0_2, %c256_3], %2 {strides = array<i32>} : memref<4x384xf32, #tpu.memory_space<vmem>>, vector<4x128xf32>,
    %cst_4 = arith.constant 0.000000e+00 : f32
    %4 = vector.broadcast %cst_4 : f32 to vector<4x128xf32>
    %c0_5 = arith.constant 0 : index
    %c256_6 = arith.constant 256 : index
    %5 = vector.load %arg13[%c0_5, %c256_6] : memref<4x384xf32, #tpu.memory_space<vmem>>, vector<4x128xf32>
    tpu.vector_store %arg13[%c0_5, %c256_6], %4 {strides = array<i32>} : memref<4x384xf32, #tpu.memory_space<vmem>>, vector<4x128xf32>,
    %cst_7 = arith.constant 0.000000e+00 : f32
    %6 = vector.broadcast %cst_7 : f32 to vector<8x128xf32>
    %c0_8 = arith.constant 0 : index
    %c0_9 = arith.constant 0 : index
    %7 = vector.load %arg14[%c0_8, %c0_9] : memref<8x384xf32, #tpu.memory_space<vmem>>, vector<8x128xf32>
    tpu.vector_store %arg14[%c0_8, %c0_9], %6 {strides = array<i32>} : memref<8x384xf32, #tpu.memory_space<vmem>>, vector<8x128xf32>,
    %cst_10 = arith.constant 0.000000e+00 : f32
    %8 = vector.broadcast %cst_10 : f32 to vector<8x128xf32>
    %c0_11 = arith.constant 0 : index
    %c256_12 = arith.constant 256 : index
    %9 = vector.load %arg14[%c0_11, %c256_12] : memref<8x384xf32, #tpu.memory_space<vmem>>, vector<8x128xf32>
    tpu.vector_store %arg14[%c0_11, %c256_12], %8 {strides = array<i32>} : memref<8x384xf32, #tpu.memory_space<vmem>>, vector<8x128xf32>,
    %c0_13 = arith.constant 0 : index
    %c0_14 = arith.constant 0 : index
    %10 = vector.load %arg1[%c0_13, %c0_14] : memref<4x128xf32, #tpu.memory_space<vmem>>, vector<4x128xf32>
    %c0_15 = arith.constant 0 : index
    %c128 = arith.constant 128 : index
    %11 = vector.load %arg14[%c0_15, %c128] : memref<8x384xf32, #tpu.memory_space<vmem>>, vector<4x128xf32>
    tpu.vector_store %arg14[%c0_15, %c128], %10 {strides = array<i32>} : memref<8x384xf32, #tpu.memory_space<vmem>>, vector<4x128xf32>,
    %12 = arith.mulf %10, %10 : vector<4x128xf32>
    %c4 = arith.constant 4 : index
    %c128_16 = arith.constant 128 : index
    %13 = vector.load %arg14[%c4, %c128_16] : memref<8x384xf32, #tpu.memory_space<vmem>>, vector<4x128xf32>
    tpu.vector_store %arg14[%c4, %c128_16], %12 {strides = array<i32>} : memref<8x384xf32, #tpu.memory_space<vmem>>, vector<4x128xf32>,
    %c0_17 = arith.constant 0 : index
    %c128_18 = arith.constant 128 : index
    %14 = vector.load %arg14[%c0_17, %c128_18] : memref<8x384xf32, #tpu.memory_space<vmem>>, vector<8x128xf32>
    %c0_19 = arith.constant 0 : index
    %c129 = arith.constant 129 : index
    %15 = vector.load %arg14[%c0_19, %c129] : memref<8x384xf32, #tpu.memory_space<vmem>>, vector<8x128xf32>
    %c0_20 = arith.constant 0 : index
    %c0_21 = arith.constant 0 : index
    %16 = vector.load %arg3[%c0_20, %c0_21] : memref<8x128xf32, #tpu.memory_space<vmem>>, vector<1x128xf32>
    %17 = vector.broadcast %16 : vector<1x128xf32> to vector<8x128xf32>
    %18 = arith.mulf %17, %15 : vector<8x128xf32>
    %19 = arith.addf %14, %18 : vector<8x128xf32>
    %c0_22 = arith.constant 0 : index
    %c128_23 = arith.constant 128 : index
    %20 = vector.load %arg14[%c0_22, %c128_23] : memref<8x384xf32, #tpu.memory_space<vmem>>, vector<8x128xf32>
    tpu.vector_store %arg14[%c0_22, %c128_23], %19 {strides = array<i32>} : memref<8x384xf32, #tpu.memory_space<vmem>>, vector<8x128xf32>,
    %c0_24 = arith.constant 0 : index
    %c128_25 = arith.constant 128 : index
    %21 = vector.load %arg14[%c0_24, %c128_25] : memref<8x384xf32, #tpu.memory_space<vmem>>, vector<8x128xf32>
    %c0_26 = arith.constant 0 : index
    %c130 = arith.constant 130 : index
    %22 = vector.load %arg14[%c0_26, %c130] : memref<8x384xf32, #tpu.memory_space<vmem>>, vector<8x128xf32>
    %c1 = arith.constant 1 : index
    %c0_27 = arith.constant 0 : index
    %23 = vector.load %arg3[%c1, %c0_27] : memref<8x128xf32, #tpu.memory_space<vmem>>, vector<1x128xf32>
    %24 = vector.broadcast %23 : vector<1x128xf32> to vector<8x128xf32>
    %25 = arith.mulf %24, %22 : vector<8x128xf32>
    %26 = arith.addf %21, %25 : vector<8x128xf32>
    %c0_28 = arith.constant 0 : index
    %c128_29 = arith.constant 128 : index
    %27 = vector.load %arg14[%c0_28, %c128_29] : memref<8x384xf32, #tpu.memory_space<vmem>>, vector<8x128xf32>
    tpu.vector_store %arg14[%c0_28, %c128_29], %26 {strides = array<i32>} : memref<8x384xf32, #tpu.memory_space<vmem>>, vector<8x128xf32>,
    %c0_30 = arith.constant 0 : index
    %c128_31 = arith.constant 128 : index
    %28 = vector.load %arg14[%c0_30, %c128_31] : memref<8x384xf32, #tpu.memory_space<vmem>>, vector<8x128xf32>
    %c0_32 = arith.constant 0 : index
    %c132 = arith.constant 132 : index
    %29 = vector.load %arg14[%c0_32, %c132] : memref<8x384xf32, #tpu.memory_space<vmem>>, vector<8x128xf32>
    %c2 = arith.constant 2 : index
    %c0_33 = arith.constant 0 : index
    %30 = vector.load %arg3[%c2, %c0_33] : memref<8x128xf32, #tpu.memory_space<vmem>>, vector<1x128xf32>
    %31 = vector.broadcast %30 : vector<1x128xf32> to vector<8x128xf32>
    %32 = arith.mulf %31, %29 : vector<8x128xf32>
    %33 = arith.addf %28, %32 : vector<8x128xf32>
    %c0_34 = arith.constant 0 : index
    %c128_35 = arith.constant 128 : index
    %34 = vector.load %arg14[%c0_34, %c128_35] : memref<8x384xf32, #tpu.memory_space<vmem>>, vector<8x128xf32>
    tpu.vector_store %arg14[%c0_34, %c128_35], %33 {strides = array<i32>} : memref<8x384xf32, #tpu.memory_space<vmem>>, vector<8x128xf32>,
    %c0_36 = arith.constant 0 : index
    %c128_37 = arith.constant 128 : index
    %35 = vector.load %arg14[%c0_36, %c128_37] : memref<8x384xf32, #tpu.memory_space<vmem>>, vector<8x128xf32>
    %c0_38 = arith.constant 0 : index
    %c136 = arith.constant 136 : index
    %36 = vector.load %arg14[%c0_38, %c136] : memref<8x384xf32, #tpu.memory_space<vmem>>, vector<8x128xf32>
    %c3 = arith.constant 3 : index
    %c0_39 = arith.constant 0 : index
    %37 = vector.load %arg3[%c3, %c0_39] : memref<8x128xf32, #tpu.memory_space<vmem>>, vector<1x128xf32>
    %38 = vector.broadcast %37 : vector<1x128xf32> to vector<8x128xf32>
    %39 = arith.mulf %38, %36 : vector<8x128xf32>
    %40 = arith.addf %35, %39 : vector<8x128xf32>
    %c0_40 = arith.constant 0 : index
    %c128_41 = arith.constant 128 : index
    %41 = vector.load %arg14[%c0_40, %c128_41] : memref<8x384xf32, #tpu.memory_space<vmem>>, vector<8x128xf32>
    tpu.vector_store %arg14[%c0_40, %c128_41], %40 {strides = array<i32>} : memref<8x384xf32, #tpu.memory_space<vmem>>, vector<8x128xf32>,
    %c0_42 = arith.constant 0 : index
    %c128_43 = arith.constant 128 : index
    %42 = vector.load %arg14[%c0_42, %c128_43] : memref<8x384xf32, #tpu.memory_space<vmem>>, vector<8x128xf32>
    %c0_44 = arith.constant 0 : index
    %c127 = arith.constant 127 : index
    %43 = vector.load %arg14[%c0_44, %c127] : memref<8x384xf32, #tpu.memory_space<vmem>>, vector<8x128xf32>
    %c4_45 = arith.constant 4 : index
    %c0_46 = arith.constant 0 : index
    %44 = vector.load %arg3[%c4_45, %c0_46] : memref<8x128xf32, #tpu.memory_space<vmem>>, vector<1x128xf32>
    %45 = arith.subf %43, %42 : vector<8x128xf32>
    %46 = vector.broadcast %44 : vector<1x128xf32> to vector<8x128xf32>
    %47 = arith.mulf %46, %45 : vector<8x128xf32>
    %48 = arith.addf %42, %47 : vector<8x128xf32>
    %c0_47 = arith.constant 0 : index
    %c128_48 = arith.constant 128 : index
    %49 = vector.load %arg14[%c0_47, %c128_48] : memref<8x384xf32, #tpu.memory_space<vmem>>, vector<8x128xf32>
    tpu.vector_store %arg14[%c0_47, %c128_48], %48 {strides = array<i32>} : memref<8x384xf32, #tpu.memory_space<vmem>>, vector<8x128xf32>,
    %c0_49 = arith.constant 0 : index
    %c128_50 = arith.constant 128 : index
    %50 = vector.load %arg14[%c0_49, %c128_50] : memref<8x384xf32, #tpu.memory_space<vmem>>, vector<8x128xf32>
    %c0_51 = arith.constant 0 : index
    %c126 = arith.constant 126 : index
    %51 = vector.load %arg14[%c0_51, %c126] : memref<8x384xf32, #tpu.memory_space<vmem>>, vector<8x128xf32>
    %c5 = arith.constant 5 : index
    %c0_52 = arith.constant 0 : index
    %52 = vector.load %arg3[%c5, %c0_52] : memref<8x128xf32, #tpu.memory_space<vmem>>, vector<1x128xf32>
    %53 = arith.subf %51, %50 : vector<8x128xf32>
    %54 = vector.broadcast %52 : vector<1x128xf32> to vector<8x128xf32>
    %55 = arith.mulf %54, %53 : vector<8x128xf32>
    %56 = arith.addf %50, %55 : vector<8x128xf32>
    %c0_53 = arith.constant 0 : index
    %c128_54 = arith.constant 128 : index
    %57 = vector.load %arg14[%c0_53, %c128_54] : memref<8x384xf32, #tpu.memory_space<vmem>>, vector<8x128xf32>
    tpu.vector_store %arg14[%c0_53, %c128_54], %56 {strides = array<i32>} : memref<8x384xf32, #tpu.memory_space<vmem>>, vector<8x128xf32>,
    %c0_55 = arith.constant 0 : index
    %c128_56 = arith.constant 128 : index
    %58 = vector.load %arg14[%c0_55, %c128_56] : memref<8x384xf32, #tpu.memory_space<vmem>>, vector<8x128xf32>
    %c0_57 = arith.constant 0 : index
    %c124 = arith.constant 124 : index
    %59 = vector.load %arg14[%c0_57, %c124] : memref<8x384xf32, #tpu.memory_space<vmem>>, vector<8x128xf32>
    %c6 = arith.constant 6 : index
    %c0_58 = arith.constant 0 : index
    %60 = vector.load %arg3[%c6, %c0_58] : memref<8x128xf32, #tpu.memory_space<vmem>>, vector<1x128xf32>
    %61 = arith.subf %59, %58 : vector<8x128xf32>
    %62 = vector.broadcast %60 : vector<1x128xf32> to vector<8x128xf32>
    %63 = arith.mulf %62, %61 : vector<8x128xf32>
    %64 = arith.addf %58, %63 : vector<8x128xf32>
    %c0_59 = arith.constant 0 : index
    %c128_60 = arith.constant 128 : index
    %65 = vector.load %arg14[%c0_59, %c128_60] : memref<8x384xf32, #tpu.memory_space<vmem>>, vector<8x128xf32>
    tpu.vector_store %arg14[%c0_59, %c128_60], %64 {strides = array<i32>} : memref<8x384xf32, #tpu.memory_space<vmem>>, vector<8x128xf32>,
    %c0_61 = arith.constant 0 : index
    %c128_62 = arith.constant 128 : index
    %66 = vector.load %arg14[%c0_61, %c128_62] : memref<8x384xf32, #tpu.memory_space<vmem>>, vector<8x128xf32>
    %c0_63 = arith.constant 0 : index
    %c120 = arith.constant 120 : index
    %67 = vector.load %arg14[%c0_63, %c120] : memref<8x384xf32, #tpu.memory_space<vmem>>, vector<8x128xf32>
    %c7 = arith.constant 7 : index
    %c0_64 = arith.constant 0 : index
    %68 = vector.load %arg3[%c7, %c0_64] : memref<8x128xf32, #tpu.memory_space<vmem>>, vector<1x128xf32>
    %69 = arith.subf %67, %66 : vector<8x128xf32>
    %70 = vector.broadcast %68 : vector<1x128xf32> to vector<8x128xf32>
    %71 = arith.mulf %70, %69 : vector<8x128xf32>
    %72 = arith.addf %66, %71 : vector<8x128xf32>
    %c0_65 = arith.constant 0 : index
    %c128_66 = arith.constant 128 : index
    %73 = vector.load %arg14[%c0_65, %c128_66] : memref<8x384xf32, #tpu.memory_space<vmem>>, vector<8x128xf32>
    tpu.vector_store %arg14[%c0_65, %c128_66], %72 {strides = array<i32>} : memref<8x384xf32, #tpu.memory_space<vmem>>, vector<8x128xf32>,
    %c0_67 = arith.constant 0 : index
    %c128_68 = arith.constant 128 : index
    %74 = vector.load %arg14[%c0_67, %c128_68] : memref<8x384xf32, #tpu.memory_space<vmem>>, vector<4x128xf32>
    %cst_69 = arith.constant 6.250000e-02 : f32
    %75 = vector.broadcast %cst_69 : f32 to vector<4x128xf32>
    %76 = arith.mulf %74, %75 : vector<4x128xf32>
    %c4_70 = arith.constant 4 : index
    %c128_71 = arith.constant 128 : index
    %77 = vector.load %arg14[%c4_70, %c128_71] : memref<8x384xf32, #tpu.memory_space<vmem>>, vector<4x128xf32>
    %cst_72 = arith.constant 6.250000e-02 : f32
    %78 = vector.broadcast %cst_72 : f32 to vector<4x128xf32>
    %79 = arith.mulf %77, %78 : vector<4x128xf32>
    %80 = arith.mulf %76, %76 : vector<4x128xf32>
    %81 = arith.subf %79, %80 : vector<4x128xf32>
    %cst_73 = arith.constant 9.99999974E-6 : f32
    %82 = vector.broadcast %cst_73 : f32 to vector<4x128xf32>
    %83 = arith.addf %81, %82 : vector<4x128xf32>
    %84 = math.rsqrt %83 : vector<4x128xf32>
    %85 = arith.subf %10, %76 : vector<4x128xf32>
    %86 = arith.mulf %85, %84 : vector<4x128xf32>
    %c0_74 = arith.constant 0 : index
    %c0_75 = arith.constant 0 : index
    %87 = vector.load %arg2[%c0_74, %c0_75] : memref<2x128xf32, #tpu.memory_space<vmem>>, vector<1x128xf32>
    %88 = vector.broadcast %87 : vector<1x128xf32> to vector<4x128xf32>
    %89 = arith.mulf %86, %88 : vector<4x128xf32>
    %c1_76 = arith.constant 1 : index
    %c0_77 = arith.constant 0 : index
    %90 = vector.load %arg2[%c1_76, %c0_77] : memref<2x128xf32, #tpu.memory_space<vmem>>, vector<1x128xf32>
    %91 = vector.broadcast %90 : vector<1x128xf32> to vector<4x128xf32>
    %92 = arith.addf %89, %91 : vector<4x128xf32>
    %c0_78 = arith.constant 0 : index
    %c128_79 = arith.constant 128 : index
    %93 = vector.load %arg13[%c0_78, %c128_79] : memref<4x384xf32, #tpu.memory_space<vmem>>, vector<4x128xf32>
    tpu.vector_store %arg13[%c0_78, %c128_79], %92 {strides = array<i32>} : memref<4x384xf32, #tpu.memory_space<vmem>>, vector<4x128xf32>,
    %c0_80 = arith.constant 0 : index
    %c110 = arith.constant 110 : index
    %94 = vector.load %arg13[%c0_80, %c110] : memref<4x384xf32, #tpu.memory_space<vmem>>, vector<4x128xf32>
    %c0_81 = arith.constant 0 : index
    %c0_82 = arith.constant 0 : index
    %95 = vector.load %arg4[%c0_81, %c0_82] : memref<15x128xf32, #tpu.memory_space<vmem>>, vector<1x128xf32>
    %96 = vector.broadcast %95 : vector<1x128xf32> to vector<4x128xf32>
    %97 = arith.mulf %94, %96 : vector<4x128xf32>
    %c0_83 = arith.constant 0 : index
    %c0_84 = arith.constant 0 : index
    %98 = vector.load %arg15[%c0_83, %c0_84] : memref<60x128xf32, #tpu.memory_space<vmem>>, vector<4x128xf32>
    tpu.vector_store %arg15[%c0_83, %c0_84], %97 {strides = array<i32>} : memref<60x128xf32, #tpu.memory_space<vmem>>, vector<4x128xf32>,
    %c0_85 = arith.constant 0 : index
    %c111 = arith.constant 111 : index
    %99 = vector.load %arg13[%c0_85, %c111] : memref<4x384xf32, #tpu.memory_space<vmem>>, vector<4x128xf32>
    %c1_86 = arith.constant 1 : index
    %c0_87 = arith.constant 0 : index
    %100 = vector.load %arg4[%c1_86, %c0_87] : memref<15x128xf32, #tpu.memory_space<vmem>>, vector<1x128xf32>
    %101 = vector.broadcast %100 : vector<1x128xf32> to vector<4x128xf32>
    %102 = arith.mulf %99, %101 : vector<4x128xf32>
    %c4_88 = arith.constant 4 : index
    %c0_89 = arith.constant 0 : index
    %103 = vector.load %arg15[%c4_88, %c0_89] : memref<60x128xf32, #tpu.memory_space<vmem>>, vector<4x128xf32>
    tpu.vector_store %arg15[%c4_88, %c0_89], %102 {strides = array<i32>} : memref<60x128xf32, #tpu.memory_space<vmem>>, vector<4x128xf32>,
    %c0_90 = arith.constant 0 : index
    %c112 = arith.constant 112 : index
    %104 = vector.load %arg13[%c0_90, %c112] : memref<4x384xf32, #tpu.memory_space<vmem>>, vector<4x128xf32>
    %c2_91 = arith.constant 2 : index
    %c0_92 = arith.constant 0 : index
    %105 = vector.load %arg4[%c2_91, %c0_92] : memref<15x128xf32, #tpu.memory_space<vmem>>, vector<1x128xf32>
    %106 = vector.broadcast %105 : vector<1x128xf32> to vector<4x128xf32>
    %107 = arith.mulf %104, %106 : vector<4x128xf32>
    %c8 = arith.constant 8 : index
    %c0_93 = arith.constant 0 : index
    %108 = vector.load %arg15[%c8, %c0_93] : memref<60x128xf32, #tpu.memory_space<vmem>>, vector<4x128xf32>
    tpu.vector_store %arg15[%c8, %c0_93], %107 {strides = array<i32>} : memref<60x128xf32, #tpu.memory_space<vmem>>, vector<4x128xf32>,
    %c0_94 = arith.constant 0 : index
    %c113 = arith.constant 113 : index
    %109 = vector.load %arg13[%c0_94, %c113] : memref<4x384xf32, #tpu.memory_space<vmem>>, vector<4x128xf32>
    %c3_95 = arith.constant 3 : index
    %c0_96 = arith.constant 0 : index
    %110 = vector.load %arg4[%c3_95, %c0_96] : memref<15x128xf32, #tpu.memory_space<vmem>>, vector<1x128xf32>
    %111 = vector.broadcast %110 : vector<1x128xf32> to vector<4x128xf32>
    %112 = arith.mulf %109, %111 : vector<4x128xf32>
    %c12 = arith.constant 12 : index
    %c0_97 = arith.constant 0 : index
    %113 = vector.load %arg15[%c12, %c0_97] : memref<60x128xf32, #tpu.memory_space<vmem>>, vector<4x128xf32>
    tpu.vector_store %arg15[%c12, %c0_97], %112 {strides = array<i32>} : memref<60x128xf32, #tpu.memory_space<vmem>>, vector<4x128xf32>,
    %c0_98 = arith.constant 0 : index
    %c114 = arith.constant 114 : index
    %114 = vector.load %arg13[%c0_98, %c114] : memref<4x384xf32, #tpu.memory_space<vmem>>, vector<4x128xf32>
    %c4_99 = arith.constant 4 : index
    %c0_100 = arith.constant 0 : index
    %115 = vector.load %arg4[%c4_99, %c0_100] : memref<15x128xf32, #tpu.memory_space<vmem>>, vector<1x128xf32>
    %116 = vector.broadcast %115 : vector<1x128xf32> to vector<4x128xf32>
    %117 = arith.mulf %114, %116 : vector<4x128xf32>
    %c16 = arith.constant 16 : index
    %c0_101 = arith.constant 0 : index
    %118 = vector.load %arg15[%c16, %c0_101] : memref<60x128xf32, #tpu.memory_space<vmem>>, vector<4x128xf32>
    tpu.vector_store %arg15[%c16, %c0_101], %117 {strides = array<i32>} : memref<60x128xf32, #tpu.memory_space<vmem>>, vector<4x128xf32>,
    %c0_102 = arith.constant 0 : index
    %c126_103 = arith.constant 126 : index
    %119 = vector.load %arg13[%c0_102, %c126_103] : memref<4x384xf32, #tpu.memory_space<vmem>>, vector<4x128xf32>
    %c5_104 = arith.constant 5 : index
    %c0_105 = arith.constant 0 : index
    %120 = vector.load %arg4[%c5_104, %c0_105] : memref<15x128xf32, #tpu.memory_space<vmem>>, vector<1x128xf32>
    %121 = vector.broadcast %120 : vector<1x128xf32> to vector<4x128xf32>
    %122 = arith.mulf %119, %121 : vector<4x128xf32>
    %c20 = arith.constant 20 : index
    %c0_106 = arith.constant 0 : index
    %123 = vector.load %arg15[%c20, %c0_106] : memref<60x128xf32, #tpu.memory_space<vmem>>, vector<4x128xf32>
    tpu.vector_store %arg15[%c20, %c0_106], %122 {strides = array<i32>} : memref<60x128xf32, #tpu.memory_space<vmem>>, vector<4x128xf32>,
    %c0_107 = arith.constant 0 : index
    %c127_108 = arith.constant 127 : index
    %124 = vector.load %arg13[%c0_107, %c127_108] : memref<4x384xf32, #tpu.memory_space<vmem>>, vector<4x128xf32>
    %c6_109 = arith.constant 6 : index
    %c0_110 = arith.constant 0 : index
    %125 = vector.load %arg4[%c6_109, %c0_110] : memref<15x128xf32, #tpu.memory_space<vmem>>, vector<1x128xf32>
    %126 = vector.broadcast %125 : vector<1x128xf32> to vector<4x128xf32>
    %127 = arith.mulf %124, %126 : vector<4x128xf32>
    %c24 = arith.constant 24 : index
    %c0_111 = arith.constant 0 : index
    %128 = vector.load %arg15[%c24, %c0_111] : memref<60x128xf32, #tpu.memory_space<vmem>>, vector<4x128xf32>
    tpu.vector_store %arg15[%c24, %c0_111], %127 {strides = array<i32>} : memref<60x128xf32, #tpu.memory_space<vmem>>, vector<4x128xf32>,
    %c0_112 = arith.constant 0 : index
    %c128_113 = arith.constant 128 : index
    %129 = vector.load %arg13[%c0_112, %c128_113] : memref<4x384xf32, #tpu.memory_space<vmem>>, vector<4x128xf32>
    %c7_114 = arith.constant 7 : index
    %c0_115 = arith.constant 0 : index
    %130 = vector.load %arg4[%c7_114, %c0_115] : memref<15x128xf32, #tpu.memory_space<vmem>>, vector<1x128xf32>
    %131 = vector.broadcast %130 : vector<1x128xf32> to vector<4x128xf32>
    %132 = arith.mulf %129, %131 : vector<4x128xf32>
    %c28 = arith.constant 28 : index
    %c0_116 = arith.constant 0 : index
    %133 = vector.load %arg15[%c28, %c0_116] : memref<60x128xf32, #tpu.memory_space<vmem>>, vector<4x128xf32>
    tpu.vector_store %arg15[%c28, %c0_116], %132 {strides = array<i32>} : memref<60x128xf32, #tpu.memory_space<vmem>>, vector<4x128xf32>,
    %c0_117 = arith.constant 0 : index
    %c129_118 = arith.constant 129 : index
    %134 = vector.load %arg13[%c0_117, %c129_118] : memref<4x384xf32, #tpu.memory_space<vmem>>, vector<4x128xf32>
    %c8_119 = arith.constant 8 : index
    %c0_120 = arith.constant 0 : index
    %135 = vector.load %arg4[%c8_119, %c0_120] : memref<15x128xf32, #tpu.memory_space<vmem>>, vector<1x128xf32>
    %136 = vector.broadcast %135 : vector<1x128xf32> to vector<4x128xf32>
    %137 = arith.mulf %134, %136 : vector<4x128xf32>
    %c32 = arith.constant 32 : index
    %c0_121 = arith.constant 0 : index
    %138 = vector.load %arg15[%c32, %c0_121] : memref<60x128xf32, #tpu.memory_space<vmem>>, vector<4x128xf32>
    tpu.vector_store %arg15[%c32, %c0_121], %137 {strides = array<i32>} : memref<60x128xf32, #tpu.memory_space<vmem>>, vector<4x128xf32>,
    %c0_122 = arith.constant 0 : index
    %c130_123 = arith.constant 130 : index
    %139 = vector.load %arg13[%c0_122, %c130_123] : memref<4x384xf32, #tpu.memory_space<vmem>>, vector<4x128xf32>
    %c9 = arith.constant 9 : index
    %c0_124 = arith.constant 0 : index
    %140 = vector.load %arg4[%c9, %c0_124] : memref<15x128xf32, #tpu.memory_space<vmem>>, vector<1x128xf32>
    %141 = vector.broadcast %140 : vector<1x128xf32> to vector<4x128xf32>
    %142 = arith.mulf %139, %141 : vector<4x128xf32>
    %c36 = arith.constant 36 : index
    %c0_125 = arith.constant 0 : index
    %143 = vector.load %arg15[%c36, %c0_125] : memref<60x128xf32, #tpu.memory_space<vmem>>, vector<4x128xf32>
    tpu.vector_store %arg15[%c36, %c0_125], %142 {strides = array<i32>} : memref<60x128xf32, #tpu.memory_space<vmem>>, vector<4x128xf32>,
    %c0_126 = arith.constant 0 : index
    %c142 = arith.constant 142 : index
    %144 = vector.load %arg13[%c0_126, %c142] : memref<4x384xf32, #tpu.memory_space<vmem>>, vector<4x128xf32>
    %c10 = arith.constant 10 : index
    %c0_127 = arith.constant 0 : index
    %145 = vector.load %arg4[%c10, %c0_127] : memref<15x128xf32, #tpu.memory_space<vmem>>, vector<1x128xf32>
    %146 = vector.broadcast %145 : vector<1x128xf32> to vector<4x128xf32>
    %147 = arith.mulf %144, %146 : vector<4x128xf32>
    %c40 = arith.constant 40 : index
    %c0_128 = arith.constant 0 : index
    %148 = vector.load %arg15[%c40, %c0_128] : memref<60x128xf32, #tpu.memory_space<vmem>>, vector<4x128xf32>
    tpu.vector_store %arg15[%c40, %c0_128], %147 {strides = array<i32>} : memref<60x128xf32, #tpu.memory_space<vmem>>, vector<4x128xf32>,
    %c0_129 = arith.constant 0 : index
    %c143 = arith.constant 143 : index
    %149 = vector.load %arg13[%c0_129, %c143] : memref<4x384xf32, #tpu.memory_space<vmem>>, vector<4x128xf32>
    %c11 = arith.constant 11 : index
    %c0_130 = arith.constant 0 : index
    %150 = vector.load %arg4[%c11, %c0_130] : memref<15x128xf32, #tpu.memory_space<vmem>>, vector<1x128xf32>
    %151 = vector.broadcast %150 : vector<1x128xf32> to vector<4x128xf32>
    %152 = arith.mulf %149, %151 : vector<4x128xf32>
    %c44 = arith.constant 44 : index
    %c0_131 = arith.constant 0 : index
    %153 = vector.load %arg15[%c44, %c0_131] : memref<60x128xf32, #tpu.memory_space<vmem>>, vector<4x128xf32>
    tpu.vector_store %arg15[%c44, %c0_131], %152 {strides = array<i32>} : memref<60x128xf32, #tpu.memory_space<vmem>>, vector<4x128xf32>,
    %c0_132 = arith.constant 0 : index
    %c144 = arith.constant 144 : index
    %154 = vector.load %arg13[%c0_132, %c144] : memref<4x384xf32, #tpu.memory_space<vmem>>, vector<4x128xf32>
    %c12_133 = arith.constant 12 : index
    %c0_134 = arith.constant 0 : index
    %155 = vector.load %arg4[%c12_133, %c0_134] : memref<15x128xf32, #tpu.memory_space<vmem>>, vector<1x128xf32>
    %156 = vector.broadcast %155 : vector<1x128xf32> to vector<4x128xf32>
    %157 = arith.mulf %154, %156 : vector<4x128xf32>
    %c48 = arith.constant 48 : index
    %c0_135 = arith.constant 0 : index
    %158 = vector.load %arg15[%c48, %c0_135] : memref<60x128xf32, #tpu.memory_space<vmem>>, vector<4x128xf32>
    tpu.vector_store %arg15[%c48, %c0_135], %157 {strides = array<i32>} : memref<60x128xf32, #tpu.memory_space<vmem>>, vector<4x128xf32>,
    %c0_136 = arith.constant 0 : index
    %c145 = arith.constant 145 : index
    %159 = vector.load %arg13[%c0_136, %c145] : memref<4x384xf32, #tpu.memory_space<vmem>>, vector<4x128xf32>
    %c13 = arith.constant 13 : index
    %c0_137 = arith.constant 0 : index
    %160 = vector.load %arg4[%c13, %c0_137] : memref<15x128xf32, #tpu.memory_space<vmem>>, vector<1x128xf32>
    %161 = vector.broadcast %160 : vector<1x128xf32> to vector<4x128xf32>
    %162 = arith.mulf %159, %161 : vector<4x128xf32>
    %c52 = arith.constant 52 : index
    %c0_138 = arith.constant 0 : index
    %163 = vector.load %arg15[%c52, %c0_138] : memref<60x128xf32, #tpu.memory_space<vmem>>, vector<4x128xf32>
    tpu.vector_store %arg15[%c52, %c0_138], %162 {strides = array<i32>} : memref<60x128xf32, #tpu.memory_space<vmem>>, vector<4x128xf32>,
    %c0_139 = arith.constant 0 : index
    %c146 = arith.constant 146 : index
    %164 = vector.load %arg13[%c0_139, %c146] : memref<4x384xf32, #tpu.memory_space<vmem>>, vector<4x128xf32>
    %c14 = arith.constant 14 : index
    %c0_140 = arith.constant 0 : index
    %165 = vector.load %arg4[%c14, %c0_140] : memref<15x128xf32, #tpu.memory_space<vmem>>, vector<1x128xf32>
    %166 = vector.broadcast %165 : vector<1x128xf32> to vector<4x128xf32>
    %167 = arith.mulf %164, %166 : vector<4x128xf32>
    %c56 = arith.constant 56 : index
    %c0_141 = arith.constant 0 : index
    %168 = vector.load %arg15[%c56, %c0_141] : memref<60x128xf32, #tpu.memory_space<vmem>>, vector<4x128xf32>
    tpu.vector_store %arg15[%c56, %c0_141], %167 {strides = array<i32>} : memref<60x128xf32, #tpu.memory_space<vmem>>, vector<4x128xf32>,
    %c0_142 = arith.constant 0 : index
    %c0_143 = arith.constant 0 : index
    %169 = vector.load %arg5[%c0_142, %c0_143] : memref<16x60xbf16, #tpu.memory_space<vmem>>, vector<16x60xbf16>
    %c0_144 = arith.constant 0 : index
    %c0_145 = arith.constant 0 : index
    %170 = vector.load %arg15[%c0_144, %c0_145] : memref<60x128xf32, #tpu.memory_space<vmem>>, vector<60x128xf32>
    %171 = arith.truncf %170 : vector<60x128xf32> to vector<60x128xbf16>
    %cst_146 = arith.constant dense<0.000000e+00> : vector<16x128xf32>
    %172 = tpu.matmul %169, %171, %cst_146 {dimension_numbers = #tpu.dot_dimension_numbers<[1], [0], [0], [1], [0, 0, 1, 1], [], []>} : vector<16x60xbf16>, vector<60x128xbf16>, vector<16x128xf32> -> vector<16x128xf32>
    %c0_147 = arith.constant 0 : index
    %c0_148 = arith.constant 0 : index
    %173 = vector.load %arg6[%c0_147, %c0_148] : memref<16x1xf32, #tpu.memory_space<vmem>>, vector<16x1xf32>
    %174 = vector.broadcast %173 : vector<16x1xf32> to vector<16x128xf32>
    %175 = arith.addf %172, %174 : vector<16x128xf32>
    %cst_149 = arith.constant 0.000000e+00 : f32
    %176 = vector.broadcast %cst_149 : f32 to vector<16x128xf32>
    %177 = arith.maximumf %175, %176 : vector<16x128xf32>
    %178 = arith.truncf %177 : vector<16x128xf32> to vector<16x128xbf16>
    %c0_150 = arith.constant 0 : index
    %c0_151 = arith.constant 0 : index
    %179 = vector.load %arg7[%c0_150, %c0_151] : memref<32x16xbf16, #tpu.memory_space<vmem>>, vector<32x16xbf16>
    %cst_152 = arith.constant dense<0.000000e+00> : vector<32x128xf32>
    %180 = tpu.matmul %179, %178, %cst_152 {dimension_numbers = #tpu.dot_dimension_numbers<[1], [0], [0], [1], [0, 0, 1, 1], [], []>} : vector<32x16xbf16>, vector<16x128xbf16>, vector<32x128xf32> -> vector<32x128xf32>
    %c0_153 = arith.constant 0 : index
    %c0_154 = arith.constant 0 : index
    %181 = vector.load %arg8[%c0_153, %c0_154] : memref<32x1xf32, #tpu.memory_space<vmem>>, vector<32x1xf32>
    %182 = vector.broadcast %181 : vector<32x1xf32> to vector<32x128xf32>
    %183 = arith.addf %180, %182 : vector<32x128xf32>
    %cst_155 = arith.constant 0.000000e+00 : f32
    %184 = vector.broadcast %cst_155 : f32 to vector<32x128xf32>
    %185 = arith.maximumf %183, %184 : vector<32x128xf32>
    %186 = arith.truncf %185 : vector<32x128xf32> to vector<32x128xbf16>
    %c0_156 = arith.constant 0 : index
    %c0_157 = arith.constant 0 : index
    %187 = vector.load %arg9[%c0_156, %c0_157] : memref<32x32xbf16, #tpu.memory_space<vmem>>, vector<32x32xbf16>
    %cst_158 = arith.constant dense<0.000000e+00> : vector<32x128xf32>
    %188 = tpu.matmul %187, %186, %cst_158 {dimension_numbers = #tpu.dot_dimension_numbers<[1], [0], [0], [1], [0, 0, 1, 1], [], []>} : vector<32x32xbf16>, vector<32x128xbf16>, vector<32x128xf32> -> vector<32x128xf32>
    %c0_159 = arith.constant 0 : index
    %c0_160 = arith.constant 0 : index
    %189 = vector.load %arg10[%c0_159, %c0_160] : memref<32x1xf32, #tpu.memory_space<vmem>>, vector<32x1xf32>
    %190 = vector.broadcast %189 : vector<32x1xf32> to vector<32x128xf32>
    %191 = arith.addf %188, %190 : vector<32x128xf32>
    %cst_161 = arith.constant 0.000000e+00 : f32
    %192 = vector.broadcast %cst_161 : f32 to vector<32x128xf32>
    %193 = arith.maximumf %191, %192 : vector<32x128xf32>
    %194 = arith.truncf %193 : vector<32x128xf32> to vector<32x128xbf16>
    %c0_162 = arith.constant 0 : index
    %c0_163 = arith.constant 0 : index
    %195 = vector.load %arg11[%c0_162, %c0_163] : memref<128x2xbf16, #tpu.memory_space<vmem>>, vector<128x2xbf16>
    %cst_164 = arith.constant dense<0.000000e+00> : vector<32x2xf32>
    %196 = tpu.matmul %194, %195, %cst_164 {dimension_numbers = #tpu.dot_dimension_numbers<[1], [0], [0], [1], [0, 0, 1, 1], [], []>} : vector<32x128xbf16>, vector<128x2xbf16>, vector<32x2xf32> -> vector<32x2xf32>
    %cst_165 = arith.constant 1.562500e-02 : f32
    %197 = vector.broadcast %cst_165 : f32 to vector<32x2xf32>
    %198 = arith.mulf %196, %197 : vector<32x2xf32>
    %c0_166 = arith.constant 0 : index
    %c0_167 = arith.constant 0 : index
    %199 = vector.load %arg12[%c0_166, %c0_167] : memref<32x2xf32, #tpu.memory_space<vmem>>, vector<32x2xf32>
    tpu.vector_store %arg12[%c0_166, %c0_167], %198 {strides = array<i32>} : memref<32x2xf32, #tpu.memory_space<vmem>>, vector<32x2xf32>,
    return
  }
  func.func @transform_0(%arg0: i32) -> (i32, i32) {
    %c0_i32 = arith.constant 0 : i32
    %c0_i32_0 = arith.constant 0 : i32
    return %c0_i32, %arg0 : i32, i32
  }
  func.func @transform_1(%arg0: i32) -> (i32, i32) {
    %c0_i32 = arith.constant 0 : i32
    %c0_i32_0 = arith.constant 0 : i32
    %c0_i32_1 = arith.constant 0 : i32
    return %c0_i32, %c0_i32_0 : i32, i32
  }
  func.func @transform_2(%arg0: i32) -> (i32, i32) {
    %c0_i32 = arith.constant 0 : i32
    %c0_i32_0 = arith.constant 0 : i32
    %c0_i32_1 = arith.constant 0 : i32
    return %c0_i32, %c0_i32_0 : i32, i32
  }
  func.func @transform_3(%arg0: i32) -> (i32, i32) {
    %c0_i32 = arith.constant 0 : i32
    %c0_i32_0 = arith.constant 0 : i32
    %c0_i32_1 = arith.constant 0 : i32
    return %c0_i32, %c0_i32_0 : i32, i32
  }
  func.func @transform_4(%arg0: i32) -> (i32, i32) {
    %c0_i32 = arith.constant 0 : i32
    %c0_i32_0 = arith.constant 0 : i32
    %c0_i32_1 = arith.constant 0 : i32
    return %c0_i32, %c0_i32_0 : i32, i32
  }
  func.func @transform_5(%arg0: i32) -> (i32, i32) {
    %c0_i32 = arith.constant 0 : i32
    %c0_i32_0 = arith.constant 0 : i32
    %c0_i32_1 = arith.constant 0 : i32
    return %c0_i32, %c0_i32_0 : i32, i32
  }
  func.func @transform_6(%arg0: i32) -> (i32, i32) {
    %c0_i32 = arith.constant 0 : i32
    %c0_i32_0 = arith.constant 0 : i32
    %c0_i32_1 = arith.constant 0 : i32
    return %c0_i32, %c0_i32_0 : i32, i32
  }
  func.func @transform_7(%arg0: i32) -> (i32, i32) {
    %c0_i32 = arith.constant 0 : i32
    %c0_i32_0 = arith.constant 0 : i32
    %c0_i32_1 = arith.constant 0 : i32
    return %c0_i32, %c0_i32_0 : i32, i32
  }
  func.func @transform_8(%arg0: i32) -> (i32, i32) {
    %c0_i32 = arith.constant 0 : i32
    %c0_i32_0 = arith.constant 0 : i32
    %c0_i32_1 = arith.constant 0 : i32
    return %c0_i32, %c0_i32_0 : i32, i32
  }
  func.func @transform_9(%arg0: i32) -> (i32, i32) {
    %c0_i32 = arith.constant 0 : i32
    %c0_i32_0 = arith.constant 0 : i32
    %c0_i32_1 = arith.constant 0 : i32
    return %c0_i32, %c0_i32_0 : i32, i32
  }
  func.func @transform_10(%arg0: i32) -> (i32, i32) {
    %c0_i32 = arith.constant 0 : i32
    %c0_i32_0 = arith.constant 0 : i32
    %c0_i32_1 = arith.constant 0 : i32
    return %c0_i32, %c0_i32_0 : i32, i32
  }
  func.func @transform_11(%arg0: i32) -> (i32, i32) {
    %c0_i32 = arith.constant 0 : i32
    %c0_i32_0 = arith.constant 0 : i32
    return %c0_i32, %arg0 : i32, i32
  }
}

module attributes {stable_mosaic.version = 11 : i64} {
  func.func @kernel(%arg0: i32, %arg1: memref<4x128xf32, #tpu.memory_space<vmem>>, %arg2: memref<2x128xf32, #tpu.memory_space<vmem>>, %arg3: memref<8x128xf32, #tpu.memory_space<vmem>>, %arg4: memref<15x128xf32, #tpu.memory_space<vmem>>, %arg5: memref<16x60xbf16, #tpu.memory_space<vmem>>, %arg6: memref<16x1xf32, #tpu.memory_space<vmem>>, %arg7: memref<32x16xbf16, #tpu.memory_space<vmem>>, %arg8: memref<32x1xf32, #tpu.memory_space<vmem>>, %arg9: memref<32x32xbf16, #tpu.memory_space<vmem>>, %arg10: memref<32x1xf32, #tpu.memory_space<vmem>>, %arg11: memref<128x2xbf16, #tpu.memory_space<vmem>>, %arg12: memref<32x2xf32, #tpu.memory_space<vmem>>, %arg13: memref<4x384xf32, #tpu.memory_space<vmem>>, %arg14: memref<8x384xf32, #tpu.memory_space<vmem>>, %arg15: memref<60x128xf32, #tpu.memory_space<vmem>>) attributes {dimension_semantics = [#tpu.dimension_semantics<parallel>], iteration_bounds = array<i64: 1>, scalar_prefetch = 0 : i64, scratch_operands = 3 : i64, tpu.core_type = #tpu.core_type<tc>, window_params = [{transform_indices = @transform_0, window_bounds = array<i64: 4, 128>}, {pipeline_mode = #tpu.pipeline_mode<synchronous>, transform_indices = @transform_1, window_bounds = array<i64: 2, 128>}, {pipeline_mode = #tpu.pipeline_mode<synchronous>, transform_indices = @transform_2, window_bounds = array<i64: 8, 128>}, {pipeline_mode = #tpu.pipeline_mode<synchronous>, transform_indices = @transform_3, window_bounds = array<i64: 15, 128>}, {pipeline_mode = #tpu.pipeline_mode<synchronous>, transform_indices = @transform_4, window_bounds = array<i64: 16, 60>}, {pipeline_mode = #tpu.pipeline_mode<synchronous>, transform_indices = @transform_5, window_bounds = array<i64: 16, 1>}, {pipeline_mode = #tpu.pipeline_mode<synchronous>, transform_indices = @transform_6, window_bounds = array<i64: 32, 16>}, {pipeline_mode = #tpu.pipeline_mode<synchronous>, transform_indices = @transform_7, window_bounds = array<i64: 32, 1>}, {pipeline_mode = #tpu.pipeline_mode<synchronous>, transform_indices = @transform_8, window_bounds = array<i64: 32, 32>}, {pipeline_mode = #tpu.pipeline_mode<synchronous>, transform_indices = @transform_9, window_bounds = array<i64: 32, 1>}, {pipeline_mode = #tpu.pipeline_mode<synchronous>, transform_indices = @transform_10, window_bounds = array<i64: 128, 2>}, {transform_indices = @transform_11, window_bounds = array<i64: 32, 2>}]} {
    %cst = arith.constant 0.000000e+00 : f32
    %0 = vector.broadcast %cst : f32 to vector<4x128xf32>
    %c0 = arith.constant 0 : index
    %c0_0 = arith.constant 0 : index
    %1 = vector.load %arg13[%c0, %c0_0] : memref<4x384xf32, #tpu.memory_space<vmem>>, vector<4x128xf32>
    tpu.vector_store %arg13[%c0, %c0_0], %0 {strides = array<i32>} : memref<4x384xf32, #tpu.memory_space<vmem>>, vector<4x128xf32>,
    %c0_1 = arith.constant 0 : index
    %c256 = arith.constant 256 : index
    %2 = vector.load %arg13[%c0_1, %c256] : memref<4x384xf32, #tpu.memory_space<vmem>>, vector<4x128xf32>
    %c0_2 = arith.constant 0 : index
    %c256_3 = arith.constant 256 : index
    %3 = vector.load %arg13[%c0_2, %c256_3] : memref<4x384xf32, #tpu.memory_space<vmem>>, vector<4x128xf32>
    tpu.vector_store %arg13[%c0_2, %c256_3], %2 {strides = array<i32>} : memref<4x384xf32, #tpu.memory_space<vmem>>, vector<4x128xf32>,
    %cst_4 = arith.constant 0.000000e+00 : f32
    %4 = vector.broadcast %cst_4 : f32 to vector<4x128xf32>
    %c0_5 = arith.constant 0 : index
    %c256_6 = arith.constant 256 : index
    %5 = vector.load %arg13[%c0_5, %c256_6] : memref<4x384xf32, #tpu.memory_space<vmem>>, vector<4x128xf32>
    tpu.vector_store %arg13[%c0_5, %c256_6], %4 {strides = array<i32>} : memref<4x384xf32, #tpu.memory_space<vmem>>, vector<4x128xf32>,
    %cst_7 = arith.constant 0.000000e+00 : f32
    %6 = vector.broadcast %cst_7 : f32 to vector<8x128xf32>
    %c0_8 = arith.constant 0 : index
    %c0_9 = arith.constant 0 : index
    %7 = vector.load %arg14[%c0_8, %c0_9] : memref<8x384xf32, #tpu.memory_space<vmem>>, vector<8x128xf32>
    tpu.vector_store %arg14[%c0_8, %c0_9], %6 {strides = array<i32>} : memref<8x384xf32, #tpu.memory_space<vmem>>, vector<8x128xf32>,
    %cst_10 = arith.constant 0.000000e+00 : f32
    %8 = vector.broadcast %cst_10 : f32 to vector<8x128xf32>
    %c0_11 = arith.constant 0 : index
    %c256_12 = arith.constant 256 : index
    %9 = vector.load %arg14[%c0_11, %c256_12] : memref<8x384xf32, #tpu.memory_space<vmem>>, vector<8x128xf32>
    tpu.vector_store %arg14[%c0_11, %c256_12], %8 {strides = array<i32>} : memref<8x384xf32, #tpu.memory_space<vmem>>, vector<8x128xf32>,
    %c0_13 = arith.constant 0 : index
    %c0_14 = arith.constant 0 : index
    %10 = vector.load %arg1[%c0_13, %c0_14] : memref<4x128xf32, #tpu.memory_space<vmem>>, vector<4x128xf32>
    %c0_15 = arith.constant 0 : index
    %c128 = arith.constant 128 : index
    %11 = vector.load %arg14[%c0_15, %c128] : memref<8x384xf32, #tpu.memory_space<vmem>>, vector<4x128xf32>
    tpu.vector_store %arg14[%c0_15, %c128], %10 {strides = array<i32>} : memref<8x384xf32, #tpu.memory_space<vmem>>, vector<4x128xf32>,
    %12 = arith.mulf %10, %10 : vector<4x128xf32>
    %c4 = arith.constant 4 : index
    %c128_16 = arith.constant 128 : index
    %13 = vector.load %arg14[%c4, %c128_16] : memref<8x384xf32, #tpu.memory_space<vmem>>, vector<4x128xf32>
    tpu.vector_store %arg14[%c4, %c128_16], %12 {strides = array<i32>} : memref<8x384xf32, #tpu.memory_space<vmem>>, vector<4x128xf32>,
    %c0_17 = arith.constant 0 : index
    %c128_18 = arith.constant 128 : index
    %14 = vector.load %arg14[%c0_17, %c128_18] : memref<8x384xf32, #tpu.memory_space<vmem>>, vector<8x128xf32>
    %c0_19 = arith.constant 0 : index
    %c129 = arith.constant 129 : index
    %15 = vector.load %arg14[%c0_19, %c129] : memref<8x384xf32, #tpu.memory_space<vmem>>, vector<8x128xf32>
    %c0_20 = arith.constant 0 : index
    %c0_21 = arith.constant 0 : index
    %16 = vector.load %arg3[%c0_20, %c0_21] : memref<8x128xf32, #tpu.memory_space<vmem>>, vector<1x128xf32>
    %17 = vector.broadcast %16 : vector<1x128xf32> to vector<8x128xf32>
    %18 = arith.mulf %17, %15 : vector<8x128xf32>
    %19 = arith.addf %14, %18 : vector<8x128xf32>
    %c0_22 = arith.constant 0 : index
    %c128_23 = arith.constant 128 : index
    %20 = vector.load %arg14[%c0_22, %c128_23] : memref<8x384xf32, #tpu.memory_space<vmem>>, vector<8x128xf32>
    tpu.vector_store %arg14[%c0_22, %c128_23], %19 {strides = array<i32>} : memref<8x384xf32, #tpu.memory_space<vmem>>, vector<8x128xf32>,
    %c0_24 = arith.constant 0 : index
    %c128_25 = arith.constant 128 : index
    %21 = vector.load %arg14[%c0_24, %c128_25] : memref<8x384xf32, #tpu.memory_space<vmem>>, vector<8x128xf32>
    %c0_26 = arith.constant 0 : index
    %c130 = arith.constant 130 : index
    %22 = vector.load %arg14[%c0_26, %c130] : memref<8x384xf32, #tpu.memory_space<vmem>>, vector<8x128xf32>
    %c1 = arith.constant 1 : index
    %c0_27 = arith.constant 0 : index
    %23 = vector.load %arg3[%c1, %c0_27] : memref<8x128xf32, #tpu.memory_space<vmem>>, vector<1x128xf32>
    %24 = vector.broadcast %23 : vector<1x128xf32> to vector<8x128xf32>
    %25 = arith.mulf %24, %22 : vector<8x128xf32>
    %26 = arith.addf %21, %25 : vector<8x128xf32>
    %c0_28 = arith.constant 0 : index
    %c128_29 = arith.constant 128 : index
    %27 = vector.load %arg14[%c0_28, %c128_29] : memref<8x384xf32, #tpu.memory_space<vmem>>, vector<8x128xf32>
    tpu.vector_store %arg14[%c0_28, %c128_29], %26 {strides = array<i32>} : memref<8x384xf32, #tpu.memory_space<vmem>>, vector<8x128xf32>,
    %c0_30 = arith.constant 0 : index
    %c128_31 = arith.constant 128 : index
    %28 = vector.load %arg14[%c0_30, %c128_31] : memref<8x384xf32, #tpu.memory_space<vmem>>, vector<8x128xf32>
    %c0_32 = arith.constant 0 : index
    %c132 = arith.constant 132 : index
    %29 = vector.load %arg14[%c0_32, %c132] : memref<8x384xf32, #tpu.memory_space<vmem>>, vector<8x128xf32>
    %c2 = arith.constant 2 : index
    %c0_33 = arith.constant 0 : index
    %30 = vector.load %arg3[%c2, %c0_33] : memref<8x128xf32, #tpu.memory_space<vmem>>, vector<1x128xf32>
    %31 = vector.broadcast %30 : vector<1x128xf32> to vector<8x128xf32>
    %32 = arith.mulf %31, %29 : vector<8x128xf32>
    %33 = arith.addf %28, %32 : vector<8x128xf32>
    %c0_34 = arith.constant 0 : index
    %c128_35 = arith.constant 128 : index
    %34 = vector.load %arg14[%c0_34, %c128_35] : memref<8x384xf32, #tpu.memory_space<vmem>>, vector<8x128xf32>
    tpu.vector_store %arg14[%c0_34, %c128_35], %33 {strides = array<i32>} : memref<8x384xf32, #tpu.memory_space<vmem>>, vector<8x128xf32>,
    %c0_36 = arith.constant 0 : index
    %c128_37 = arith.constant 128 : index
    %35 = vector.load %arg14[%c0_36, %c128_37] : memref<8x384xf32, #tpu.memory_space<vmem>>, vector<8x128xf32>
    %c0_38 = arith.constant 0 : index
    %c136 = arith.constant 136 : index
    %36 = vector.load %arg14[%c0_38, %c136] : memref<8x384xf32, #tpu.memory_space<vmem>>, vector<8x128xf32>
    %c3 = arith.constant 3 : index
    %c0_39 = arith.constant 0 : index
    %37 = vector.load %arg3[%c3, %c0_39] : memref<8x128xf32, #tpu.memory_space<vmem>>, vector<1x128xf32>
    %38 = vector.broadcast %37 : vector<1x128xf32> to vector<8x128xf32>
    %39 = arith.mulf %38, %36 : vector<8x128xf32>
    %40 = arith.addf %35, %39 : vector<8x128xf32>
    %c0_40 = arith.constant 0 : index
    %c128_41 = arith.constant 128 : index
    %41 = vector.load %arg14[%c0_40, %c128_41] : memref<8x384xf32, #tpu.memory_space<vmem>>, vector<8x128xf32>
    tpu.vector_store %arg14[%c0_40, %c128_41], %40 {strides = array<i32>} : memref<8x384xf32, #tpu.memory_space<vmem>>, vector<8x128xf32>,
    %c0_42 = arith.constant 0 : index
    %c128_43 = arith.constant 128 : index
    %42 = vector.load %arg14[%c0_42, %c128_43] : memref<8x384xf32, #tpu.memory_space<vmem>>, vector<8x128xf32>
    %c0_44 = arith.constant 0 : index
    %c127 = arith.constant 127 : index
    %43 = vector.load %arg14[%c0_44, %c127] : memref<8x384xf32, #tpu.memory_space<vmem>>, vector<8x128xf32>
    %c4_45 = arith.constant 4 : index
    %c0_46 = arith.constant 0 : index
    %44 = vector.load %arg3[%c4_45, %c0_46] : memref<8x128xf32, #tpu.memory_space<vmem>>, vector<1x128xf32>
    %45 = arith.subf %43, %42 : vector<8x128xf32>
    %46 = vector.broadcast %44 : vector<1x128xf32> to vector<8x128xf32>
    %47 = arith.mulf %46, %45 : vector<8x128xf32>
    %48 = arith.addf %42, %47 : vector<8x128xf32>
    %c0_47 = arith.constant 0 : index
    %c128_48 = arith.constant 128 : index
    %49 = vector.load %arg14[%c0_47, %c128_48] : memref<8x384xf32, #tpu.memory_space<vmem>>, vector<8x128xf32>
    tpu.vector_store %arg14[%c0_47, %c128_48], %48 {strides = array<i32>} : memref<8x384xf32, #tpu.memory_space<vmem>>, vector<8x128xf32>,
    %c0_49 = arith.constant 0 : index
    %c128_50 = arith.constant 128 : index
    %50 = vector.load %arg14[%c0_49, %c128_50] : memref<8x384xf32, #tpu.memory_space<vmem>>, vector<8x128xf32>
    %c0_51 = arith.constant 0 : index
    %c126 = arith.constant 126 : index
    %51 = vector.load %arg14[%c0_51, %c126] : memref<8x384xf32, #tpu.memory_space<vmem>>, vector<8x128xf32>
    %c5 = arith.constant 5 : index
    %c0_52 = arith.constant 0 : index
    %52 = vector.load %arg3[%c5, %c0_52] : memref<8x128xf32, #tpu.memory_space<vmem>>, vector<1x128xf32>
    %53 = arith.subf %51, %50 : vector<8x128xf32>
    %54 = vector.broadcast %52 : vector<1x128xf32> to vector<8x128xf32>
    %55 = arith.mulf %54, %53 : vector<8x128xf32>
    %56 = arith.addf %50, %55 : vector<8x128xf32>
    %c0_53 = arith.constant 0 : index
    %c128_54 = arith.constant 128 : index
    %57 = vector.load %arg14[%c0_53, %c128_54] : memref<8x384xf32, #tpu.memory_space<vmem>>, vector<8x128xf32>
    tpu.vector_store %arg14[%c0_53, %c128_54], %56 {strides = array<i32>} : memref<8x384xf32, #tpu.memory_space<vmem>>, vector<8x128xf32>,
    %c0_55 = arith.constant 0 : index
    %c128_56 = arith.constant 128 : index
    %58 = vector.load %arg14[%c0_55, %c128_56] : memref<8x384xf32, #tpu.memory_space<vmem>>, vector<8x128xf32>
    %c0_57 = arith.constant 0 : index
    %c124 = arith.constant 124 : index
    %59 = vector.load %arg14[%c0_57, %c124] : memref<8x384xf32, #tpu.memory_space<vmem>>, vector<8x128xf32>
    %c6 = arith.constant 6 : index
    %c0_58 = arith.constant 0 : index
    %60 = vector.load %arg3[%c6, %c0_58] : memref<8x128xf32, #tpu.memory_space<vmem>>, vector<1x128xf32>
    %61 = arith.subf %59, %58 : vector<8x128xf32>
    %62 = vector.broadcast %60 : vector<1x128xf32> to vector<8x128xf32>
    %63 = arith.mulf %62, %61 : vector<8x128xf32>
    %64 = arith.addf %58, %63 : vector<8x128xf32>
    %c0_59 = arith.constant 0 : index
    %c128_60 = arith.constant 128 : index
    %65 = vector.load %arg14[%c0_59, %c128_60] : memref<8x384xf32, #tpu.memory_space<vmem>>, vector<8x128xf32>
    tpu.vector_store %arg14[%c0_59, %c128_60], %64 {strides = array<i32>} : memref<8x384xf32, #tpu.memory_space<vmem>>, vector<8x128xf32>,
    %c0_61 = arith.constant 0 : index
    %c128_62 = arith.constant 128 : index
    %66 = vector.load %arg14[%c0_61, %c128_62] : memref<8x384xf32, #tpu.memory_space<vmem>>, vector<8x128xf32>
    %c0_63 = arith.constant 0 : index
    %c120 = arith.constant 120 : index
    %67 = vector.load %arg14[%c0_63, %c120] : memref<8x384xf32, #tpu.memory_space<vmem>>, vector<8x128xf32>
    %c7 = arith.constant 7 : index
    %c0_64 = arith.constant 0 : index
    %68 = vector.load %arg3[%c7, %c0_64] : memref<8x128xf32, #tpu.memory_space<vmem>>, vector<1x128xf32>
    %69 = arith.subf %67, %66 : vector<8x128xf32>
    %70 = vector.broadcast %68 : vector<1x128xf32> to vector<8x128xf32>
    %71 = arith.mulf %70, %69 : vector<8x128xf32>
    %72 = arith.addf %66, %71 : vector<8x128xf32>
    %c0_65 = arith.constant 0 : index
    %c128_66 = arith.constant 128 : index
    %73 = vector.load %arg14[%c0_65, %c128_66] : memref<8x384xf32, #tpu.memory_space<vmem>>, vector<8x128xf32>
    tpu.vector_store %arg14[%c0_65, %c128_66], %72 {strides = array<i32>} : memref<8x384xf32, #tpu.memory_space<vmem>>, vector<8x128xf32>,
    %c0_67 = arith.constant 0 : index
    %c128_68 = arith.constant 128 : index
    %74 = vector.load %arg14[%c0_67, %c128_68] : memref<8x384xf32, #tpu.memory_space<vmem>>, vector<4x128xf32>
    %cst_69 = arith.constant 6.250000e-02 : f32
    %75 = vector.broadcast %cst_69 : f32 to vector<4x128xf32>
    %76 = arith.mulf %74, %75 : vector<4x128xf32>
    %c4_70 = arith.constant 4 : index
    %c128_71 = arith.constant 128 : index
    %77 = vector.load %arg14[%c4_70, %c128_71] : memref<8x384xf32, #tpu.memory_space<vmem>>, vector<4x128xf32>
    %cst_72 = arith.constant 6.250000e-02 : f32
    %78 = vector.broadcast %cst_72 : f32 to vector<4x128xf32>
    %79 = arith.mulf %77, %78 : vector<4x128xf32>
    %80 = arith.mulf %76, %76 : vector<4x128xf32>
    %81 = arith.subf %79, %80 : vector<4x128xf32>
    %cst_73 = arith.constant 9.99999974E-6 : f32
    %82 = vector.broadcast %cst_73 : f32 to vector<4x128xf32>
    %83 = arith.addf %81, %82 : vector<4x128xf32>
    %84 = math.rsqrt %83 : vector<4x128xf32>
    %85 = arith.subf %10, %76 : vector<4x128xf32>
    %86 = arith.mulf %85, %84 : vector<4x128xf32>
    %c0_74 = arith.constant 0 : index
    %c0_75 = arith.constant 0 : index
    %87 = vector.load %arg2[%c0_74, %c0_75] : memref<2x128xf32, #tpu.memory_space<vmem>>, vector<1x128xf32>
    %88 = vector.broadcast %87 : vector<1x128xf32> to vector<4x128xf32>
    %89 = arith.mulf %86, %88 : vector<4x128xf32>
    %c1_76 = arith.constant 1 : index
    %c0_77 = arith.constant 0 : index
    %90 = vector.load %arg2[%c1_76, %c0_77] : memref<2x128xf32, #tpu.memory_space<vmem>>, vector<1x128xf32>
    %91 = vector.broadcast %90 : vector<1x128xf32> to vector<4x128xf32>
    %92 = arith.addf %89, %91 : vector<4x128xf32>
    %c0_78 = arith.constant 0 : index
    %c128_79 = arith.constant 128 : index
    %93 = vector.load %arg13[%c0_78, %c128_79] : memref<4x384xf32, #tpu.memory_space<vmem>>, vector<4x128xf32>
    tpu.vector_store %arg13[%c0_78, %c128_79], %92 {strides = array<i32>} : memref<4x384xf32, #tpu.memory_space<vmem>>, vector<4x128xf32>,
    %c0_80 = arith.constant 0 : index
    %c110 = arith.constant 110 : index
    %94 = vector.load %arg13[%c0_80, %c110] : memref<4x384xf32, #tpu.memory_space<vmem>>, vector<4x128xf32>
    %c0_81 = arith.constant 0 : index
    %c0_82 = arith.constant 0 : index
    %95 = vector.load %arg4[%c0_81, %c0_82] : memref<15x128xf32, #tpu.memory_space<vmem>>, vector<1x128xf32>
    %96 = vector.broadcast %95 : vector<1x128xf32> to vector<4x128xf32>
    %97 = arith.mulf %94, %96 : vector<4x128xf32>
    %c0_83 = arith.constant 0 : index
    %c0_84 = arith.constant 0 : index
    %98 = vector.load %arg15[%c0_83, %c0_84] : memref<60x128xf32, #tpu.memory_space<vmem>>, vector<4x128xf32>
    tpu.vector_store %arg15[%c0_83, %c0_84], %97 {strides = array<i32>} : memref<60x128xf32, #tpu.memory_space<vmem>>, vector<4x128xf32>,
    %c0_85 = arith.constant 0 : index
    %c111 = arith.constant 111 : index
    %99 = vector.load %arg13[%c0_85, %c111] : memref<4x384xf32, #tpu.memory_space<vmem>>, vector<4x128xf32>
    %c1_86 = arith.constant 1 : index
    %c0_87 = arith.constant 0 : index
    %100 = vector.load %arg4[%c1_86, %c0_87] : memref<15x128xf32, #tpu.memory_space<vmem>>, vector<1x128xf32>
    %101 = vector.broadcast %100 : vector<1x128xf32> to vector<4x128xf32>
    %102 = arith.mulf %99, %101 : vector<4x128xf32>
    %c4_88 = arith.constant 4 : index
    %c0_89 = arith.constant 0 : index
    %103 = vector.load %arg15[%c4_88, %c0_89] : memref<60x128xf32, #tpu.memory_space<vmem>>, vector<4x128xf32>
    tpu.vector_store %arg15[%c4_88, %c0_89], %102 {strides = array<i32>} : memref<60x128xf32, #tpu.memory_space<vmem>>, vector<4x128xf32>,
    %c0_90 = arith.constant 0 : index
    %c112 = arith.constant 112 : index
    %104 = vector.load %arg13[%c0_90, %c112] : memref<4x384xf32, #tpu.memory_space<vmem>>, vector<4x128xf32>
    %c2_91 = arith.constant 2 : index
    %c0_92 = arith.constant 0 : index
    %105 = vector.load %arg4[%c2_91, %c0_92] : memref<15x128xf32, #tpu.memory_space<vmem>>, vector<1x128xf32>
    %106 = vector.broadcast %105 : vector<1x128xf32> to vector<4x128xf32>
    %107 = arith.mulf %104, %106 : vector<4x128xf32>
    %c8 = arith.constant 8 : index
    %c0_93 = arith.constant 0 : index
    %108 = vector.load %arg15[%c8, %c0_93] : memref<60x128xf32, #tpu.memory_space<vmem>>, vector<4x128xf32>
    tpu.vector_store %arg15[%c8, %c0_93], %107 {strides = array<i32>} : memref<60x128xf32, #tpu.memory_space<vmem>>, vector<4x128xf32>,
    %c0_94 = arith.constant 0 : index
    %c113 = arith.constant 113 : index
    %109 = vector.load %arg13[%c0_94, %c113] : memref<4x384xf32, #tpu.memory_space<vmem>>, vector<4x128xf32>
    %c3_95 = arith.constant 3 : index
    %c0_96 = arith.constant 0 : index
    %110 = vector.load %arg4[%c3_95, %c0_96] : memref<15x128xf32, #tpu.memory_space<vmem>>, vector<1x128xf32>
    %111 = vector.broadcast %110 : vector<1x128xf32> to vector<4x128xf32>
    %112 = arith.mulf %109, %111 : vector<4x128xf32>
    %c12 = arith.constant 12 : index
    %c0_97 = arith.constant 0 : index
    %113 = vector.load %arg15[%c12, %c0_97] : memref<60x128xf32, #tpu.memory_space<vmem>>, vector<4x128xf32>
    tpu.vector_store %arg15[%c12, %c0_97], %112 {strides = array<i32>} : memref<60x128xf32, #tpu.memory_space<vmem>>, vector<4x128xf32>,
    %c0_98 = arith.constant 0 : index
    %c114 = arith.constant 114 : index
    %114 = vector.load %arg13[%c0_98, %c114] : memref<4x384xf32, #tpu.memory_space<vmem>>, vector<4x128xf32>
    %c4_99 = arith.constant 4 : index
    %c0_100 = arith.constant 0 : index
    %115 = vector.load %arg4[%c4_99, %c0_100] : memref<15x128xf32, #tpu.memory_space<vmem>>, vector<1x128xf32>
    %116 = vector.broadcast %115 : vector<1x128xf32> to vector<4x128xf32>
    %117 = arith.mulf %114, %116 : vector<4x128xf32>
    %c16 = arith.constant 16 : index
    %c0_101 = arith.constant 0 : index
    %118 = vector.load %arg15[%c16, %c0_101] : memref<60x128xf32, #tpu.memory_space<vmem>>, vector<4x128xf32>
    tpu.vector_store %arg15[%c16, %c0_101], %117 {strides = array<i32>} : memref<60x128xf32, #tpu.memory_space<vmem>>, vector<4x128xf32>,
    %c0_102 = arith.constant 0 : index
    %c126_103 = arith.constant 126 : index
    %119 = vector.load %arg13[%c0_102, %c126_103] : memref<4x384xf32, #tpu.memory_space<vmem>>, vector<4x128xf32>
    %c5_104 = arith.constant 5 : index
    %c0_105 = arith.constant 0 : index
    %120 = vector.load %arg4[%c5_104, %c0_105] : memref<15x128xf32, #tpu.memory_space<vmem>>, vector<1x128xf32>
    %121 = vector.broadcast %120 : vector<1x128xf32> to vector<4x128xf32>
    %122 = arith.mulf %119, %121 : vector<4x128xf32>
    %c20 = arith.constant 20 : index
    %c0_106 = arith.constant 0 : index
    %123 = vector.load %arg15[%c20, %c0_106] : memref<60x128xf32, #tpu.memory_space<vmem>>, vector<4x128xf32>
    tpu.vector_store %arg15[%c20, %c0_106], %122 {strides = array<i32>} : memref<60x128xf32, #tpu.memory_space<vmem>>, vector<4x128xf32>,
    %c0_107 = arith.constant 0 : index
    %c127_108 = arith.constant 127 : index
    %124 = vector.load %arg13[%c0_107, %c127_108] : memref<4x384xf32, #tpu.memory_space<vmem>>, vector<4x128xf32>
    %c6_109 = arith.constant 6 : index
    %c0_110 = arith.constant 0 : index
    %125 = vector.load %arg4[%c6_109, %c0_110] : memref<15x128xf32, #tpu.memory_space<vmem>>, vector<1x128xf32>
    %126 = vector.broadcast %125 : vector<1x128xf32> to vector<4x128xf32>
    %127 = arith.mulf %124, %126 : vector<4x128xf32>
    %c24 = arith.constant 24 : index
    %c0_111 = arith.constant 0 : index
    %128 = vector.load %arg15[%c24, %c0_111] : memref<60x128xf32, #tpu.memory_space<vmem>>, vector<4x128xf32>
    tpu.vector_store %arg15[%c24, %c0_111], %127 {strides = array<i32>} : memref<60x128xf32, #tpu.memory_space<vmem>>, vector<4x128xf32>,
    %c0_112 = arith.constant 0 : index
    %c128_113 = arith.constant 128 : index
    %129 = vector.load %arg13[%c0_112, %c128_113] : memref<4x384xf32, #tpu.memory_space<vmem>>, vector<4x128xf32>
    %c7_114 = arith.constant 7 : index
    %c0_115 = arith.constant 0 : index
    %130 = vector.load %arg4[%c7_114, %c0_115] : memref<15x128xf32, #tpu.memory_space<vmem>>, vector<1x128xf32>
    %131 = vector.broadcast %130 : vector<1x128xf32> to vector<4x128xf32>
    %132 = arith.mulf %129, %131 : vector<4x128xf32>
    %c28 = arith.constant 28 : index
    %c0_116 = arith.constant 0 : index
    %133 = vector.load %arg15[%c28, %c0_116] : memref<60x128xf32, #tpu.memory_space<vmem>>, vector<4x128xf32>
    tpu.vector_store %arg15[%c28, %c0_116], %132 {strides = array<i32>} : memref<60x128xf32, #tpu.memory_space<vmem>>, vector<4x128xf32>,
    %c0_117 = arith.constant 0 : index
    %c129_118 = arith.constant 129 : index
    %134 = vector.load %arg13[%c0_117, %c129_118] : memref<4x384xf32, #tpu.memory_space<vmem>>, vector<4x128xf32>
    %c8_119 = arith.constant 8 : index
    %c0_120 = arith.constant 0 : index
    %135 = vector.load %arg4[%c8_119, %c0_120] : memref<15x128xf32, #tpu.memory_space<vmem>>, vector<1x128xf32>
    %136 = vector.broadcast %135 : vector<1x128xf32> to vector<4x128xf32>
    %137 = arith.mulf %134, %136 : vector<4x128xf32>
    %c32 = arith.constant 32 : index
    %c0_121 = arith.constant 0 : index
    %138 = vector.load %arg15[%c32, %c0_121] : memref<60x128xf32, #tpu.memory_space<vmem>>, vector<4x128xf32>
    tpu.vector_store %arg15[%c32, %c0_121], %137 {strides = array<i32>} : memref<60x128xf32, #tpu.memory_space<vmem>>, vector<4x128xf32>,
    %c0_122 = arith.constant 0 : index
    %c130_123 = arith.constant 130 : index
    %139 = vector.load %arg13[%c0_122, %c130_123] : memref<4x384xf32, #tpu.memory_space<vmem>>, vector<4x128xf32>
    %c9 = arith.constant 9 : index
    %c0_124 = arith.constant 0 : index
    %140 = vector.load %arg4[%c9, %c0_124] : memref<15x128xf32, #tpu.memory_space<vmem>>, vector<1x128xf32>
    %141 = vector.broadcast %140 : vector<1x128xf32> to vector<4x128xf32>
    %142 = arith.mulf %139, %141 : vector<4x128xf32>
    %c36 = arith.constant 36 : index
    %c0_125 = arith.constant 0 : index
    %143 = vector.load %arg15[%c36, %c0_125] : memref<60x128xf32, #tpu.memory_space<vmem>>, vector<4x128xf32>
    tpu.vector_store %arg15[%c36, %c0_125], %142 {strides = array<i32>} : memref<60x128xf32, #tpu.memory_space<vmem>>, vector<4x128xf32>,
    %c0_126 = arith.constant 0 : index
    %c142 = arith.constant 142 : index
    %144 = vector.load %arg13[%c0_126, %c142] : memref<4x384xf32, #tpu.memory_space<vmem>>, vector<4x128xf32>
    %c10 = arith.constant 10 : index
    %c0_127 = arith.constant 0 : index
    %145 = vector.load %arg4[%c10, %c0_127] : memref<15x128xf32, #tpu.memory_space<vmem>>, vector<1x128xf32>
    %146 = vector.broadcast %145 : vector<1x128xf32> to vector<4x128xf32>
    %147 = arith.mulf %144, %146 : vector<4x128xf32>
    %c40 = arith.constant 40 : index
    %c0_128 = arith.constant 0 : index
    %148 = vector.load %arg15[%c40, %c0_128] : memref<60x128xf32, #tpu.memory_space<vmem>>, vector<4x128xf32>
    tpu.vector_store %arg15[%c40, %c0_128], %147 {strides = array<i32>} : memref<60x128xf32, #tpu.memory_space<vmem>>, vector<4x128xf32>,
    %c0_129 = arith.constant 0 : index
    %c143 = arith.constant 143 : index
    %149 = vector.load %arg13[%c0_129, %c143] : memref<4x384xf32, #tpu.memory_space<vmem>>, vector<4x128xf32>
    %c11 = arith.constant 11 : index
    %c0_130 = arith.constant 0 : index
    %150 = vector.load %arg4[%c11, %c0_130] : memref<15x128xf32, #tpu.memory_space<vmem>>, vector<1x128xf32>
    %151 = vector.broadcast %150 : vector<1x128xf32> to vector<4x128xf32>
    %152 = arith.mulf %149, %151 : vector<4x128xf32>
    %c44 = arith.constant 44 : index
    %c0_131 = arith.constant 0 : index
    %153 = vector.load %arg15[%c44, %c0_131] : memref<60x128xf32, #tpu.memory_space<vmem>>, vector<4x128xf32>
    tpu.vector_store %arg15[%c44, %c0_131], %152 {strides = array<i32>} : memref<60x128xf32, #tpu.memory_space<vmem>>, vector<4x128xf32>,
    %c0_132 = arith.constant 0 : index
    %c144 = arith.constant 144 : index
    %154 = vector.load %arg13[%c0_132, %c144] : memref<4x384xf32, #tpu.memory_space<vmem>>, vector<4x128xf32>
    %c12_133 = arith.constant 12 : index
    %c0_134 = arith.constant 0 : index
    %155 = vector.load %arg4[%c12_133, %c0_134] : memref<15x128xf32, #tpu.memory_space<vmem>>, vector<1x128xf32>
    %156 = vector.broadcast %155 : vector<1x128xf32> to vector<4x128xf32>
    %157 = arith.mulf %154, %156 : vector<4x128xf32>
    %c48 = arith.constant 48 : index
    %c0_135 = arith.constant 0 : index
    %158 = vector.load %arg15[%c48, %c0_135] : memref<60x128xf32, #tpu.memory_space<vmem>>, vector<4x128xf32>
    tpu.vector_store %arg15[%c48, %c0_135], %157 {strides = array<i32>} : memref<60x128xf32, #tpu.memory_space<vmem>>, vector<4x128xf32>,
    %c0_136 = arith.constant 0 : index
    %c145 = arith.constant 145 : index
    %159 = vector.load %arg13[%c0_136, %c145] : memref<4x384xf32, #tpu.memory_space<vmem>>, vector<4x128xf32>
    %c13 = arith.constant 13 : index
    %c0_137 = arith.constant 0 : index
    %160 = vector.load %arg4[%c13, %c0_137] : memref<15x128xf32, #tpu.memory_space<vmem>>, vector<1x128xf32>
    %161 = vector.broadcast %160 : vector<1x128xf32> to vector<4x128xf32>
    %162 = arith.mulf %159, %161 : vector<4x128xf32>
    %c52 = arith.constant 52 : index
    %c0_138 = arith.constant 0 : index
    %163 = vector.load %arg15[%c52, %c0_138] : memref<60x128xf32, #tpu.memory_space<vmem>>, vector<4x128xf32>
    tpu.vector_store %arg15[%c52, %c0_138], %162 {strides = array<i32>} : memref<60x128xf32, #tpu.memory_space<vmem>>, vector<4x128xf32>,
    %c0_139 = arith.constant 0 : index
    %c146 = arith.constant 146 : index
    %164 = vector.load %arg13[%c0_139, %c146] : memref<4x384xf32, #tpu.memory_space<vmem>>, vector<4x128xf32>
    %c14 = arith.constant 14 : index
    %c0_140 = arith.constant 0 : index
    %165 = vector.load %arg4[%c14, %c0_140] : memref<15x128xf32, #tpu.memory_space<vmem>>, vector<1x128xf32>
    %166 = vector.broadcast %165 : vector<1x128xf32> to vector<4x128xf32>
    %167 = arith.mulf %164, %166 : vector<4x128xf32>
    %c56 = arith.constant 56 : index
    %c0_141 = arith.constant 0 : index
    %168 = vector.load %arg15[%c56, %c0_141] : memref<60x128xf32, #tpu.memory_space<vmem>>, vector<4x128xf32>
    tpu.vector_store %arg15[%c56, %c0_141], %167 {strides = array<i32>} : memref<60x128xf32, #tpu.memory_space<vmem>>, vector<4x128xf32>,
    %c0_142 = arith.constant 0 : index
    %c0_143 = arith.constant 0 : index
    %169 = vector.load %arg5[%c0_142, %c0_143] : memref<16x60xbf16, #tpu.memory_space<vmem>>, vector<16x60xbf16>
    %c0_144 = arith.constant 0 : index
    %c0_145 = arith.constant 0 : index
    %170 = vector.load %arg15[%c0_144, %c0_145] : memref<60x128xf32, #tpu.memory_space<vmem>>, vector<60x128xf32>
    %171 = arith.truncf %170 : vector<60x128xf32> to vector<60x128xbf16>
    %cst_146 = arith.constant dense<0.000000e+00> : vector<16x128xf32>
    %172 = tpu.matmul %169, %171, %cst_146 {dimension_numbers = #tpu.dot_dimension_numbers<[1], [0], [0], [1], [0, 0, 1, 1], [], []>} : vector<16x60xbf16>, vector<60x128xbf16>, vector<16x128xf32> -> vector<16x128xf32>
    %c0_147 = arith.constant 0 : index
    %c0_148 = arith.constant 0 : index
    %173 = vector.load %arg6[%c0_147, %c0_148] : memref<16x1xf32, #tpu.memory_space<vmem>>, vector<16x1xf32>
    %174 = vector.broadcast %173 : vector<16x1xf32> to vector<16x128xf32>
    %175 = arith.addf %172, %174 : vector<16x128xf32>
    %cst_149 = arith.constant 0.000000e+00 : f32
    %176 = vector.broadcast %cst_149 : f32 to vector<16x128xf32>
    %177 = arith.maximumf %175, %176 : vector<16x128xf32>
    %178 = arith.truncf %177 : vector<16x128xf32> to vector<16x128xbf16>
    %c0_150 = arith.constant 0 : index
    %c0_151 = arith.constant 0 : index
    %179 = vector.load %arg7[%c0_150, %c0_151] : memref<32x16xbf16, #tpu.memory_space<vmem>>, vector<32x16xbf16>
    %cst_152 = arith.constant dense<0.000000e+00> : vector<32x128xf32>
    %180 = tpu.matmul %179, %178, %cst_152 {dimension_numbers = #tpu.dot_dimension_numbers<[1], [0], [0], [1], [0, 0, 1, 1], [], []>} : vector<32x16xbf16>, vector<16x128xbf16>, vector<32x128xf32> -> vector<32x128xf32>
    %c0_153 = arith.constant 0 : index
    %c0_154 = arith.constant 0 : index
    %181 = vector.load %arg8[%c0_153, %c0_154] : memref<32x1xf32, #tpu.memory_space<vmem>>, vector<32x1xf32>
    %182 = vector.broadcast %181 : vector<32x1xf32> to vector<32x128xf32>
    %183 = arith.addf %180, %182 : vector<32x128xf32>
    %cst_155 = arith.constant 0.000000e+00 : f32
    %184 = vector.broadcast %cst_155 : f32 to vector<32x128xf32>
    %185 = arith.maximumf %183, %184 : vector<32x128xf32>
    %186 = arith.truncf %185 : vector<32x128xf32> to vector<32x128xbf16>
    %c0_156 = arith.constant 0 : index
    %c0_157 = arith.constant 0 : index
    %187 = vector.load %arg9[%c0_156, %c0_157] : memref<32x32xbf16, #tpu.memory_space<vmem>>, vector<32x32xbf16>
    %cst_158 = arith.constant dense<0.000000e+00> : vector<32x128xf32>
    %188 = tpu.matmul %187, %186, %cst_158 {dimension_numbers = #tpu.dot_dimension_numbers<[1], [0], [0], [1], [0, 0, 1, 1], [], []>} : vector<32x32xbf16>, vector<32x128xbf16>, vector<32x128xf32> -> vector<32x128xf32>
    %c0_159 = arith.constant 0 : index
    %c0_160 = arith.constant 0 : index
    %189 = vector.load %arg10[%c0_159, %c0_160] : memref<32x1xf32, #tpu.memory_space<vmem>>, vector<32x1xf32>
    %190 = vector.broadcast %189 : vector<32x1xf32> to vector<32x128xf32>
    %191 = arith.addf %188, %190 : vector<32x128xf32>
    %cst_161 = arith.constant 0.000000e+00 : f32
    %192 = vector.broadcast %cst_161 : f32 to vector<32x128xf32>
    %193 = arith.maximumf %191, %192 : vector<32x128xf32>
    %194 = arith.truncf %193 : vector<32x128xf32> to vector<32x128xbf16>
    %c0_162 = arith.constant 0 : index
    %c0_163 = arith.constant 0 : index
    %195 = vector.load %arg11[%c0_162, %c0_163] : memref<128x2xbf16, #tpu.memory_space<vmem>>, vector<128x2xbf16>
    %cst_164 = arith.constant dense<0.000000e+00> : vector<32x2xf32>
    %196 = tpu.matmul %194, %195, %cst_164 {dimension_numbers = #tpu.dot_dimension_numbers<[1], [0], [0], [1], [0, 0, 1, 1], [], []>} : vector<32x128xbf16>, vector<128x2xbf16>, vector<32x2xf32> -> vector<32x2xf32>
    %cst_165 = arith.constant 1.562500e-02 : f32
    %197 = vector.broadcast %cst_165 : f32 to vector<32x2xf32>
    %198 = arith.mulf %196, %197 : vector<32x2xf32>
    %c0_166 = arith.constant 0 : index
    %c0_167 = arith.constant 0 : index
    %199 = vector.load %arg12[%c0_166, %c0_167] : memref<32x2xf32, #tpu.memory_space<vmem>>, vector<32x2xf32>
    tpu.vector_store %arg12[%c0_166, %c0_167], %198 {strides = array<i32>} : memref<32x2xf32, #tpu.memory_space<vmem>>, vector<32x2xf32>,
    return
  }
  func.func @transform_0(%arg0: i32) -> (i32, i32) {
    %c0_i32 = arith.constant 0 : i32
    %c0_i32_0 = arith.constant 0 : i32
    return %c0_i32, %arg0 : i32, i32
  }
  func.func @transform_1(%arg0: i32) -> (i32, i32) {
    %c0_i32 = arith.constant 0 : i32
    %c0_i32_0 = arith.constant 0 : i32
    %c0_i32_1 = arith.constant 0 : i32
    return %c0_i32, %c0_i32_0 : i32, i32
  }
  func.func @transform_2(%arg0: i32) -> (i32, i32) {
    %c0_i32 = arith.constant 0 : i32
    %c0_i32_0 = arith.constant 0 : i32
    %c0_i32_1 = arith.constant 0 : i32
    return %c0_i32, %c0_i32_0 : i32, i32
  }
  func.func @transform_3(%arg0: i32) -> (i32, i32) {
    %c0_i32 = arith.constant 0 : i32
    %c0_i32_0 = arith.constant 0 : i32
    %c0_i32_1 = arith.constant 0 : i32
    return %c0_i32, %c0_i32_0 : i32, i32
  }
  func.func @transform_4(%arg0: i32) -> (i32, i32) {
    %c0_i32 = arith.constant 0 : i32
    %c0_i32_0 = arith.constant 0 : i32
    %c0_i32_1 = arith.constant 0 : i32
    return %c0_i32, %c0_i32_0 : i32, i32
  }
  func.func @transform_5(%arg0: i32) -> (i32, i32) {
    %c0_i32 = arith.constant 0 : i32
    %c0_i32_0 = arith.constant 0 : i32
    %c0_i32_1 = arith.constant 0 : i32
    return %c0_i32, %c0_i32_0 : i32, i32
  }
  func.func @transform_6(%arg0: i32) -> (i32, i32) {
    %c0_i32 = arith.constant 0 : i32
    %c0_i32_0 = arith.constant 0 : i32
    %c0_i32_1 = arith.constant 0 : i32
    return %c0_i32, %c0_i32_0 : i32, i32
  }
  func.func @transform_7(%arg0: i32) -> (i32, i32) {
    %c0_i32 = arith.constant 0 : i32
    %c0_i32_0 = arith.constant 0 : i32
    %c0_i32_1 = arith.constant 0 : i32
    return %c0_i32, %c0_i32_0 : i32, i32
  }
  func.func @transform_8(%arg0: i32) -> (i32, i32) {
    %c0_i32 = arith.constant 0 : i32
    %c0_i32_0 = arith.constant 0 : i32
    %c0_i32_1 = arith.constant 0 : i32
    return %c0_i32, %c0_i32_0 : i32, i32
  }
  func.func @transform_9(%arg0: i32) -> (i32, i32) {
    %c0_i32 = arith.constant 0 : i32
    %c0_i32_0 = arith.constant 0 : i32
    %c0_i32_1 = arith.constant 0 : i32
    return %c0_i32, %c0_i32_0 : i32, i32
  }
  func.func @transform_10(%arg0: i32) -> (i32, i32) {
    %c0_i32 = arith.constant 0 : i32
    %c0_i32_0 = arith.constant 0 : i32
    %c0_i32_1 = arith.constant 0 : i32
    return %c0_i32, %c0_i32_0 : i32, i32
  }
  func.func @transform_11(%arg0: i32) -> (i32, i32) {
    %c0_i32 = arith.constant 0 : i32
    %c0_i32_0 = arith.constant 0 : i32
    return %c0_i32, %arg0 : i32, i32
  }
}

</mosaic_0001>

<llo_original>
// kernel: tpu_custom_call.1
$region0: #{tpu_custom_call.1}
  #allocation0 [shape = 'u32[]', space=smem, size = 0x4, offset = 0x4, fixed_abs, tag = 'smem constant byte address 0x4 - core index']
  #allocation1 [shape = 'u32[144,128]{1,0:T(1,128)}', space=vmem, size = 0x12000, scoped, tag = 'internal scratch']
  #allocation2 [shape = 'f32[4,384]{1,0:T(4,128)}', space=vmem, size = 0x1800, scoped, tag = 'scratch operand']
  #allocation3 [shape = 'f32[8,384]{1,0:T(8,128)}', space=vmem, size = 0x3000, scoped, tag = 'scratch operand']
  #allocation4 [shape = 'f32[60,128]{1,0:T(8,128)}', space=vmem, size = 0x8000, scoped, tag = 'scratch operand']
  %s0 = inlined_call_operand.vmem [shape: f32[4,128], index: 0, kind: input, shape index: {}]
  %s1 = inlined_call_operand.vmem [shape: f32[2,128], index: 1, kind: input, shape index: {}]
  %s2 = inlined_call_operand.vmem [shape: f32[8,128], index: 2, kind: input, shape index: {}]
  %s3 = inlined_call_operand.vmem [shape: f32[15,128], index: 3, kind: input, shape index: {}]
  %s4 = inlined_call_operand.vmem [shape: bf16[16,60], index: 4, kind: input, shape index: {}]
  %s5 = inlined_call_operand.vmem [shape: f32[16,1], index: 5, kind: input, shape index: {}]
  %s6 = inlined_call_operand.vmem [shape: bf16[32,16], index: 6, kind: input, shape index: {}]
  %s7 = inlined_call_operand.vmem [shape: f32[32,1], index: 7, kind: input, shape index: {}]
  %s8 = inlined_call_operand.vmem [shape: bf16[32,32], index: 8, kind: input, shape index: {}]
  %s9 = inlined_call_operand.vmem [shape: f32[32,1], index: 9, kind: input, shape index: {}]
  %s10 = inlined_call_operand.vmem [shape: bf16[128,2], index: 10, kind: input, shape index: {}]
  %s11 = inlined_call_operand.vmem [shape: f32[32,2], index: 11, kind: output, shape index: {}]
  %s12 = sld [smem:[#allocation0]]
  $region54: #{tpu_custom_call.1} parent=0
    _
  %s14 = ssub.s32 1, %s12
  %s15 = scalar_select 0, %s14, %s12
  // Predicated region
  $region2: #{tpu_custom_call.1} parent=0 // pred_check
    _
  $region3: #{tpu_custom_call.1} parent=0 // pred_check_branch
    %17 = sbr.rel (0) target = $region5
  $region4: #{tpu_custom_call.1} parent=0 // pred_region
    _
  $region5: #{tpu_custom_call.1} parent=0 // pred_fallthru
    _
  // Predicated region
  $region6: #{tpu_custom_call.1} parent=0 // pred_check
    _
  $region7: #{tpu_custom_call.1} parent=0 // pred_check_branch
    %19 = sbr.rel (0) target = $region9
  $region8: #{tpu_custom_call.1} parent=0 // pred_region
    _
  $region9: #{tpu_custom_call.1} parent=0 // pred_fallthru
    _
  // Predicated region
  $region10: #{tpu_custom_call.1} parent=0 // pred_check
    _
  $region11: #{tpu_custom_call.1} parent=0 // pred_check_branch
    %21 = sbr.rel (0) target = $region13
  $region12: #{tpu_custom_call.1} parent=0 // pred_region
    _
  $region13: #{tpu_custom_call.1} parent=0 // pred_fallthru
    _
  // Predicated region
  $region14: #{tpu_custom_call.1} parent=0 // pred_check
    _
  $region15: #{tpu_custom_call.1} parent=0 // pred_check_branch
    %23 = sbr.rel (0) target = $region17
  $region16: #{tpu_custom_call.1} parent=0 // pred_region
    _
  $region17: #{tpu_custom_call.1} parent=0 // pred_fallthru
    _
  // Predicated region
  $region18: #{tpu_custom_call.1} parent=0 // pred_check
    _
  $region19: #{tpu_custom_call.1} parent=0 // pred_check_branch
    %25 = sbr.rel (0) target = $region21
  $region20: #{tpu_custom_call.1} parent=0 // pred_region
    _
  $region21: #{tpu_custom_call.1} parent=0 // pred_fallthru
    _
  // Predicated region
  $region22: #{tpu_custom_call.1} parent=0 // pred_check
    _
  $region23: #{tpu_custom_call.1} parent=0 // pred_check_branch
    %27 = sbr.rel (0) target = $region25
  $region24: #{tpu_custom_call.1} parent=0 // pred_region
    _
  $region25: #{tpu_custom_call.1} parent=0 // pred_fallthru
    _
  // Predicated region
  $region26: #{tpu_custom_call.1} parent=0 // pred_check
    _
  $region27: #{tpu_custom_call.1} parent=0 // pred_check_branch
    %29 = sbr.rel (0) target = $region29
  $region28: #{tpu_custom_call.1} parent=0 // pred_region
    _
  $region29: #{tpu_custom_call.1} parent=0 // pred_fallthru
    _
  // Predicated region
  $region30: #{tpu_custom_call.1} parent=0 // pred_check
    _
  $region31: #{tpu_custom_call.1} parent=0 // pred_check_branch
    %31 = sbr.rel (0) target = $region33
  $region32: #{tpu_custom_call.1} parent=0 // pred_region
    _
  $region33: #{tpu_custom_call.1} parent=0 // pred_fallthru
    _
  // Predicated region
  $region34: #{tpu_custom_call.1} parent=0 // pred_check
    _
  $region35: #{tpu_custom_call.1} parent=0 // pred_check_branch
    %33 = sbr.rel (0) target = $region37
  $region36: #{tpu_custom_call.1} parent=0 // pred_region
    _
  $region37: #{tpu_custom_call.1} parent=0 // pred_fallthru
    _
  // Predicated region
  $region38: #{tpu_custom_call.1} parent=0 // pred_check
    _
  $region39: #{tpu_custom_call.1} parent=0 // pred_check_branch
    %35 = sbr.rel (0) target = $region41
  $region40: #{tpu_custom_call.1} parent=0 // pred_region
    _
  $region41: #{tpu_custom_call.1} parent=0 // pred_fallthru
    _
  // Predicated region
  $region42: #{tpu_custom_call.1} parent=0 // pred_check
    _
  $region43: #{tpu_custom_call.1} parent=0 // pred_check_branch
    %37 = sbr.rel (0) target = $region45
  $region44: #{tpu_custom_call.1} parent=0 // pred_region
    _
  $region45: #{tpu_custom_call.1} parent=0 // pred_fallthru
    _
  %39 = vst [vmem:[#allocation2] sm:$0xf] 0.0
  %v40 = vld [vmem:[#allocation2 + $0x8] sm:$0xf]
  %41 = vst [vmem:[#allocation2 + $0x8] sm:$0xf] %v40
  %42 = vst [vmem:[#allocation2 + $0x8] sm:$0xf] 0.0
  %43 = vst [vmem:[#allocation3] sm:$0xff] 0.0
  %44 = vst [vmem:[#allocation3 + $0x10] sm:$0xff] 0.0
  %v45 = vld [vmem:[%s0] sm:$0xf]
  %46 = vst [vmem:[#allocation3 + $0x8] sm:$0xf] %v45
  %v47 = vmul.f32 %v45, %v45
  %v49 = vrot.slane %v47, 4
  %51 = vst [vmem:[#allocation3 + $0x8] sm:$0xf0] %v49
  %v52 = vld [vmem:[#allocation3 + $0x8] sm:$0xff]
  %v53 = vld [vmem:[#allocation3 + $0x8] sm:$0xff]
  %v54 = vld [vmem:[#allocation3 + $0x10] sm:$0xff]
  %v55 = vld [vmem:[%s2] sm:$0x1]
  %v56 = vlaneseq
  %v57 = vshrl.u32 %v56, 7
  %v58 = vsub.s32 0, %v57
  %v59 = vrot.slane %v55, %v58
  %62 = vrot.lane.b32.xlu0 %v53, 127
  %v63 = vpop.permute.xlu0 %62
  %64 = vrot.lane.b32.xlu0 %v54, 127
  %v65 = vpop.permute.xlu0 %64
  %vm66 = vcmask 1039360
  %v67 = vsel %vm66, %v63, %v65
  %v69 = vmul.f32 %v59, %v67
  %v70 = vadd.f32 %v52, %v69
  %71 = vst [vmem:[#allocation3 + $0x8] sm:$0xff] %v70
  %v72 = vld [vmem:[#allocation3 + $0x8] sm:$0xff]
  %v73 = vld [vmem:[#allocation3 + $0x8] sm:$0xff]
  %v74 = vld [vmem:[#allocation3 + $0x10] sm:$0xff]
  %v75 = vld [vmem:[%s2 + $0x1] sm:$0x1]
  %v76 = vlaneseq
  %v77 = vshrl.u32 %v76, 7
  %v78 = vsub.s32 0, %v77
  %v79 = vrot.slane %v75, %v78
  %82 = vrot.lane.b32.xlu0 %v73, 126
  %v83 = vpop.permute.xlu0 %82
  %84 = vrot.lane.b32.xlu0 %v74, 126
  %v85 = vpop.permute.xlu0 %84
  %vm86 = vcmask 1031168
  %v87 = vsel %vm86, %v83, %v85
  %v89 = vmul.f32 %v79, %v87
  %v90 = vadd.f32 %v72, %v89
  %91 = vst [vmem:[#allocation3 + $0x8] sm:$0xff] %v90
  %v92 = vld [vmem:[#allocation3 + $0x8] sm:$0xff]
  %v93 = vld [vmem:[#allocation3 + $0x8] sm:$0xff]
  %v94 = vld [vmem:[#allocation3 + $0x10] sm:$0xff]
  %v95 = vld [vmem:[%s2 + $0x2] sm:$0x1]
  %v96 = vlaneseq
  %v97 = vshrl.u32 %v96, 7
  %v98 = vsub.s32 0, %v97
  %v99 = vrot.slane %v95, %v98
  %102 = vrot.lane.b32.xlu0 %v93, 124
  %v103 = vpop.permute.xlu0 %102
  %104 = vrot.lane.b32.xlu0 %v94, 124
  %v105 = vpop.permute.xlu0 %104
  %vm106 = vcmask 1014784
  %v107 = vsel %vm106, %v103, %v105
  %v109 = vmul.f32 %v99, %v107
  %v110 = vadd.f32 %v92, %v109
  %111 = vst [vmem:[#allocation3 + $0x8] sm:$0xff] %v110
  %v112 = vld [vmem:[#allocation3 + $0x8] sm:$0xff]
  %v113 = vld [vmem:[#allocation3 + $0x8] sm:$0xff]
  %v114 = vld [vmem:[#allocation3 + $0x10] sm:$0xff]
  %v115 = vld [vmem:[%s2 + $0x3] sm:$0x1]
  %v116 = vlaneseq
  %v117 = vshrl.u32 %v116, 7
  %v118 = vsub.s32 0, %v117
  %v119 = vrot.slane %v115, %v118
  %122 = vrot.lane.b32.xlu0 %v113, 120
  %v123 = vpop.permute.xlu0 %122
  %124 = vrot.lane.b32.xlu0 %v114, 120
  %v125 = vpop.permute.xlu0 %124
  %vm126 = vcmask 982016
  %v127 = vsel %vm126, %v123, %v125
  %v129 = vmul.f32 %v119, %v127
  %v130 = vadd.f32 %v112, %v129
  %131 = vst [vmem:[#allocation3 + $0x8] sm:$0xff] %v130
  %v132 = vld [vmem:[#allocation3 + $0x8] sm:$0xff]
  %v133 = vld [vmem:[#allocation3] sm:$0xff]
  %v134 = vld [vmem:[%s2 + $0x4] sm:$0x1]
  %136 = vrot.lane.b32.xlu0 %v132, 127
  %v137 = vpop.permute.xlu0 %136
  %v139 = vsub.f32 %v133, %v137
  %v140 = vsub.f32 %v132, %v137
  %v141 = vlaneseq
  %v142 = vshrl.u32 %v141, 7
  %v143 = vsub.s32 0, %v142
  %v144 = vrot.slane %v134, %v143
  %147 = vrot.lane.b32.xlu0 %v139, 1
  %v148 = vpop.permute.xlu0 %147
  %149 = vrot.lane.b32.xlu0 %v140, 1
  %v150 = vpop.permute.xlu0 %149
  %vm151 = vcmask 7168
  %v152 = vsel %vm151, %v148, %v150
  %v154 = vmul.f32 %v144, %v152
  %v155 = vadd.f32 %v132, %v154
  %156 = vst [vmem:[#allocation3 + $0x8] sm:$0xff] %v155
  %v157 = vld [vmem:[#allocation3 + $0x8] sm:$0xff]
  %v158 = vld [vmem:[#allocation3] sm:$0xff]
  %v159 = vld [vmem:[%s2 + $0x5] sm:$0x1]
  %161 = vrot.lane.b32.xlu0 %v157, 126
  %v162 = vpop.permute.xlu0 %161
  %v164 = vsub.f32 %v158, %v162
  %v165 = vsub.f32 %v157, %v162
  %v166 = vlaneseq
  %v167 = vshrl.u32 %v166, 7
  %v168 = vsub.s32 0, %v167
  %v169 = vrot.slane %v159, %v168
  %172 = vrot.lane.b32.xlu0 %v164, 2
  %v173 = vpop.permute.xlu0 %172
  %174 = vrot.lane.b32.xlu0 %v165, 2
  %v175 = vpop.permute.xlu0 %174
  %vm176 = vcmask 15360
  %v177 = vsel %vm176, %v173, %v175
  %v179 = vmul.f32 %v169, %v177
  %v180 = vadd.f32 %v157, %v179
  %181 = vst [vmem:[#allocation3 + $0x8] sm:$0xff] %v180
  %v182 = vld [vmem:[#allocation3 + $0x8] sm:$0xff]
  %v183 = vld [vmem:[#allocation3] sm:$0xff]
  %v184 = vld [vmem:[%s2 + $0x6] sm:$0x1]
  %186 = vrot.lane.b32.xlu0 %v182, 124
  %v187 = vpop.permute.xlu0 %186
  %v189 = vsub.f32 %v183, %v187
  %v190 = vsub.f32 %v182, %v187
  %v191 = vlaneseq
  %v192 = vshrl.u32 %v191, 7
  %v193 = vsub.s32 0, %v192
  %v194 = vrot.slane %v184, %v193
  %197 = vrot.lane.b32.xlu0 %v189, 4
  %v198 = vpop.permute.xlu0 %197
  %199 = vrot.lane.b32.xlu0 %v190, 4
  %v200 = vpop.permute.xlu0 %199
  %vm201 = vcmask 31744
  %v202 = vsel %vm201, %v198, %v200
  %v204 = vmul.f32 %v194, %v202
  %v205 = vadd.f32 %v182, %v204
  %206 = vst [vmem:[#allocation3 + $0x8] sm:$0xff] %v205
  %v207 = vld [vmem:[#allocation3 + $0x8] sm:$0xff]
  %v208 = vld [vmem:[#allocation3] sm:$0xff]
  %v209 = vld [vmem:[%s2 + $0x7] sm:$0x1]
  %211 = vrot.lane.b32.xlu0 %v207, 120
  %v212 = vpop.permute.xlu0 %211
  %v214 = vsub.f32 %v208, %v212
  %v215 = vsub.f32 %v207, %v212
  %v216 = vlaneseq
  %v217 = vshrl.u32 %v216, 7
  %v218 = vsub.s32 0, %v217
  %v219 = vrot.slane %v209, %v218
  %222 = vrot.lane.b32.xlu0 %v214, 8
  %v223 = vpop.permute.xlu0 %222
  %224 = vrot.lane.b32.xlu0 %v215, 8
  %v225 = vpop.permute.xlu0 %224
  %vm226 = vcmask 64512
  %v227 = vsel %vm226, %v223, %v225
  %v229 = vmul.f32 %v219, %v227
  %v230 = vadd.f32 %v207, %v229
  %231 = vst [vmem:[#allocation3 + $0x8] sm:$0xff] %v230
  %v232 = vld [vmem:[#allocation3 + $0x8] sm:$0xf]
  %v233 = vmul.f32 %v232, 0.0625
  %v234 = vld [vmem:[#allocation3 + $0x8] sm:$0xf0]
  %v235 = vmul.f32 %v234, 0.0625
  %v236 = vmul.f32 %v233, %v233
  %v238 = vrot.slane %v236, 4
  %v240 = vsub.f32 %v235, %v238
  %v241 = vadd.f32 %v240, 1e-05
  %v242 = vrsqrt.pop %v241
  %v243 = vsub.f32 %v45, %v233
  %v245 = vrot.slane %v242, 4
  %v247 = vmul.f32 %v243, %v245
  %v248 = vld [vmem:[%s1] sm:$0x1]
  %v249 = vlaneseq
  %v250 = vshrl.u32 %v249, 7
  %v251 = vsub.s32 0, %v250
  %v252 = vrot.slane %v248, %v251
  %v253 = vmul.f32 %v247, %v252
  %v254 = vld [vmem:[%s1 + $0x1] sm:$0x1]
  %v255 = vlaneseq
  %v256 = vshrl.u32 %v255, 7
  %v257 = vsub.s32 0, %v256
  %v258 = vrot.slane %v254, %v257
  %v259 = vadd.f32 %v253, %v258
  %260 = vst [vmem:[#allocation2 + $0x4] sm:$0xf] %v259
  %v261 = vld [vmem:[#allocation2] sm:$0xff]
  %v262 = vld [vmem:[%s3] sm:$0x1]
  %v263 = vlaneseq
  %v264 = vshrl.u32 %v263, 7
  %v265 = vsub.s32 0, %v264
  %v266 = vrot.slane %v262, %v265
  %268 = vrot.lane.b32.xlu0 %v266, 110
  %v269 = vpop.permute.xlu0 %268
  %v270 = vrot.slane %v269, 4
  %vm271 = vcmask 900096
  %v272 = vsel %vm271, %v270, %v269
  %v274 = vmul.f32 %v261, %v272
  %v276 = vcombine.high %v274, %v274
  %277 = vrot.lane.b32.xlu0 %v274, 18
  %v278 = vpop.permute.xlu0 %277
  %279 = vrot.lane.b32.xlu0 %v276, 18
  %v280 = vpop.permute.xlu0 %279
  %vm281 = vcmask 146432
  %v282 = vsel %vm281, %v278, %v280
  %284 = vst [vmem:[#allocation4] sm:$0xf] %v282
  %v285 = vld [vmem:[#allocation2] sm:$0xff]
  %v286 = vld [vmem:[%s3 + $0x1] sm:$0x1]
  %v287 = vlaneseq
  %v288 = vshrl.u32 %v287, 7
  %v289 = vsub.s32 0, %v288
  %v290 = vrot.slane %v286, %v289
  %292 = vrot.lane.b32.xlu0 %v290, 111
  %v293 = vpop.permute.xlu0 %292
  %v294 = vrot.slane %v293, 4
  %vm295 = vcmask 908288
  %v296 = vsel %vm295, %v294, %v293
  %v298 = vmul.f32 %v285, %v296
  %v300 = vcombine.high %v298, %v298
  %301 = vrot.lane.b32.xlu0 %v298, 17
  %v302 = vpop.permute.xlu0 %301
  %303 = vrot.lane.b32.xlu0 %v300, 17
  %v304 = vpop.permute.xlu0 %303
  %vm305 = vcmask 138240
  %v306 = vsel %vm305, %v302, %v304
  %308 = vst [vmem:[#allocation4 + $0x4] sm:$0xf] %v306
  %v309 = vld [vmem:[#allocation2] sm:$0xff]
  %v310 = vld [vmem:[%s3 + $0x2] sm:$0x1]
  %v311 = vlaneseq
  %v312 = vshrl.u32 %v311, 7
  %v313 = vsub.s32 0, %v312
  %v314 = vrot.slane %v310, %v313
  %316 = vrot.lane.b32.xlu0 %v314, 112
  %v317 = vpop.permute.xlu0 %316
  %v318 = vrot.slane %v317, 4
  %vm319 = vcmask 916480
  %v320 = vsel %vm319, %v318, %v317
  %v322 = vmul.f32 %v309, %v320
  %v324 = vcombine.high %v322, %v322
  %325 = vrot.lane.b32.xlu0 %v322, 16
  %v326 = vpop.permute.xlu0 %325
  %327 = vrot.lane.b32.xlu0 %v324, 16
  %v328 = vpop.permute.xlu0 %327
  %vm329 = vcmask 130048
  %v330 = vsel %vm329, %v326, %v328
  %332 = vst [vmem:[#allocation4 + $0x8] sm:$0xf] %v330
  %v333 = vld [vmem:[#allocation2] sm:$0xff]
  %v334 = vld [vmem:[%s3 + $0x3] sm:$0x1]
  %v335 = vlaneseq
  %v336 = vshrl.u32 %v335, 7
  %v337 = vsub.s32 0, %v336
  %v338 = vrot.slane %v334, %v337
  %340 = vrot.lane.b32.xlu0 %v338, 113
  %v341 = vpop.permute.xlu0 %340
  %v342 = vrot.slane %v341, 4
  %vm343 = vcmask 924672
  %v344 = vsel %vm343, %v342, %v341
  %v346 = vmul.f32 %v333, %v344
  %v348 = vcombine.high %v346, %v346
  %349 = vrot.lane.b32.xlu0 %v346, 15
  %v350 = vpop.permute.xlu0 %349
  %351 = vrot.lane.b32.xlu0 %v348, 15
  %v352 = vpop.permute.xlu0 %351
  %vm353 = vcmask 121856
  %v354 = vsel %vm353, %v350, %v352
  %356 = vst [vmem:[#allocation4 + $0xc] sm:$0xf] %v354
  %v357 = vld [vmem:[#allocation2] sm:$0xff]
  %v358 = vld [vmem:[%s3 + $0x4] sm:$0x1]
  %v359 = vlaneseq
  %v360 = vshrl.u32 %v359, 7
  %v361 = vsub.s32 0, %v360
  %v362 = vrot.slane %v358, %v361
  %364 = vrot.lane.b32.xlu0 %v362, 114
  %v365 = vpop.permute.xlu0 %364
  %v366 = vrot.slane %v365, 4
  %vm367 = vcmask 932864
  %v368 = vsel %vm367, %v366, %v365
  %v370 = vmul.f32 %v357, %v368
  %v372 = vcombine.high %v370, %v370
  %373 = vrot.lane.b32.xlu0 %v370, 14
  %v374 = vpop.permute.xlu0 %373
  %375 = vrot.lane.b32.xlu0 %v372, 14
  %v376 = vpop.permute.xlu0 %375
  %vm377 = vcmask 113664
  %v378 = vsel %vm377, %v374, %v376
  %380 = vst [vmem:[#allocation4 + $0x10] sm:$0xf] %v378
  %v381 = vld [vmem:[#allocation2] sm:$0xff]
  %v382 = vld [vmem:[%s3 + $0x5] sm:$0x1]
  %v383 = vlaneseq
  %v384 = vshrl.u32 %v383, 7
  %v385 = vsub.s32 0, %v384
  %v386 = vrot.slane %v382, %v385
  %388 = vrot.lane.b32.xlu0 %v386, 126
  %v389 = vpop.permute.xlu0 %388
  %v390 = vrot.slane %v389, 4
  %v391 = vsel %vm86, %v390, %v389
  %v393 = vmul.f32 %v381, %v391
  %v395 = vcombine.high %v393, %v393
  %396 = vrot.lane.b32.xlu0 %v393, 2
  %v397 = vpop.permute.xlu0 %396
  %398 = vrot.lane.b32.xlu0 %v395, 2
  %v399 = vpop.permute.xlu0 %398
  %v400 = vsel %vm176, %v397, %v399
  %402 = vst [vmem:[#allocation4 + $0x14] sm:$0xf] %v400
  %v403 = vld [vmem:[#allocation2] sm:$0xff]
  %v404 = vld [vmem:[%s3 + $0x6] sm:$0x1]
  %v405 = vlaneseq
  %v406 = vshrl.u32 %v405, 7
  %v407 = vsub.s32 0, %v406
  %v408 = vrot.slane %v404, %v407
  %410 = vrot.lane.b32.xlu0 %v408, 127
  %v411 = vpop.permute.xlu0 %410
  %v412 = vrot.slane %v411, 4
  %v413 = vsel %vm66, %v412, %v411
  %v415 = vmul.f32 %v403, %v413
  %v417 = vcombine.high %v415, %v415
  %418 = vrot.lane.b32.xlu0 %v415, 1
  %v419 = vpop.permute.xlu0 %418
  %420 = vrot.lane.b32.xlu0 %v417, 1
  %v421 = vpop.permute.xlu0 %420
  %v422 = vsel %vm151, %v419, %v421
  %424 = vst [vmem:[#allocation4 + $0x18] sm:$0xf] %v422
  %v425 = vld [vmem:[#allocation2 + $0x4] sm:$0xf]
  %v426 = vld [vmem:[%s3 + $0x7] sm:$0x1]
  %v427 = vlaneseq
  %v428 = vshrl.u32 %v427, 7
  %v429 = vsub.s32 0, %v428
  %v430 = vrot.slane %v426, %v429
  %v431 = vmul.f32 %v425, %v430
  %432 = vst [vmem:[#allocation4 + $0x1c] sm:$0xf] %v431
  %v433 = vld [vmem:[#allocation2 + $0x4] sm:$0xff]
  %v434 = vld [vmem:[%s3 + $0x8] sm:$0x1]
  %v435 = vlaneseq
  %v436 = vshrl.u32 %v435, 7
  %v437 = vsub.s32 0, %v436
  %v438 = vrot.slane %v434, %v437
  %440 = vrot.lane.b32.xlu0 %v438, 1
  %v441 = vpop.permute.xlu0 %440
  %v442 = vrot.slane %v441, 4
  %v443 = vsel %vm151, %v442, %v441
  %v445 = vmul.f32 %v433, %v443
  %v447 = vcombine.high %v445, %v445
  %448 = vrot.lane.b32.xlu0 %v445, 127
  %v449 = vpop.permute.xlu0 %448
  %450 = vrot.lane.b32.xlu0 %v447, 127
  %v451 = vpop.permute.xlu0 %450
  %v452 = vsel %vm66, %v449, %v451
  %454 = vst [vmem:[#allocation4 + $0x20] sm:$0xf] %v452
  %v455 = vld [vmem:[#allocation2 + $0x4] sm:$0xff]
  %v456 = vld [vmem:[%s3 + $0x9] sm:$0x1]
  %v457 = vlaneseq
  %v458 = vshrl.u32 %v457, 7
  %v459 = vsub.s32 0, %v458
  %v460 = vrot.slane %v456, %v459
  %462 = vrot.lane.b32.xlu0 %v460, 2
  %v463 = vpop.permute.xlu0 %462
  %v464 = vrot.slane %v463, 4
  %v465 = vsel %vm176, %v464, %v463
  %v467 = vmul.f32 %v455, %v465
  %v469 = vcombine.high %v467, %v467
  %470 = vrot.lane.b32.xlu0 %v467, 126
  %v471 = vpop.permute.xlu0 %470
  %472 = vrot.lane.b32.xlu0 %v469, 126
  %v473 = vpop.permute.xlu0 %472
  %v474 = vsel %vm86, %v471, %v473
  %476 = vst [vmem:[#allocation4 + $0x24] sm:$0xf] %v474
  %v477 = vld [vmem:[#allocation2 + $0x4] sm:$0xff]
  %v478 = vld [vmem:[%s3 + $0xa] sm:$0x1]
  %v479 = vlaneseq
  %v480 = vshrl.u32 %v479, 7
  %v481 = vsub.s32 0, %v480
  %v482 = vrot.slane %v478, %v481
  %484 = vrot.lane.b32.xlu0 %v482, 14
  %v485 = vpop.permute.xlu0 %484
  %v486 = vrot.slane %v485, 4
  %v487 = vsel %vm377, %v486, %v485
  %v489 = vmul.f32 %v477, %v487
  %v491 = vcombine.high %v489, %v489
  %492 = vrot.lane.b32.xlu0 %v489, 114
  %v493 = vpop.permute.xlu0 %492
  %494 = vrot.lane.b32.xlu0 %v491, 114
  %v495 = vpop.permute.xlu0 %494
  %v496 = vsel %vm367, %v493, %v495
  %498 = vst [vmem:[#allocation4 + $0x28] sm:$0xf] %v496
  %v499 = vld [vmem:[#allocation2 + $0x4] sm:$0xff]
  %v500 = vld [vmem:[%s3 + $0xb] sm:$0x1]
  %v501 = vlaneseq
  %v502 = vshrl.u32 %v501, 7
  %v503 = vsub.s32 0, %v502
  %v504 = vrot.slane %v500, %v503
  %506 = vrot.lane.b32.xlu0 %v504, 15
  %v507 = vpop.permute.xlu0 %506
  %v508 = vrot.slane %v507, 4
  %v509 = vsel %vm353, %v508, %v507
  %v511 = vmul.f32 %v499, %v509
  %v513 = vcombine.high %v511, %v511
  %514 = vrot.lane.b32.xlu0 %v511, 113
  %v515 = vpop.permute.xlu0 %514
  %516 = vrot.lane.b32.xlu0 %v513, 113
  %v517 = vpop.permute.xlu0 %516
  %v518 = vsel %vm343, %v515, %v517
  %520 = vst [vmem:[#allocation4 + $0x2c] sm:$0xf] %v518
  %v521 = vld [vmem:[#allocation2 + $0x4] sm:$0xff]
  %v522 = vld [vmem:[%s3 + $0xc] sm:$0x1]
  %v523 = vlaneseq
  %v524 = vshrl.u32 %v523, 7
  %v525 = vsub.s32 0, %v524
  %v526 = vrot.slane %v522, %v525
  %528 = vrot.lane.b32.xlu0 %v526, 16
  %v529 = vpop.permute.xlu0 %528
  %v530 = vrot.slane %v529, 4
  %v531 = vsel %vm329, %v530, %v529
  %v533 = vmul.f32 %v521, %v531
  %v535 = vcombine.high %v533, %v533
  %536 = vrot.lane.b32.xlu0 %v533, 112
  %v537 = vpop.permute.xlu0 %536
  %538 = vrot.lane.b32.xlu0 %v535, 112
  %v539 = vpop.permute.xlu0 %538
  %v540 = vsel %vm319, %v537, %v539
  %542 = vst [vmem:[#allocation4 + $0x30] sm:$0xf] %v540
  %v543 = vld [vmem:[#allocation2 + $0x4] sm:$0xff]
  %v544 = vld [vmem:[%s3 + $0xd] sm:$0x1]
  %v545 = vlaneseq
  %v546 = vshrl.u32 %v545, 7
  %v547 = vsub.s32 0, %v546
  %v548 = vrot.slane %v544, %v547
  %550 = vrot.lane.b32.xlu0 %v548, 17
  %v551 = vpop.permute.xlu0 %550
  %v552 = vrot.slane %v551, 4
  %v553 = vsel %vm305, %v552, %v551
  %v555 = vmul.f32 %v543, %v553
  %v557 = vcombine.high %v555, %v555
  %558 = vrot.lane.b32.xlu0 %v555, 111
  %v559 = vpop.permute.xlu0 %558
  %560 = vrot.lane.b32.xlu0 %v557, 111
  %v561 = vpop.permute.xlu0 %560
  %v562 = vsel %vm295, %v559, %v561
  %564 = vst [vmem:[#allocation4 + $0x34] sm:$0xf] %v562
  %v565 = vld [vmem:[#allocation2 + $0x4] sm:$0xff]
  %v566 = vld [vmem:[%s3 + $0xe] sm:$0x1]
  %v567 = vlaneseq
  %v568 = vshrl.u32 %v567, 7
  %v569 = vsub.s32 0, %v568
  %v570 = vrot.slane %v566, %v569
  %572 = vrot.lane.b32.xlu0 %v570, 18
  %v573 = vpop.permute.xlu0 %572
  %v574 = vrot.slane %v573, 4
  %v575 = vsel %vm281, %v574, %v573
  %v577 = vmul.f32 %v565, %v575
  %v579 = vcombine.high %v577, %v577
  %580 = vrot.lane.b32.xlu0 %v577, 110
  %v581 = vpop.permute.xlu0 %580
  %582 = vrot.lane.b32.xlu0 %v579, 110
  %v583 = vpop.permute.xlu0 %582
  %v584 = vsel %vm271, %v581, %v583
  %586 = vst [vmem:[#allocation4 + $0x38] sm:$0xf] %v584
  %v587 = vld [vmem:[%s4] sm:$0xf]
  %v588 = vld [vmem:[%s4 + $0x4] sm:$0xf]
  %v589 = vld [vmem:[#allocation4] sm:$0xff]
  %v590 = vld [vmem:[#allocation4 + $0x8] sm:$0xff]
  %v591 = vld [vmem:[#allocation4 + $0x10] sm:$0xff]
  %v592 = vld [vmem:[#allocation4 + $0x18] sm:$0xff]
  %v593 = vld [vmem:[#allocation4 + $0x20] sm:$0xff]
  %v594 = vld [vmem:[#allocation4 + $0x28] sm:$0xff]
  %v595 = vld [vmem:[#allocation4 + $0x30] sm:$0xff]
  %v596 = vld [vmem:[#allocation4 + $0x38] sm:$0xf]
  %v597 = vpack.c.bf16 %v590, %v589
  %v598 = vpack.c.bf16 %v592, %v591
  %v599 = vpack.c.bf16 %v594, %v593
  %v600 = vpack.c.bf16 %v596, %v595
  %v601 = vld [vmem:[%s5] sm:$0xff]
  %v602 = vld [vmem:[%s5 + $0x8] sm:$0xff]
  %604 = vset.pattern.permute.xlu0 0
  %605 = vperm.xlu0 %604, %v601
  %v606 = vpop.permute.xlu0 %605
  %609 = vset.pattern.permute.xlu0 0
  %610 = vperm.xlu0 %609, %v602
  %v611 = vpop.permute.xlu0 %610
  %v615 = vunpack.c.l.b16 %v587
  %v616 = vunpack.c.l.b16 %v588
  %v617 = vpack.c.b16 %v616, %v615
  %vm618 = vcmask 490496
  %v620 = vsel %vm618, %v617, 0
  %vm622 = vcmask 1045504
  %v624 = vsel %vm622, %v600, 0
  %626 = vmatprep.subr.bf16.mxu0 0
  %627 = vmatpush1.bf16.msra.mxu0 0
  %628 = vmatprep.subr.bf16.mxu0 0
  %629 = vmatpush1.bf16.msra.mxu0 0
  %630 = vmatprep.subr.bf16.mxu0 0
  %631 = vmatpush1.bf16.msra.mxu0 0
  %632 = vmatprep.subr.bf16.mxu0 0
  %633 = vmatpush1.bf16.msra.mxu0 0
  %634 = vmatprep.subr.bf16.mxu0 0
  %635 = vmatpush1.bf16.msra.mxu0 %v624
  %636 = vmatprep.subr.bf16.mxu0 0
  %637 = vmatpush1.bf16.msra.mxu0 %v599
  %638 = vmatprep.subr.bf16.mxu0 0
  %639 = vmatpush1.bf16.msra.mxu0 %v598
  %640 = vmatprep.subr.bf16.mxu0 0
  %641 = vmatpush1.bf16.msra.mxu0 %v597
  %642 = vmatprep.subr.bf16.mxu0 0
  %643 = vmatpush2.bf16.msra.mxu0 0
  %644 = vmatprep.subr.bf16.mxu0 0
  %645 = vmatpush2.bf16.msra.mxu0 0
  %646 = vmatprep.subr.bf16.mxu0 0
  %647 = vmatpush2.bf16.msra.mxu0 0
  %648 = vmatprep.subr.bf16.mxu0 0
  %649 = vmatpush2.bf16.msra.mxu0 0
  %650 = vmatprep.subr.bf16.mxu0 0
  %651 = vmatpush2.bf16.msra.mxu0 0
  %652 = vmatprep.subr.bf16.mxu0 0
  %653 = vmatpush2.bf16.msra.mxu0 0
  %654 = vmatprep.subr.bf16.mxu0 0
  %655 = vmatpush2.bf16.msra.mxu0 0
  %656 = vmatprep.subr.bf16.mxu0 0
  %657 = vmatpush2.bf16.msra.mxu0 0
  %658 = vmatprep.mubr.bf16.mxu0 0
  %659 = vmatmul.mubr.bf16.gmra.mxu0 %v620
  %v660 = vpop.f32.mrf.mxu0
  %v661 = vadd.f32 %v606, %v660
  %v662 = vpop.f32.mrf.mxu0
  %v663 = vpop.f32.mrf.mxu0
  %v664 = vadd.f32 %v611, %v663
  %v665 = vpop.f32.mrf.mxu0
  %666 = vdwg.mxu0
  %v667 = vmax.f32 %v661, 0.0
  %v668 = vmax.f32 %v664, 0.0
  %v669 = vpack.c.bf16 %v668, %v667
  %v670 = vld [vmem:[%s6] sm:$0xf]
  %v671 = vld [vmem:[%s6 + $0x4] sm:$0xf]
  %v672 = vld [vmem:[%s6 + $0x8] sm:$0xf]
  %v673 = vld [vmem:[%s6 + $0xc] sm:$0xf]
  %v674 = vld [vmem:[%s7] sm:$0xff]
  %v675 = vld [vmem:[%s7 + $0x8] sm:$0xff]
  %v676 = vld [vmem:[%s7 + $0x10] sm:$0xff]
  %v677 = vld [vmem:[%s7 + $0x18] sm:$0xff]
  %679 = vset.pattern.permute.xlu0 0
  %680 = vperm.xlu0 %679, %v674
  %v681 = vpop.permute.xlu0 %680
  %684 = vset.pattern.permute.xlu0 0
  %685 = vperm.xlu0 %684, %v675
  %v686 = vpop.permute.xlu0 %685
  %689 = vset.pattern.permute.xlu0 0
  %690 = vperm.xlu0 %689, %v676
  %v691 = vpop.permute.xlu0 %690
  %694 = vset.pattern.permute.xlu0 0
  %695 = vperm.xlu0 %694, %v677
  %v696 = vpop.permute.xlu0 %695
  %v702 = vunpack.c.l.b16 %v670
  %v703 = vunpack.c.l.b16 %v671
  %v704 = vunpack.c.l.b16 %v672
  %v705 = vunpack.c.l.b16 %v673
  %v706 = vpack.c.b16 %v703, %v702
  %v707 = vpack.c.b16 %v705, %v704
  %v709 = vsel %vm329, %v706, 0
  %v712 = vsel %vm329, %v707, 0
  %714 = vmatprep.subr.bf16.mxu0 0
  %715 = vmatpush1.bf16.msra.mxu0 0
  %716 = vmatprep.subr.bf16.mxu0 0
  %717 = vmatpush1.bf16.msra.mxu0 0
  %718 = vmatprep.subr.bf16.mxu0 0
  %719 = vmatpush1.bf16.msra.mxu0 0
  %720 = vmatprep.subr.bf16.mxu0 0
  %721 = vmatpush1.bf16.msra.mxu0 0
  %722 = vmatprep.subr.bf16.mxu0 0
  %723 = vmatpush1.bf16.msra.mxu0 0
  %724 = vmatprep.subr.bf16.mxu0 0
  %725 = vmatpush1.bf16.msra.mxu0 0
  %726 = vmatprep.subr.bf16.mxu0 0
  %727 = vmatpush1.bf16.msra.mxu0 0
  %728 = vmatprep.subr.bf16.mxu0 0
  %729 = vmatpush1.bf16.msra.mxu0 %v669
  %730 = vmatprep.subr.bf16.mxu0 0
  %731 = vmatpush2.bf16.msra.mxu0 0
  %732 = vmatprep.subr.bf16.mxu0 0
  %733 = vmatpush2.bf16.msra.mxu0 0
  %734 = vmatprep.subr.bf16.mxu0 0
  %735 = vmatpush2.bf16.msra.mxu0 0
  %736 = vmatprep.subr.bf16.mxu0 0
  %737 = vmatpush2.bf16.msra.mxu0 0
  %738 = vmatprep.subr.bf16.mxu0 0
  %739 = vmatpush2.bf16.msra.mxu0 0
  %740 = vmatprep.subr.bf16.mxu0 0
  %741 = vmatpush2.bf16.msra.mxu0 0
  %742 = vmatprep.subr.bf16.mxu0 0
  %743 = vmatpush2.bf16.msra.mxu0 0
  %744 = vmatprep.subr.bf16.mxu0 0
  %745 = vmatpush2.bf16.msra.mxu0 0
  %746 = vmatprep.mubr.bf16.mxu0 0
  %747 = vmatmul.mubr.bf16.gmra.mxu0 %v709
  %v748 = vpop.f32.mrf.mxu0
  %v749 = vadd.f32 %v681, %v748
  %v750 = vpop.f32.mrf.mxu0
  %v751 = vpop.f32.mrf.mxu0
  %v752 = vadd.f32 %v686, %v751
  %v753 = vpop.f32.mrf.mxu0
  %754 = vmatprep.mubr.bf16.mxu0 0
  %755 = vmatmul.mubr.bf16.gmra.mxu0 %v712
  %v756 = vpop.f32.mrf.mxu0
  %v757 = vadd.f32 %v691, %v756
  %v758 = vpop.f32.mrf.mxu0
  %v759 = vpop.f32.mrf.mxu0
  %v760 = vadd.f32 %v696, %v759
  %v761 = vpop.f32.mrf.mxu0
  %762 = vdwg.mxu0
  %v763 = vmax.f32 %v749, 0.0
  %v764 = vmax.f32 %v752, 0.0
  %v765 = vmax.f32 %v757, 0.0
  %v766 = vmax.f32 %v760, 0.0
  %v767 = vpack.c.bf16 %v764, %v763
  %v768 = vpack.c.bf16 %v766, %v765
  %v769 = vld [vmem:[%s8] sm:$0xf]
  %v770 = vld [vmem:[%s8 + $0x4] sm:$0xf]
  %v771 = vld [vmem:[%s8 + $0x8] sm:$0xf]
  %v772 = vld [vmem:[%s8 + $0xc] sm:$0xf]
  %v773 = vld [vmem:[%s9] sm:$0xff]
  %v774 = vld [vmem:[%s9 + $0x8] sm:$0xff]
  %v775 = vld [vmem:[%s9 + $0x10] sm:$0xff]
  %v776 = vld [vmem:[%s9 + $0x18] sm:$0xff]
  %778 = vset.pattern.permute.xlu0 0
  %779 = vperm.xlu0 %778, %v773
  %v780 = vpop.permute.xlu0 %779
  %783 = vset.pattern.permute.xlu0 0
  %784 = vperm.xlu0 %783, %v774
  %v785 = vpop.permute.xlu0 %784
  %788 = vset.pattern.permute.xlu0 0
  %789 = vperm.xlu0 %788, %v775
  %v790 = vpop.permute.xlu0 %789
  %793 = vset.pattern.permute.xlu0 0
  %794 = vperm.xlu0 %793, %v776
  %v795 = vpop.permute.xlu0 %794
  %v801 = vunpack.c.l.b16 %v769
  %v802 = vunpack.c.l.b16 %v770
  %v803 = vunpack.c.l.b16 %v771
  %v804 = vunpack.c.l.b16 %v772
  %v805 = vpack.c.b16 %v802, %v801
  %v806 = vpack.c.b16 %v804, %v803
  %vm807 = vcmask 261120
  %v809 = vsel %vm807, %v805, 0
  %v812 = vsel %vm807, %v806, 0
  %814 = vmatprep.subr.bf16.mxu0 0
  %815 = vmatpush1.bf16.msra.mxu0 0
  %816 = vmatprep.subr.bf16.mxu0 0
  %817 = vmatpush1.bf16.msra.mxu0 0
  %818 = vmatprep.subr.bf16.mxu0 0
  %819 = vmatpush1.bf16.msra.mxu0 0
  %820 = vmatprep.subr.bf16.mxu0 0
  %821 = vmatpush1.bf16.msra.mxu0 0
  %822 = vmatprep.subr.bf16.mxu0 0
  %823 = vmatpush1.bf16.msra.mxu0 0
  %824 = vmatprep.subr.bf16.mxu0 0
  %825 = vmatpush1.bf16.msra.mxu0 0
  %826 = vmatprep.subr.bf16.mxu0 0
  %827 = vmatpush1.bf16.msra.mxu0 %v768
  %828 = vmatprep.subr.bf16.mxu0 0
  %829 = vmatpush1.bf16.msra.mxu0 %v767
  %830 = vmatprep.subr.bf16.mxu0 0
  %831 = vmatpush2.bf16.msra.mxu0 0
  %832 = vmatprep.subr.bf16.mxu0 0
  %833 = vmatpush2.bf16.msra.mxu0 0
  %834 = vmatprep.subr.bf16.mxu0 0
  %835 = vmatpush2.bf16.msra.mxu0 0
  %836 = vmatprep.subr.bf16.mxu0 0
  %837 = vmatpush2.bf16.msra.mxu0 0
  %838 = vmatprep.subr.bf16.mxu0 0
  %839 = vmatpush2.bf16.msra.mxu0 0
  %840 = vmatprep.subr.bf16.mxu0 0
  %841 = vmatpush2.bf16.msra.mxu0 0
  %842 = vmatprep.subr.bf16.mxu0 0
  %843 = vmatpush2.bf16.msra.mxu0 0
  %844 = vmatprep.subr.bf16.mxu0 0
  %845 = vmatpush2.bf16.msra.mxu0 0
  %846 = vmatprep.mubr.bf16.mxu0 0
  %847 = vmatmul.mubr.bf16.gmra.mxu0 %v809
  %v848 = vpop.f32.mrf.mxu0
  %v849 = vadd.f32 %v780, %v848
  %v850 = vpop.f32.mrf.mxu0
  %v851 = vpop.f32.mrf.mxu0
  %v852 = vadd.f32 %v785, %v851
  %v853 = vpop.f32.mrf.mxu0
  %854 = vmatprep.mubr.bf16.mxu0 0
  %855 = vmatmul.mubr.bf16.gmra.mxu0 %v812
  %v856 = vpop.f32.mrf.mxu0
  %v857 = vadd.f32 %v790, %v856
  %v858 = vpop.f32.mrf.mxu0
  %v859 = vpop.f32.mrf.mxu0
  %v860 = vadd.f32 %v795, %v859
  %v861 = vpop.f32.mrf.mxu0
  %862 = vdwg.mxu0
  %v863 = vmax.f32 %v849, 0.0
  %v864 = vmax.f32 %v852, 0.0
  %v865 = vmax.f32 %v857, 0.0
  %v866 = vmax.f32 %v860, 0.0
  %v867 = vpack.c.bf16 %v864, %v863
  %v868 = vpack.c.bf16 %v866, %v865
  %v869 = vld [vmem:[%s10] sm:$0xf]
  %v870 = vld [vmem:[%s10 + $0x4] sm:$0xf]
  %v871 = vld [vmem:[%s10 + $0x8] sm:$0xf]
  %v872 = vld [vmem:[%s10 + $0xc] sm:$0xf]
  %v873 = vld [vmem:[%s10 + $0x10] sm:$0xf]
  %v874 = vld [vmem:[%s10 + $0x14] sm:$0xf]
  %v875 = vld [vmem:[%s10 + $0x18] sm:$0xf]
  %v876 = vld [vmem:[%s10 + $0x1c] sm:$0xf]
  %v877 = vld [vmem:[%s10 + $0x20] sm:$0xf]
  %v878 = vld [vmem:[%s10 + $0x24] sm:$0xf]
  %v879 = vld [vmem:[%s10 + $0x28] sm:$0xf]
  %v880 = vld [vmem:[%s10 + $0x2c] sm:$0xf]
  %v881 = vld [vmem:[%s10 + $0x30] sm:$0xf]
  %v882 = vld [vmem:[%s10 + $0x34] sm:$0xf]
  %v883 = vld [vmem:[%s10 + $0x38] sm:$0xf]
  %v884 = vld [vmem:[%s10 + $0x3c] sm:$0xf]
  %v901 = vunpack.c.l.b16 %v869
  %v902 = vunpack.c.l.b16 %v870
  %v903 = vunpack.c.l.b16 %v871
  %v904 = vunpack.c.l.b16 %v872
  %v905 = vunpack.c.l.b16 %v873
  %v906 = vunpack.c.l.b16 %v874
  %v907 = vunpack.c.l.b16 %v875
  %v908 = vunpack.c.l.b16 %v876
  %v909 = vunpack.c.l.b16 %v877
  %v910 = vunpack.c.l.b16 %v878
  %v911 = vunpack.c.l.b16 %v879
  %v912 = vunpack.c.l.b16 %v880
  %v913 = vunpack.c.l.b16 %v881
  %v914 = vunpack.c.l.b16 %v882
  %v915 = vunpack.c.l.b16 %v883
  %v916 = vunpack.c.l.b16 %v884
  %v917 = vpack.c.b16 %v902, %v901
  %v918 = vpack.c.b16 %v904, %v903
  %v919 = vpack.c.b16 %v906, %v905
  %v920 = vpack.c.b16 %v908, %v907
  %v921 = vpack.c.b16 %v910, %v909
  %v922 = vpack.c.b16 %v912, %v911
  %v923 = vpack.c.b16 %v914, %v913
  %v924 = vpack.c.b16 %v916, %v915
  %933 = vmatprep.subr.bf16.mxu0 0
  %934 = vmatpush1.bf16.msra.mxu0 %v924
  %935 = vmatprep.subr.bf16.mxu0 0
  %936 = vmatpush1.bf16.msra.mxu0 %v923
  %937 = vmatprep.subr.bf16.mxu0 0
  %938 = vmatpush1.bf16.msra.mxu0 %v922
  %939 = vmatprep.subr.bf16.mxu0 0
  %940 = vmatpush1.bf16.msra.mxu0 %v921
  %941 = vmatprep.subr.bf16.mxu0 0
  %942 = vmatpush1.bf16.msra.mxu0 %v920
  %943 = vmatprep.subr.bf16.mxu0 0
  %944 = vmatpush1.bf16.msra.mxu0 %v919
  %945 = vmatprep.subr.bf16.mxu0 0
  %946 = vmatpush1.bf16.msra.mxu0 %v918
  %947 = vmatprep.subr.bf16.mxu0 0
  %948 = vmatpush1.bf16.msra.mxu0 %v917
  %949 = vmatprep.subr.bf16.mxu0 0
  %950 = vmatpush2.bf16.msra.mxu0 0
  %951 = vmatprep.subr.bf16.mxu0 0
  %952 = vmatpush2.bf16.msra.mxu0 0
  %953 = vmatprep.subr.bf16.mxu0 0
  %954 = vmatpush2.bf16.msra.mxu0 0
  %955 = vmatprep.subr.bf16.mxu0 0
  %956 = vmatpush2.bf16.msra.mxu0 0
  %957 = vmatprep.subr.bf16.mxu0 0
  %958 = vmatpush2.bf16.msra.mxu0 0
  %959 = vmatprep.subr.bf16.mxu0 0
  %960 = vmatpush2.bf16.msra.mxu0 0
  %961 = vmatprep.subr.bf16.mxu0 0
  %962 = vmatpush2.bf16.msra.mxu0 0
  %963 = vmatprep.subr.bf16.mxu0 0
  %964 = vmatpush2.bf16.msra.mxu0 0
  %965 = vmatprep.mubr.bf16.mxu0 0
  %966 = vmatmul.mubr.bf16.gmra.mxu0 %v867
  %v967 = vpop.f32.mrf.mxu0
  %v968 = vadd.f32 0.0, %v967
  %v969 = vpop.f32.mrf.mxu0
  %v970 = vpop.f32.mrf.mxu0
  %v971 = vadd.f32 0.0, %v970
  %v972 = vpop.f32.mrf.mxu0
  %973 = vmatprep.mubr.bf16.mxu0 0
  %974 = vmatmul.mubr.bf16.gmra.mxu0 %v868
  %v975 = vpop.f32.mrf.mxu0
  %v976 = vadd.f32 0.0, %v975
  %v977 = vpop.f32.mrf.mxu0
  %v978 = vpop.f32.mrf.mxu0
  %v979 = vadd.f32 0.0, %v978
  %v980 = vpop.f32.mrf.mxu0
  %981 = vdwg.mxu0
  %v982 = vmul.f32 %v968, 0.015625
  %v983 = vmul.f32 %v971, 0.015625
  %v984 = vmul.f32 %v976, 0.015625
  %v985 = vmul.f32 %v979, 0.015625
  %986 = vst.msk [vmem:[%s11] sm:$0xff] %vm176, %v982
  %987 = vst.msk [vmem:[%s11 + $0x8] sm:$0xff] %vm176, %v983
  %988 = vst.msk [vmem:[%s11 + $0x10] sm:$0xff] %vm176, %v984
  %989 = vst.msk [vmem:[%s11 + $0x18] sm:$0xff] %vm176, %v985
  // Predicated region
  $region46: #{tpu_custom_call.1} parent=0 // pred_check
    _
  $region47: #{tpu_custom_call.1} parent=0 // pred_check_branch
    %991 = sbr.rel (0) target = $region49
  $region48: #{tpu_custom_call.1} parent=0 // pred_region
    _
  $region49: #{tpu_custom_call.1} parent=0 // pred_fallthru
    _
  // Predicated region
  $region50: #{tpu_custom_call.1} parent=0 // pred_check
    _
  $region51: #{tpu_custom_call.1} parent=0 // pred_check_branch
    %993 = sbr.rel (0) target = $region53
  $region52: #{tpu_custom_call.1} parent=0 // pred_region
    _
  $region53: #{tpu_custom_call.1} parent=0 // pred_fallthru
    _

// kernel: tpu_custom_call.1
$region0: #{tpu_custom_call.1}
  #allocation0 [shape = 'u32[]', space=smem, size = 0x4, offset = 0x4, fixed_abs, tag = 'smem constant byte address 0x4 - core index']
  #allocation1 [shape = 'u32[144,128]{1,0:T(1,128)}', space=vmem, size = 0x12000, scoped, tag = 'internal scratch']
  #allocation2 [shape = 'f32[4,384]{1,0:T(4,128)}', space=vmem, size = 0x1800, scoped, tag = 'scratch operand']
  #allocation3 [shape = 'f32[8,384]{1,0:T(8,128)}', space=vmem, size = 0x3000, scoped, tag = 'scratch operand']
  #allocation4 [shape = 'f32[60,128]{1,0:T(8,128)}', space=vmem, size = 0x8000, scoped, tag = 'scratch operand']
  %s0 = inlined_call_operand.vmem [shape: f32[4,128], index: 0, kind: input, shape index: {}]
  %s1 = inlined_call_operand.vmem [shape: f32[2,128], index: 1, kind: input, shape index: {}]
  %s2 = inlined_call_operand.vmem [shape: f32[8,128], index: 2, kind: input, shape index: {}]
  %s3 = inlined_call_operand.vmem [shape: f32[15,128], index: 3, kind: input, shape index: {}]
  %s4 = inlined_call_operand.vmem [shape: bf16[16,60], index: 4, kind: input, shape index: {}]
  %s5 = inlined_call_operand.vmem [shape: f32[16,1], index: 5, kind: input, shape index: {}]
  %s6 = inlined_call_operand.vmem [shape: bf16[32,16], index: 6, kind: input, shape index: {}]
  %s7 = inlined_call_operand.vmem [shape: f32[32,1], index: 7, kind: input, shape index: {}]
  %s8 = inlined_call_operand.vmem [shape: bf16[32,32], index: 8, kind: input, shape index: {}]
  %s9 = inlined_call_operand.vmem [shape: f32[32,1], index: 9, kind: input, shape index: {}]
  %s10 = inlined_call_operand.vmem [shape: bf16[128,2], index: 10, kind: input, shape index: {}]
  %s11 = inlined_call_operand.vmem [shape: f32[32,2], index: 11, kind: output, shape index: {}]
  %s12 = sld [smem:[#allocation0]]
  $region54: #{tpu_custom_call.1} parent=0
    _
  %s14 = ssub.s32 1, %s12
  %s15 = scalar_select 0, %s14, %s12
  // Predicated region
  $region2: #{tpu_custom_call.1} parent=0 // pred_check
    _
  $region3: #{tpu_custom_call.1} parent=0 // pred_check_branch
    %17 = sbr.rel (0) target = $region5
  $region4: #{tpu_custom_call.1} parent=0 // pred_region
    _
  $region5: #{tpu_custom_call.1} parent=0 // pred_fallthru
    _
  // Predicated region
  $region6: #{tpu_custom_call.1} parent=0 // pred_check
    _
  $region7: #{tpu_custom_call.1} parent=0 // pred_check_branch
    %19 = sbr.rel (0) target = $region9
  $region8: #{tpu_custom_call.1} parent=0 // pred_region
    _
  $region9: #{tpu_custom_call.1} parent=0 // pred_fallthru
    _
  // Predicated region
  $region10: #{tpu_custom_call.1} parent=0 // pred_check
    _
  $region11: #{tpu_custom_call.1} parent=0 // pred_check_branch
    %21 = sbr.rel (0) target = $region13
  $region12: #{tpu_custom_call.1} parent=0 // pred_region
    _
  $region13: #{tpu_custom_call.1} parent=0 // pred_fallthru
    _
  // Predicated region
  $region14: #{tpu_custom_call.1} parent=0 // pred_check
    _
  $region15: #{tpu_custom_call.1} parent=0 // pred_check_branch
    %23 = sbr.rel (0) target = $region17
  $region16: #{tpu_custom_call.1} parent=0 // pred_region
    _
  $region17: #{tpu_custom_call.1} parent=0 // pred_fallthru
    _
  // Predicated region
  $region18: #{tpu_custom_call.1} parent=0 // pred_check
    _
  $region19: #{tpu_custom_call.1} parent=0 // pred_check_branch
    %25 = sbr.rel (0) target = $region21
  $region20: #{tpu_custom_call.1} parent=0 // pred_region
    _
  $region21: #{tpu_custom_call.1} parent=0 // pred_fallthru
    _
  // Predicated region
  $region22: #{tpu_custom_call.1} parent=0 // pred_check
    _
  $region23: #{tpu_custom_call.1} parent=0 // pred_check_branch
    %27 = sbr.rel (0) target = $region25
  $region24: #{tpu_custom_call.1} parent=0 // pred_region
    _
  $region25: #{tpu_custom_call.1} parent=0 // pred_fallthru
    _
  // Predicated region
  $region26: #{tpu_custom_call.1} parent=0 // pred_check
    _
  $region27: #{tpu_custom_call.1} parent=0 // pred_check_branch
    %29 = sbr.rel (0) target = $region29
  $region28: #{tpu_custom_call.1} parent=0 // pred_region
    _
  $region29: #{tpu_custom_call.1} parent=0 // pred_fallthru
    _
  // Predicated region
  $region30: #{tpu_custom_call.1} parent=0 // pred_check
    _
  $region31: #{tpu_custom_call.1} parent=0 // pred_check_branch
    %31 = sbr.rel (0) target = $region33
  $region32: #{tpu_custom_call.1} parent=0 // pred_region
    _
  $region33: #{tpu_custom_call.1} parent=0 // pred_fallthru
    _
  // Predicated region
  $region34: #{tpu_custom_call.1} parent=0 // pred_check
    _
  $region35: #{tpu_custom_call.1} parent=0 // pred_check_branch
    %33 = sbr.rel (0) target = $region37
  $region36: #{tpu_custom_call.1} parent=0 // pred_region
    _
  $region37: #{tpu_custom_call.1} parent=0 // pred_fallthru
    _
  // Predicated region
  $region38: #{tpu_custom_call.1} parent=0 // pred_check
    _
  $region39: #{tpu_custom_call.1} parent=0 // pred_check_branch
    %35 = sbr.rel (0) target = $region41
  $region40: #{tpu_custom_call.1} parent=0 // pred_region
    _
  $region41: #{tpu_custom_call.1} parent=0 // pred_fallthru
    _
  // Predicated region
  $region42: #{tpu_custom_call.1} parent=0 // pred_check
    _
  $region43: #{tpu_custom_call.1} parent=0 // pred_check_branch
    %37 = sbr.rel (0) target = $region45
  $region44: #{tpu_custom_call.1} parent=0 // pred_region
    _
  $region45: #{tpu_custom_call.1} parent=0 // pred_fallthru
    _
  %39 = vst [vmem:[#allocation2] sm:$0xf] 0.0
  %v40 = vld [vmem:[#allocation2 + $0x8] sm:$0xf]
  %41 = vst [vmem:[#allocation2 + $0x8] sm:$0xf] %v40
  %42 = vst [vmem:[#allocation2 + $0x8] sm:$0xf] 0.0
  %43 = vst [vmem:[#allocation3] sm:$0xff] 0.0
  %44 = vst [vmem:[#allocation3 + $0x10] sm:$0xff] 0.0
  %v45 = vld [vmem:[%s0] sm:$0xf]
  %46 = vst [vmem:[#allocation3 + $0x8] sm:$0xf] %v45
  %v47 = vmul.f32 %v45, %v45
  %v49 = vrot.slane %v47, 4
  %51 = vst [vmem:[#allocation3 + $0x8] sm:$0xf0] %v49
  %v52 = vld [vmem:[#allocation3 + $0x8] sm:$0xff]
  %v53 = vld [vmem:[#allocation3 + $0x8] sm:$0xff]
  %v54 = vld [vmem:[#allocation3 + $0x10] sm:$0xff]
  %v55 = vld [vmem:[%s2] sm:$0x1]
  %v56 = vlaneseq
  %v57 = vshrl.u32 %v56, 7
  %v58 = vsub.s32 0, %v57
  %v59 = vrot.slane %v55, %v58
  %62 = vrot.lane.b32.xlu0 %v53, 127
  %v63 = vpop.permute.xlu0 %62
  %64 = vrot.lane.b32.xlu0 %v54, 127
  %v65 = vpop.permute.xlu0 %64
  %vm66 = vcmask 1039360
  %v67 = vsel %vm66, %v63, %v65
  %v69 = vmul.f32 %v59, %v67
  %v70 = vadd.f32 %v52, %v69
  %71 = vst [vmem:[#allocation3 + $0x8] sm:$0xff] %v70
  %v72 = vld [vmem:[#allocation3 + $0x8] sm:$0xff]
  %v73 = vld [vmem:[#allocation3 + $0x8] sm:$0xff]
  %v74 = vld [vmem:[#allocation3 + $0x10] sm:$0xff]
  %v75 = vld [vmem:[%s2 + $0x1] sm:$0x1]
  %v76 = vlaneseq
  %v77 = vshrl.u32 %v76, 7
  %v78 = vsub.s32 0, %v77
  %v79 = vrot.slane %v75, %v78
  %82 = vrot.lane.b32.xlu0 %v73, 126
  %v83 = vpop.permute.xlu0 %82
  %84 = vrot.lane.b32.xlu0 %v74, 126
  %v85 = vpop.permute.xlu0 %84
  %vm86 = vcmask 1031168
  %v87 = vsel %vm86, %v83, %v85
  %v89 = vmul.f32 %v79, %v87
  %v90 = vadd.f32 %v72, %v89
  %91 = vst [vmem:[#allocation3 + $0x8] sm:$0xff] %v90
  %v92 = vld [vmem:[#allocation3 + $0x8] sm:$0xff]
  %v93 = vld [vmem:[#allocation3 + $0x8] sm:$0xff]
  %v94 = vld [vmem:[#allocation3 + $0x10] sm:$0xff]
  %v95 = vld [vmem:[%s2 + $0x2] sm:$0x1]
  %v96 = vlaneseq
  %v97 = vshrl.u32 %v96, 7
  %v98 = vsub.s32 0, %v97
  %v99 = vrot.slane %v95, %v98
  %102 = vrot.lane.b32.xlu0 %v93, 124
  %v103 = vpop.permute.xlu0 %102
  %104 = vrot.lane.b32.xlu0 %v94, 124
  %v105 = vpop.permute.xlu0 %104
  %vm106 = vcmask 1014784
  %v107 = vsel %vm106, %v103, %v105
  %v109 = vmul.f32 %v99, %v107
  %v110 = vadd.f32 %v92, %v109
  %111 = vst [vmem:[#allocation3 + $0x8] sm:$0xff] %v110
  %v112 = vld [vmem:[#allocation3 + $0x8] sm:$0xff]
  %v113 = vld [vmem:[#allocation3 + $0x8] sm:$0xff]
  %v114 = vld [vmem:[#allocation3 + $0x10] sm:$0xff]
  %v115 = vld [vmem:[%s2 + $0x3] sm:$0x1]
  %v116 = vlaneseq
  %v117 = vshrl.u32 %v116, 7
  %v118 = vsub.s32 0, %v117
  %v119 = vrot.slane %v115, %v118
  %122 = vrot.lane.b32.xlu0 %v113, 120
  %v123 = vpop.permute.xlu0 %122
  %124 = vrot.lane.b32.xlu0 %v114, 120
  %v125 = vpop.permute.xlu0 %124
  %vm126 = vcmask 982016
  %v127 = vsel %vm126, %v123, %v125
  %v129 = vmul.f32 %v119, %v127
  %v130 = vadd.f32 %v112, %v129
  %131 = vst [vmem:[#allocation3 + $0x8] sm:$0xff] %v130
  %v132 = vld [vmem:[#allocation3 + $0x8] sm:$0xff]
  %v133 = vld [vmem:[#allocation3] sm:$0xff]
  %v134 = vld [vmem:[%s2 + $0x4] sm:$0x1]
  %136 = vrot.lane.b32.xlu0 %v132, 127
  %v137 = vpop.permute.xlu0 %136
  %v139 = vsub.f32 %v133, %v137
  %v140 = vsub.f32 %v132, %v137
  %v141 = vlaneseq
  %v142 = vshrl.u32 %v141, 7
  %v143 = vsub.s32 0, %v142
  %v144 = vrot.slane %v134, %v143
  %147 = vrot.lane.b32.xlu0 %v139, 1
  %v148 = vpop.permute.xlu0 %147
  %149 = vrot.lane.b32.xlu0 %v140, 1
  %v150 = vpop.permute.xlu0 %149
  %vm151 = vcmask 7168
  %v152 = vsel %vm151, %v148, %v150
  %v154 = vmul.f32 %v144, %v152
  %v155 = vadd.f32 %v132, %v154
  %156 = vst [vmem:[#allocation3 + $0x8] sm:$0xff] %v155
  %v157 = vld [vmem:[#allocation3 + $0x8] sm:$0xff]
  %v158 = vld [vmem:[#allocation3] sm:$0xff]
  %v159 = vld [vmem:[%s2 + $0x5] sm:$0x1]
  %161 = vrot.lane.b32.xlu0 %v157, 126
  %v162 = vpop.permute.xlu0 %161
  %v164 = vsub.f32 %v158, %v162
  %v165 = vsub.f32 %v157, %v162
  %v166 = vlaneseq
  %v167 = vshrl.u32 %v166, 7
  %v168 = vsub.s32 0, %v167
  %v169 = vrot.slane %v159, %v168
  %172 = vrot.lane.b32.xlu0 %v164, 2
  %v173 = vpop.permute.xlu0 %172
  %174 = vrot.lane.b32.xlu0 %v165, 2
  %v175 = vpop.permute.xlu0 %174
  %vm176 = vcmask 15360
  %v177 = vsel %vm176, %v173, %v175
  %v179 = vmul.f32 %v169, %v177
  %v180 = vadd.f32 %v157, %v179
  %181 = vst [vmem:[#allocation3 + $0x8] sm:$0xff] %v180
  %v182 = vld [vmem:[#allocation3 + $0x8] sm:$0xff]
  %v183 = vld [vmem:[#allocation3] sm:$0xff]
  %v184 = vld [vmem:[%s2 + $0x6] sm:$0x1]
  %186 = vrot.lane.b32.xlu0 %v182, 124
  %v187 = vpop.permute.xlu0 %186
  %v189 = vsub.f32 %v183, %v187
  %v190 = vsub.f32 %v182, %v187
  %v191 = vlaneseq
  %v192 = vshrl.u32 %v191, 7
  %v193 = vsub.s32 0, %v192
  %v194 = vrot.slane %v184, %v193
  %197 = vrot.lane.b32.xlu0 %v189, 4
  %v198 = vpop.permute.xlu0 %197
  %199 = vrot.lane.b32.xlu0 %v190, 4
  %v200 = vpop.permute.xlu0 %199
  %vm201 = vcmask 31744
  %v202 = vsel %vm201, %v198, %v200
  %v204 = vmul.f32 %v194, %v202
  %v205 = vadd.f32 %v182, %v204
  %206 = vst [vmem:[#allocation3 + $0x8] sm:$0xff] %v205
  %v207 = vld [vmem:[#allocation3 + $0x8] sm:$0xff]
  %v208 = vld [vmem:[#allocation3] sm:$0xff]
  %v209 = vld [vmem:[%s2 + $0x7] sm:$0x1]
  %211 = vrot.lane.b32.xlu0 %v207, 120
  %v212 = vpop.permute.xlu0 %211
  %v214 = vsub.f32 %v208, %v212
  %v215 = vsub.f32 %v207, %v212
  %v216 = vlaneseq
  %v217 = vshrl.u32 %v216, 7
  %v218 = vsub.s32 0, %v217
  %v219 = vrot.slane %v209, %v218
  %222 = vrot.lane.b32.xlu0 %v214, 8
  %v223 = vpop.permute.xlu0 %222
  %224 = vrot.lane.b32.xlu0 %v215, 8
  %v225 = vpop.permute.xlu0 %224
  %vm226 = vcmask 64512
  %v227 = vsel %vm226, %v223, %v225
  %v229 = vmul.f32 %v219, %v227
  %v230 = vadd.f32 %v207, %v229
  %231 = vst [vmem:[#allocation3 + $0x8] sm:$0xff] %v230
  %v232 = vld [vmem:[#allocation3 + $0x8] sm:$0xf]
  %v233 = vmul.f32 %v232, 0.0625
  %v234 = vld [vmem:[#allocation3 + $0x8] sm:$0xf0]
  %v235 = vmul.f32 %v234, 0.0625
  %v236 = vmul.f32 %v233, %v233
  %v238 = vrot.slane %v236, 4
  %v240 = vsub.f32 %v235, %v238
  %v241 = vadd.f32 %v240, 1e-05
  %v242 = vrsqrt.pop %v241
  %v243 = vsub.f32 %v45, %v233
  %v245 = vrot.slane %v242, 4
  %v247 = vmul.f32 %v243, %v245
  %v248 = vld [vmem:[%s1] sm:$0x1]
  %v249 = vlaneseq
  %v250 = vshrl.u32 %v249, 7
  %v251 = vsub.s32 0, %v250
  %v252 = vrot.slane %v248, %v251
  %v253 = vmul.f32 %v247, %v252
  %v254 = vld [vmem:[%s1 + $0x1] sm:$0x1]
  %v255 = vlaneseq
  %v256 = vshrl.u32 %v255, 7
  %v257 = vsub.s32 0, %v256
  %v258 = vrot.slane %v254, %v257
  %v259 = vadd.f32 %v253, %v258
  %260 = vst [vmem:[#allocation2 + $0x4] sm:$0xf] %v259
  %v261 = vld [vmem:[#allocation2] sm:$0xff]
  %v262 = vld [vmem:[%s3] sm:$0x1]
  %v263 = vlaneseq
  %v264 = vshrl.u32 %v263, 7
  %v265 = vsub.s32 0, %v264
  %v266 = vrot.slane %v262, %v265
  %268 = vrot.lane.b32.xlu0 %v266, 110
  %v269 = vpop.permute.xlu0 %268
  %v270 = vrot.slane %v269, 4
  %vm271 = vcmask 900096
  %v272 = vsel %vm271, %v270, %v269
  %v274 = vmul.f32 %v261, %v272
  %v276 = vcombine.high %v274, %v274
  %277 = vrot.lane.b32.xlu0 %v274, 18
  %v278 = vpop.permute.xlu0 %277
  %279 = vrot.lane.b32.xlu0 %v276, 18
  %v280 = vpop.permute.xlu0 %279
  %vm281 = vcmask 146432
  %v282 = vsel %vm281, %v278, %v280
  %284 = vst [vmem:[#allocation4] sm:$0xf] %v282
  %v285 = vld [vmem:[#allocation2] sm:$0xff]
  %v286 = vld [vmem:[%s3 + $0x1] sm:$0x1]
  %v287 = vlaneseq
  %v288 = vshrl.u32 %v287, 7
  %v289 = vsub.s32 0, %v288
  %v290 = vrot.slane %v286, %v289
  %292 = vrot.lane.b32.xlu0 %v290, 111
  %v293 = vpop.permute.xlu0 %292
  %v294 = vrot.slane %v293, 4
  %vm295 = vcmask 908288
  %v296 = vsel %vm295, %v294, %v293
  %v298 = vmul.f32 %v285, %v296
  %v300 = vcombine.high %v298, %v298
  %301 = vrot.lane.b32.xlu0 %v298, 17
  %v302 = vpop.permute.xlu0 %301
  %303 = vrot.lane.b32.xlu0 %v300, 17
  %v304 = vpop.permute.xlu0 %303
  %vm305 = vcmask 138240
  %v306 = vsel %vm305, %v302, %v304
  %308 = vst [vmem:[#allocation4 + $0x4] sm:$0xf] %v306
  %v309 = vld [vmem:[#allocation2] sm:$0xff]
  %v310 = vld [vmem:[%s3 + $0x2] sm:$0x1]
  %v311 = vlaneseq
  %v312 = vshrl.u32 %v311, 7
  %v313 = vsub.s32 0, %v312
  %v314 = vrot.slane %v310, %v313
  %316 = vrot.lane.b32.xlu0 %v314, 112
  %v317 = vpop.permute.xlu0 %316
  %v318 = vrot.slane %v317, 4
  %vm319 = vcmask 916480
  %v320 = vsel %vm319, %v318, %v317
  %v322 = vmul.f32 %v309, %v320
  %v324 = vcombine.high %v322, %v322
  %325 = vrot.lane.b32.xlu0 %v322, 16
  %v326 = vpop.permute.xlu0 %325
  %327 = vrot.lane.b32.xlu0 %v324, 16
  %v328 = vpop.permute.xlu0 %327
  %vm329 = vcmask 130048
  %v330 = vsel %vm329, %v326, %v328
  %332 = vst [vmem:[#allocation4 + $0x8] sm:$0xf] %v330
  %v333 = vld [vmem:[#allocation2] sm:$0xff]
  %v334 = vld [vmem:[%s3 + $0x3] sm:$0x1]
  %v335 = vlaneseq
  %v336 = vshrl.u32 %v335, 7
  %v337 = vsub.s32 0, %v336
  %v338 = vrot.slane %v334, %v337
  %340 = vrot.lane.b32.xlu0 %v338, 113
  %v341 = vpop.permute.xlu0 %340
  %v342 = vrot.slane %v341, 4
  %vm343 = vcmask 924672
  %v344 = vsel %vm343, %v342, %v341
  %v346 = vmul.f32 %v333, %v344
  %v348 = vcombine.high %v346, %v346
  %349 = vrot.lane.b32.xlu0 %v346, 15
  %v350 = vpop.permute.xlu0 %349
  %351 = vrot.lane.b32.xlu0 %v348, 15
  %v352 = vpop.permute.xlu0 %351
  %vm353 = vcmask 121856
  %v354 = vsel %vm353, %v350, %v352
  %356 = vst [vmem:[#allocation4 + $0xc] sm:$0xf] %v354
  %v357 = vld [vmem:[#allocation2] sm:$0xff]
  %v358 = vld [vmem:[%s3 + $0x4] sm:$0x1]
  %v359 = vlaneseq
  %v360 = vshrl.u32 %v359, 7
  %v361 = vsub.s32 0, %v360
  %v362 = vrot.slane %v358, %v361
  %364 = vrot.lane.b32.xlu0 %v362, 114
  %v365 = vpop.permute.xlu0 %364
  %v366 = vrot.slane %v365, 4
  %vm367 = vcmask 932864
  %v368 = vsel %vm367, %v366, %v365
  %v370 = vmul.f32 %v357, %v368
  %v372 = vcombine.high %v370, %v370
  %373 = vrot.lane.b32.xlu0 %v370, 14
  %v374 = vpop.permute.xlu0 %373
  %375 = vrot.lane.b32.xlu0 %v372, 14
  %v376 = vpop.permute.xlu0 %375
  %vm377 = vcmask 113664
  %v378 = vsel %vm377, %v374, %v376
  %380 = vst [vmem:[#allocation4 + $0x10] sm:$0xf] %v378
  %v381 = vld [vmem:[#allocation2] sm:$0xff]
  %v382 = vld [vmem:[%s3 + $0x5] sm:$0x1]
  %v383 = vlaneseq
  %v384 = vshrl.u32 %v383, 7
  %v385 = vsub.s32 0, %v384
  %v386 = vrot.slane %v382, %v385
  %388 = vrot.lane.b32.xlu0 %v386, 126
  %v389 = vpop.permute.xlu0 %388
  %v390 = vrot.slane %v389, 4
  %v391 = vsel %vm86, %v390, %v389
  %v393 = vmul.f32 %v381, %v391
  %v395 = vcombine.high %v393, %v393
  %396 = vrot.lane.b32.xlu0 %v393, 2
  %v397 = vpop.permute.xlu0 %396
  %398 = vrot.lane.b32.xlu0 %v395, 2
  %v399 = vpop.permute.xlu0 %398
  %v400 = vsel %vm176, %v397, %v399
  %402 = vst [vmem:[#allocation4 + $0x14] sm:$0xf] %v400
  %v403 = vld [vmem:[#allocation2] sm:$0xff]
  %v404 = vld [vmem:[%s3 + $0x6] sm:$0x1]
  %v405 = vlaneseq
  %v406 = vshrl.u32 %v405, 7
  %v407 = vsub.s32 0, %v406
  %v408 = vrot.slane %v404, %v407
  %410 = vrot.lane.b32.xlu0 %v408, 127
  %v411 = vpop.permute.xlu0 %410
  %v412 = vrot.slane %v411, 4
  %v413 = vsel %vm66, %v412, %v411
  %v415 = vmul.f32 %v403, %v413
  %v417 = vcombine.high %v415, %v415
  %418 = vrot.lane.b32.xlu0 %v415, 1
  %v419 = vpop.permute.xlu0 %418
  %420 = vrot.lane.b32.xlu0 %v417, 1
  %v421 = vpop.permute.xlu0 %420
  %v422 = vsel %vm151, %v419, %v421
  %424 = vst [vmem:[#allocation4 + $0x18] sm:$0xf] %v422
  %v425 = vld [vmem:[#allocation2 + $0x4] sm:$0xf]
  %v426 = vld [vmem:[%s3 + $0x7] sm:$0x1]
  %v427 = vlaneseq
  %v428 = vshrl.u32 %v427, 7
  %v429 = vsub.s32 0, %v428
  %v430 = vrot.slane %v426, %v429
  %v431 = vmul.f32 %v425, %v430
  %432 = vst [vmem:[#allocation4 + $0x1c] sm:$0xf] %v431
  %v433 = vld [vmem:[#allocation2 + $0x4] sm:$0xff]
  %v434 = vld [vmem:[%s3 + $0x8] sm:$0x1]
  %v435 = vlaneseq
  %v436 = vshrl.u32 %v435, 7
  %v437 = vsub.s32 0, %v436
  %v438 = vrot.slane %v434, %v437
  %440 = vrot.lane.b32.xlu0 %v438, 1
  %v441 = vpop.permute.xlu0 %440
  %v442 = vrot.slane %v441, 4
  %v443 = vsel %vm151, %v442, %v441
  %v445 = vmul.f32 %v433, %v443
  %v447 = vcombine.high %v445, %v445
  %448 = vrot.lane.b32.xlu0 %v445, 127
  %v449 = vpop.permute.xlu0 %448
  %450 = vrot.lane.b32.xlu0 %v447, 127
  %v451 = vpop.permute.xlu0 %450
  %v452 = vsel %vm66, %v449, %v451
  %454 = vst [vmem:[#allocation4 + $0x20] sm:$0xf] %v452
  %v455 = vld [vmem:[#allocation2 + $0x4] sm:$0xff]
  %v456 = vld [vmem:[%s3 + $0x9] sm:$0x1]
  %v457 = vlaneseq
  %v458 = vshrl.u32 %v457, 7
  %v459 = vsub.s32 0, %v458
  %v460 = vrot.slane %v456, %v459
  %462 = vrot.lane.b32.xlu0 %v460, 2
  %v463 = vpop.permute.xlu0 %462
  %v464 = vrot.slane %v463, 4
  %v465 = vsel %vm176, %v464, %v463
  %v467 = vmul.f32 %v455, %v465
  %v469 = vcombine.high %v467, %v467
  %470 = vrot.lane.b32.xlu0 %v467, 126
  %v471 = vpop.permute.xlu0 %470
  %472 = vrot.lane.b32.xlu0 %v469, 126
  %v473 = vpop.permute.xlu0 %472
  %v474 = vsel %vm86, %v471, %v473
  %476 = vst [vmem:[#allocation4 + $0x24] sm:$0xf] %v474
  %v477 = vld [vmem:[#allocation2 + $0x4] sm:$0xff]
  %v478 = vld [vmem:[%s3 + $0xa] sm:$0x1]
  %v479 = vlaneseq
  %v480 = vshrl.u32 %v479, 7
  %v481 = vsub.s32 0, %v480
  %v482 = vrot.slane %v478, %v481
  %484 = vrot.lane.b32.xlu0 %v482, 14
  %v485 = vpop.permute.xlu0 %484
  %v486 = vrot.slane %v485, 4
  %v487 = vsel %vm377, %v486, %v485
  %v489 = vmul.f32 %v477, %v487
  %v491 = vcombine.high %v489, %v489
  %492 = vrot.lane.b32.xlu0 %v489, 114
  %v493 = vpop.permute.xlu0 %492
  %494 = vrot.lane.b32.xlu0 %v491, 114
  %v495 = vpop.permute.xlu0 %494
  %v496 = vsel %vm367, %v493, %v495
  %498 = vst [vmem:[#allocation4 + $0x28] sm:$0xf] %v496
  %v499 = vld [vmem:[#allocation2 + $0x4] sm:$0xff]
  %v500 = vld [vmem:[%s3 + $0xb] sm:$0x1]
  %v501 = vlaneseq
  %v502 = vshrl.u32 %v501, 7
  %v503 = vsub.s32 0, %v502
  %v504 = vrot.slane %v500, %v503
  %506 = vrot.lane.b32.xlu0 %v504, 15
  %v507 = vpop.permute.xlu0 %506
  %v508 = vrot.slane %v507, 4
  %v509 = vsel %vm353, %v508, %v507
  %v511 = vmul.f32 %v499, %v509
  %v513 = vcombine.high %v511, %v511
  %514 = vrot.lane.b32.xlu0 %v511, 113
  %v515 = vpop.permute.xlu0 %514
  %516 = vrot.lane.b32.xlu0 %v513, 113
  %v517 = vpop.permute.xlu0 %516
  %v518 = vsel %vm343, %v515, %v517
  %520 = vst [vmem:[#allocation4 + $0x2c] sm:$0xf] %v518
  %v521 = vld [vmem:[#allocation2 + $0x4] sm:$0xff]
  %v522 = vld [vmem:[%s3 + $0xc] sm:$0x1]
  %v523 = vlaneseq
  %v524 = vshrl.u32 %v523, 7
  %v525 = vsub.s32 0, %v524
  %v526 = vrot.slane %v522, %v525
  %528 = vrot.lane.b32.xlu0 %v526, 16
  %v529 = vpop.permute.xlu0 %528
  %v530 = vrot.slane %v529, 4
  %v531 = vsel %vm329, %v530, %v529
  %v533 = vmul.f32 %v521, %v531
  %v535 = vcombine.high %v533, %v533
  %536 = vrot.lane.b32.xlu0 %v533, 112
  %v537 = vpop.permute.xlu0 %536
  %538 = vrot.lane.b32.xlu0 %v535, 112
  %v539 = vpop.permute.xlu0 %538
  %v540 = vsel %vm319, %v537, %v539
  %542 = vst [vmem:[#allocation4 + $0x30] sm:$0xf] %v540
  %v543 = vld [vmem:[#allocation2 + $0x4] sm:$0xff]
  %v544 = vld [vmem:[%s3 + $0xd] sm:$0x1]
  %v545 = vlaneseq
  %v546 = vshrl.u32 %v545, 7
  %v547 = vsub.s32 0, %v546
  %v548 = vrot.slane %v544, %v547
  %550 = vrot.lane.b32.xlu0 %v548, 17
  %v551 = vpop.permute.xlu0 %550
  %v552 = vrot.slane %v551, 4
  %v553 = vsel %vm305, %v552, %v551
  %v555 = vmul.f32 %v543, %v553
  %v557 = vcombine.high %v555, %v555
  %558 = vrot.lane.b32.xlu0 %v555, 111
  %v559 = vpop.permute.xlu0 %558
  %560 = vrot.lane.b32.xlu0 %v557, 111
  %v561 = vpop.permute.xlu0 %560
  %v562 = vsel %vm295, %v559, %v561
  %564 = vst [vmem:[#allocation4 + $0x34] sm:$0xf] %v562
  %v565 = vld [vmem:[#allocation2 + $0x4] sm:$0xff]
  %v566 = vld [vmem:[%s3 + $0xe] sm:$0x1]
  %v567 = vlaneseq
  %v568 = vshrl.u32 %v567, 7
  %v569 = vsub.s32 0, %v568
  %v570 = vrot.slane %v566, %v569
  %572 = vrot.lane.b32.xlu0 %v570, 18
  %v573 = vpop.permute.xlu0 %572
  %v574 = vrot.slane %v573, 4
  %v575 = vsel %vm281, %v574, %v573
  %v577 = vmul.f32 %v565, %v575
  %v579 = vcombine.high %v577, %v577
  %580 = vrot.lane.b32.xlu0 %v577, 110
  %v581 = vpop.permute.xlu0 %580
  %582 = vrot.lane.b32.xlu0 %v579, 110
  %v583 = vpop.permute.xlu0 %582
  %v584 = vsel %vm271, %v581, %v583
  %586 = vst [vmem:[#allocation4 + $0x38] sm:$0xf] %v584
  %v587 = vld [vmem:[%s4] sm:$0xf]
  %v588 = vld [vmem:[%s4 + $0x4] sm:$0xf]
  %v589 = vld [vmem:[#allocation4] sm:$0xff]
  %v590 = vld [vmem:[#allocation4 + $0x8] sm:$0xff]
  %v591 = vld [vmem:[#allocation4 + $0x10] sm:$0xff]
  %v592 = vld [vmem:[#allocation4 + $0x18] sm:$0xff]
  %v593 = vld [vmem:[#allocation4 + $0x20] sm:$0xff]
  %v594 = vld [vmem:[#allocation4 + $0x28] sm:$0xff]
  %v595 = vld [vmem:[#allocation4 + $0x30] sm:$0xff]
  %v596 = vld [vmem:[#allocation4 + $0x38] sm:$0xf]
  %v597 = vpack.c.bf16 %v590, %v589
  %v598 = vpack.c.bf16 %v592, %v591
  %v599 = vpack.c.bf16 %v594, %v593
  %v600 = vpack.c.bf16 %v596, %v595
  %v601 = vld [vmem:[%s5] sm:$0xff]
  %v602 = vld [vmem:[%s5 + $0x8] sm:$0xff]
  %604 = vset.pattern.permute.xlu0 0
  %605 = vperm.xlu0 %604, %v601
  %v606 = vpop.permute.xlu0 %605
  %609 = vset.pattern.permute.xlu0 0
  %610 = vperm.xlu0 %609, %v602
  %v611 = vpop.permute.xlu0 %610
  %v615 = vunpack.c.l.b16 %v587
  %v616 = vunpack.c.l.b16 %v588
  %v617 = vpack.c.b16 %v616, %v615
  %vm618 = vcmask 490496
  %v620 = vsel %vm618, %v617, 0
  %vm622 = vcmask 1045504
  %v624 = vsel %vm622, %v600, 0
  %626 = vmatprep.subr.bf16.mxu0 0
  %627 = vmatpush1.bf16.msra.mxu0 0
  %628 = vmatprep.subr.bf16.mxu0 0
  %629 = vmatpush1.bf16.msra.mxu0 0
  %630 = vmatprep.subr.bf16.mxu0 0
  %631 = vmatpush1.bf16.msra.mxu0 0
  %632 = vmatprep.subr.bf16.mxu0 0
  %633 = vmatpush1.bf16.msra.mxu0 0
  %634 = vmatprep.subr.bf16.mxu0 0
  %635 = vmatpush1.bf16.msra.mxu0 %v624
  %636 = vmatprep.subr.bf16.mxu0 0
  %637 = vmatpush1.bf16.msra.mxu0 %v599
  %638 = vmatprep.subr.bf16.mxu0 0
  %639 = vmatpush1.bf16.msra.mxu0 %v598
  %640 = vmatprep.subr.bf16.mxu0 0
  %641 = vmatpush1.bf16.msra.mxu0 %v597
  %642 = vmatprep.subr.bf16.mxu0 0
  %643 = vmatpush2.bf16.msra.mxu0 0
  %644 = vmatprep.subr.bf16.mxu0 0
  %645 = vmatpush2.bf16.msra.mxu0 0
  %646 = vmatprep.subr.bf16.mxu0 0
  %647 = vmatpush2.bf16.msra.mxu0 0
  %648 = vmatprep.subr.bf16.mxu0 0
  %649 = vmatpush2.bf16.msra.mxu0 0
  %650 = vmatprep.subr.bf16.mxu0 0
  %651 = vmatpush2.bf16.msra.mxu0 0
  %652 = vmatprep.subr.bf16.mxu0 0
  %653 = vmatpush2.bf16.msra.mxu0 0
  %654 = vmatprep.subr.bf16.mxu0 0
  %655 = vmatpush2.bf16.msra.mxu0 0
  %656 = vmatprep.subr.bf16.mxu0 0
  %657 = vmatpush2.bf16.msra.mxu0 0
  %658 = vmatprep.mubr.bf16.mxu0 0
  %659 = vmatmul.mubr.bf16.gmra.mxu0 %v620
  %v660 = vpop.f32.mrf.mxu0
  %v661 = vadd.f32 %v606, %v660
  %v662 = vpop.f32.mrf.mxu0
  %v663 = vpop.f32.mrf.mxu0
  %v664 = vadd.f32 %v611, %v663
  %v665 = vpop.f32.mrf.mxu0
  %666 = vdwg.mxu0
  %v667 = vmax.f32 %v661, 0.0
  %v668 = vmax.f32 %v664, 0.0
  %v669 = vpack.c.bf16 %v668, %v667
  %v670 = vld [vmem:[%s6] sm:$0xf]
  %v671 = vld [vmem:[%s6 + $0x4] sm:$0xf]
  %v672 = vld [vmem:[%s6 + $0x8] sm:$0xf]
  %v673 = vld [vmem:[%s6 + $0xc] sm:$0xf]
  %v674 = vld [vmem:[%s7] sm:$0xff]
  %v675 = vld [vmem:[%s7 + $0x8] sm:$0xff]
  %v676 = vld [vmem:[%s7 + $0x10] sm:$0xff]
  %v677 = vld [vmem:[%s7 + $0x18] sm:$0xff]
  %679 = vset.pattern.permute.xlu0 0
  %680 = vperm.xlu0 %679, %v674
  %v681 = vpop.permute.xlu0 %680
  %684 = vset.pattern.permute.xlu0 0
  %685 = vperm.xlu0 %684, %v675
  %v686 = vpop.permute.xlu0 %685
  %689 = vset.pattern.permute.xlu0 0
  %690 = vperm.xlu0 %689, %v676
  %v691 = vpop.permute.xlu0 %690
  %694 = vset.pattern.permute.xlu0 0
  %695 = vperm.xlu0 %694, %v677
  %v696 = vpop.permute.xlu0 %695
  %v702 = vunpack.c.l.b16 %v670
  %v703 = vunpack.c.l.b16 %v671
  %v704 = vunpack.c.l.b16 %v672
  %v705 = vunpack.c.l.b16 %v673
  %v706 = vpack.c.b16 %v703, %v702
  %v707 = vpack.c.b16 %v705, %v704
  %v709 = vsel %vm329, %v706, 0
  %v712 = vsel %vm329, %v707, 0
  %714 = vmatprep.subr.bf16.mxu0 0
  %715 = vmatpush1.bf16.msra.mxu0 0
  %716 = vmatprep.subr.bf16.mxu0 0
  %717 = vmatpush1.bf16.msra.mxu0 0
  %718 = vmatprep.subr.bf16.mxu0 0
  %719 = vmatpush1.bf16.msra.mxu0 0
  %720 = vmatprep.subr.bf16.mxu0 0
  %721 = vmatpush1.bf16.msra.mxu0 0
  %722 = vmatprep.subr.bf16.mxu0 0
  %723 = vmatpush1.bf16.msra.mxu0 0
  %724 = vmatprep.subr.bf16.mxu0 0
  %725 = vmatpush1.bf16.msra.mxu0 0
  %726 = vmatprep.subr.bf16.mxu0 0
  %727 = vmatpush1.bf16.msra.mxu0 0
  %728 = vmatprep.subr.bf16.mxu0 0
  %729 = vmatpush1.bf16.msra.mxu0 %v669
  %730 = vmatprep.subr.bf16.mxu0 0
  %731 = vmatpush2.bf16.msra.mxu0 0
  %732 = vmatprep.subr.bf16.mxu0 0
  %733 = vmatpush2.bf16.msra.mxu0 0
  %734 = vmatprep.subr.bf16.mxu0 0
  %735 = vmatpush2.bf16.msra.mxu0 0
  %736 = vmatprep.subr.bf16.mxu0 0
  %737 = vmatpush2.bf16.msra.mxu0 0
  %738 = vmatprep.subr.bf16.mxu0 0
  %739 = vmatpush2.bf16.msra.mxu0 0
  %740 = vmatprep.subr.bf16.mxu0 0
  %741 = vmatpush2.bf16.msra.mxu0 0
  %742 = vmatprep.subr.bf16.mxu0 0
  %743 = vmatpush2.bf16.msra.mxu0 0
  %744 = vmatprep.subr.bf16.mxu0 0
  %745 = vmatpush2.bf16.msra.mxu0 0
  %746 = vmatprep.mubr.bf16.mxu0 0
  %747 = vmatmul.mubr.bf16.gmra.mxu0 %v709
  %v748 = vpop.f32.mrf.mxu0
  %v749 = vadd.f32 %v681, %v748
  %v750 = vpop.f32.mrf.mxu0
  %v751 = vpop.f32.mrf.mxu0
  %v752 = vadd.f32 %v686, %v751
  %v753 = vpop.f32.mrf.mxu0
  %754 = vmatprep.mubr.bf16.mxu0 0
  %755 = vmatmul.mubr.bf16.gmra.mxu0 %v712
  %v756 = vpop.f32.mrf.mxu0
  %v757 = vadd.f32 %v691, %v756
  %v758 = vpop.f32.mrf.mxu0
  %v759 = vpop.f32.mrf.mxu0
  %v760 = vadd.f32 %v696, %v759
  %v761 = vpop.f32.mrf.mxu0
  %762 = vdwg.mxu0
  %v763 = vmax.f32 %v749, 0.0
  %v764 = vmax.f32 %v752, 0.0
  %v765 = vmax.f32 %v757, 0.0
  %v766 = vmax.f32 %v760, 0.0
  %v767 = vpack.c.bf16 %v764, %v763
  %v768 = vpack.c.bf16 %v766, %v765
  %v769 = vld [vmem:[%s8] sm:$0xf]
  %v770 = vld [vmem:[%s8 + $0x4] sm:$0xf]
  %v771 = vld [vmem:[%s8 + $0x8] sm:$0xf]
  %v772 = vld [vmem:[%s8 + $0xc] sm:$0xf]
  %v773 = vld [vmem:[%s9] sm:$0xff]
  %v774 = vld [vmem:[%s9 + $0x8] sm:$0xff]
  %v775 = vld [vmem:[%s9 + $0x10] sm:$0xff]
  %v776 = vld [vmem:[%s9 + $0x18] sm:$0xff]
  %778 = vset.pattern.permute.xlu0 0
  %779 = vperm.xlu0 %778, %v773
  %v780 = vpop.permute.xlu0 %779
  %783 = vset.pattern.permute.xlu0 0
  %784 = vperm.xlu0 %783, %v774
  %v785 = vpop.permute.xlu0 %784
  %788 = vset.pattern.permute.xlu0 0
  %789 = vperm.xlu0 %788, %v775
  %v790 = vpop.permute.xlu0 %789
  %793 = vset.pattern.permute.xlu0 0
  %794 = vperm.xlu0 %793, %v776
  %v795 = vpop.permute.xlu0 %794
  %v801 = vunpack.c.l.b16 %v769
  %v802 = vunpack.c.l.b16 %v770
  %v803 = vunpack.c.l.b16 %v771
  %v804 = vunpack.c.l.b16 %v772
  %v805 = vpack.c.b16 %v802, %v801
  %v806 = vpack.c.b16 %v804, %v803
  %vm807 = vcmask 261120
  %v809 = vsel %vm807, %v805, 0
  %v812 = vsel %vm807, %v806, 0
  %814 = vmatprep.subr.bf16.mxu0 0
  %815 = vmatpush1.bf16.msra.mxu0 0
  %816 = vmatprep.subr.bf16.mxu0 0
  %817 = vmatpush1.bf16.msra.mxu0 0
  %818 = vmatprep.subr.bf16.mxu0 0
  %819 = vmatpush1.bf16.msra.mxu0 0
  %820 = vmatprep.subr.bf16.mxu0 0
  %821 = vmatpush1.bf16.msra.mxu0 0
  %822 = vmatprep.subr.bf16.mxu0 0
  %823 = vmatpush1.bf16.msra.mxu0 0
  %824 = vmatprep.subr.bf16.mxu0 0
  %825 = vmatpush1.bf16.msra.mxu0 0
  %826 = vmatprep.subr.bf16.mxu0 0
  %827 = vmatpush1.bf16.msra.mxu0 %v768
  %828 = vmatprep.subr.bf16.mxu0 0
  %829 = vmatpush1.bf16.msra.mxu0 %v767
  %830 = vmatprep.subr.bf16.mxu0 0
  %831 = vmatpush2.bf16.msra.mxu0 0
  %832 = vmatprep.subr.bf16.mxu0 0
  %833 = vmatpush2.bf16.msra.mxu0 0
  %834 = vmatprep.subr.bf16.mxu0 0
  %835 = vmatpush2.bf16.msra.mxu0 0
  %836 = vmatprep.subr.bf16.mxu0 0
  %837 = vmatpush2.bf16.msra.mxu0 0
  %838 = vmatprep.subr.bf16.mxu0 0
  %839 = vmatpush2.bf16.msra.mxu0 0
  %840 = vmatprep.subr.bf16.mxu0 0
  %841 = vmatpush2.bf16.msra.mxu0 0
  %842 = vmatprep.subr.bf16.mxu0 0
  %843 = vmatpush2.bf16.msra.mxu0 0
  %844 = vmatprep.subr.bf16.mxu0 0
  %845 = vmatpush2.bf16.msra.mxu0 0
  %846 = vmatprep.mubr.bf16.mxu0 0
  %847 = vmatmul.mubr.bf16.gmra.mxu0 %v809
  %v848 = vpop.f32.mrf.mxu0
  %v849 = vadd.f32 %v780, %v848
  %v850 = vpop.f32.mrf.mxu0
  %v851 = vpop.f32.mrf.mxu0
  %v852 = vadd.f32 %v785, %v851
  %v853 = vpop.f32.mrf.mxu0
  %854 = vmatprep.mubr.bf16.mxu0 0
  %855 = vmatmul.mubr.bf16.gmra.mxu0 %v812
  %v856 = vpop.f32.mrf.mxu0
  %v857 = vadd.f32 %v790, %v856
  %v858 = vpop.f32.mrf.mxu0
  %v859 = vpop.f32.mrf.mxu0
  %v860 = vadd.f32 %v795, %v859
  %v861 = vpop.f32.mrf.mxu0
  %862 = vdwg.mxu0
  %v863 = vmax.f32 %v849, 0.0
  %v864 = vmax.f32 %v852, 0.0
  %v865 = vmax.f32 %v857, 0.0
  %v866 = vmax.f32 %v860, 0.0
  %v867 = vpack.c.bf16 %v864, %v863
  %v868 = vpack.c.bf16 %v866, %v865
  %v869 = vld [vmem:[%s10] sm:$0xf]
  %v870 = vld [vmem:[%s10 + $0x4] sm:$0xf]
  %v871 = vld [vmem:[%s10 + $0x8] sm:$0xf]
  %v872 = vld [vmem:[%s10 + $0xc] sm:$0xf]
  %v873 = vld [vmem:[%s10 + $0x10] sm:$0xf]
  %v874 = vld [vmem:[%s10 + $0x14] sm:$0xf]
  %v875 = vld [vmem:[%s10 + $0x18] sm:$0xf]
  %v876 = vld [vmem:[%s10 + $0x1c] sm:$0xf]
  %v877 = vld [vmem:[%s10 + $0x20] sm:$0xf]
  %v878 = vld [vmem:[%s10 + $0x24] sm:$0xf]
  %v879 = vld [vmem:[%s10 + $0x28] sm:$0xf]
  %v880 = vld [vmem:[%s10 + $0x2c] sm:$0xf]
  %v881 = vld [vmem:[%s10 + $0x30] sm:$0xf]
  %v882 = vld [vmem:[%s10 + $0x34] sm:$0xf]
  %v883 = vld [vmem:[%s10 + $0x38] sm:$0xf]
  %v884 = vld [vmem:[%s10 + $0x3c] sm:$0xf]
  %v901 = vunpack.c.l.b16 %v869
  %v902 = vunpack.c.l.b16 %v870
  %v903 = vunpack.c.l.b16 %v871
  %v904 = vunpack.c.l.b16 %v872
  %v905 = vunpack.c.l.b16 %v873
  %v906 = vunpack.c.l.b16 %v874
  %v907 = vunpack.c.l.b16 %v875
  %v908 = vunpack.c.l.b16 %v876
  %v909 = vunpack.c.l.b16 %v877
  %v910 = vunpack.c.l.b16 %v878
  %v911 = vunpack.c.l.b16 %v879
  %v912 = vunpack.c.l.b16 %v880
  %v913 = vunpack.c.l.b16 %v881
  %v914 = vunpack.c.l.b16 %v882
  %v915 = vunpack.c.l.b16 %v883
  %v916 = vunpack.c.l.b16 %v884
  %v917 = vpack.c.b16 %v902, %v901
  %v918 = vpack.c.b16 %v904, %v903
  %v919 = vpack.c.b16 %v906, %v905
  %v920 = vpack.c.b16 %v908, %v907
  %v921 = vpack.c.b16 %v910, %v909
  %v922 = vpack.c.b16 %v912, %v911
  %v923 = vpack.c.b16 %v914, %v913
  %v924 = vpack.c.b16 %v916, %v915
  %933 = vmatprep.subr.bf16.mxu0 0
  %934 = vmatpush1.bf16.msra.mxu0 %v924
  %935 = vmatprep.subr.bf16.mxu0 0
  %936 = vmatpush1.bf16.msra.mxu0 %v923
  %937 = vmatprep.subr.bf16.mxu0 0
  %938 = vmatpush1.bf16.msra.mxu0 %v922
  %939 = vmatprep.subr.bf16.mxu0 0
  %940 = vmatpush1.bf16.msra.mxu0 %v921
  %941 = vmatprep.subr.bf16.mxu0 0
  %942 = vmatpush1.bf16.msra.mxu0 %v920
  %943 = vmatprep.subr.bf16.mxu0 0
  %944 = vmatpush1.bf16.msra.mxu0 %v919
  %945 = vmatprep.subr.bf16.mxu0 0
  %946 = vmatpush1.bf16.msra.mxu0 %v918
  %947 = vmatprep.subr.bf16.mxu0 0
  %948 = vmatpush1.bf16.msra.mxu0 %v917
  %949 = vmatprep.subr.bf16.mxu0 0
  %950 = vmatpush2.bf16.msra.mxu0 0
  %951 = vmatprep.subr.bf16.mxu0 0
  %952 = vmatpush2.bf16.msra.mxu0 0
  %953 = vmatprep.subr.bf16.mxu0 0
  %954 = vmatpush2.bf16.msra.mxu0 0
  %955 = vmatprep.subr.bf16.mxu0 0
  %956 = vmatpush2.bf16.msra.mxu0 0
  %957 = vmatprep.subr.bf16.mxu0 0
  %958 = vmatpush2.bf16.msra.mxu0 0
  %959 = vmatprep.subr.bf16.mxu0 0
  %960 = vmatpush2.bf16.msra.mxu0 0
  %961 = vmatprep.subr.bf16.mxu0 0
  %962 = vmatpush2.bf16.msra.mxu0 0
  %963 = vmatprep.subr.bf16.mxu0 0
  %964 = vmatpush2.bf16.msra.mxu0 0
  %965 = vmatprep.mubr.bf16.mxu0 0
  %966 = vmatmul.mubr.bf16.gmra.mxu0 %v867
  %v967 = vpop.f32.mrf.mxu0
  %v968 = vadd.f32 0.0, %v967
  %v969 = vpop.f32.mrf.mxu0
  %v970 = vpop.f32.mrf.mxu0
  %v971 = vadd.f32 0.0, %v970
  %v972 = vpop.f32.mrf.mxu0
  %973 = vmatprep.mubr.bf16.mxu0 0
  %974 = vmatmul.mubr.bf16.gmra.mxu0 %v868
  %v975 = vpop.f32.mrf.mxu0
  %v976 = vadd.f32 0.0, %v975
  %v977 = vpop.f32.mrf.mxu0
  %v978 = vpop.f32.mrf.mxu0
  %v979 = vadd.f32 0.0, %v978
  %v980 = vpop.f32.mrf.mxu0
  %981 = vdwg.mxu0
  %v982 = vmul.f32 %v968, 0.015625
  %v983 = vmul.f32 %v971, 0.015625
  %v984 = vmul.f32 %v976, 0.015625
  %v985 = vmul.f32 %v979, 0.015625
  %986 = vst.msk [vmem:[%s11] sm:$0xff] %vm176, %v982
  %987 = vst.msk [vmem:[%s11 + $0x8] sm:$0xff] %vm176, %v983
  %988 = vst.msk [vmem:[%s11 + $0x10] sm:$0xff] %vm176, %v984
  %989 = vst.msk [vmem:[%s11 + $0x18] sm:$0xff] %vm176, %v985
  // Predicated region
  $region46: #{tpu_custom_call.1} parent=0 // pred_check
    _
  $region47: #{tpu_custom_call.1} parent=0 // pred_check_branch
    %991 = sbr.rel (0) target = $region49
  $region48: #{tpu_custom_call.1} parent=0 // pred_region
    _
  $region49: #{tpu_custom_call.1} parent=0 // pred_fallthru
    _
  // Predicated region
  $region50: #{tpu_custom_call.1} parent=0 // pred_check
    _
  $region51: #{tpu_custom_call.1} parent=0 // pred_check_branch
    %993 = sbr.rel (0) target = $region53
  $region52: #{tpu_custom_call.1} parent=0 // pred_region
    _
  $region53: #{tpu_custom_call.1} parent=0 // pred_fallthru
    _

</llo_original>
